<compile_context>
chip_gen: v7x
topology: tpu7x:2x2x1
jax: 0.10.0
libtpu: 0.0.40
codegen_flags: <defaults>
</compile_context>

<pallas_src>
import math

import jax
import jax.numpy as jnp
from jax.experimental import pallas as pl
from jax.experimental.pallas import tpu as pltpu

# ---------------- tiny BERT config (synthetic) ----------------
VOCAB = 100
TYPE_VOCAB = 2
MAX_POS = 32
HIDDEN = 32
HEADS = 2
HEAD_DIM = HIDDEN // HEADS
LAYERS = 2
INTER = 64
LN_EPS = 1e-12
ATTN_SCALE = 1.0 / math.sqrt(HEAD_DIM)


# ---------------- in-kernel helpers ----------------
def _ln(x, g, b):
    """LayerNorm over last dim. x:(S,H)  g,b:(1,H)."""
    mu = jnp.mean(x, axis=-1, keepdims=True)
    d = x - mu
    var = jnp.mean(d * d, axis=-1, keepdims=True)
    return d * jax.lax.rsqrt(var + LN_EPS) * g + b


def _gelu(y):
    # exact (erf-based) GELU, as in HF BERT / torch default
    return 0.5 * y * (1.0 + jax.lax.erf(y * (1.0 / math.sqrt(2.0))))


# ---------------- fused encoder kernel (one batch element per grid step) ----------------
def _bert_fused_kernel(emb_ref, mask_ref,
                       emb_ln_g, emb_ln_b,
                       qkv_w, qkv_b, ao_w, ao_b, ln1_g, ln1_b,
                       i_w, i_b, o_w, o_b, ln2_g, ln2_b,
                       pooler_w, pooler_b,
                       out_ref):
    # emb_ref: (1, S, H)   mask_ref: (1, 1, S) additive mask
    x = _ln(emb_ref[0], emb_ln_g[...], emb_ln_b[...])      # (S, H), stays resident
    mask = mask_ref[0]                                      # (1, S) broadcasts over query rows

    for l in range(LAYERS):                                 # static unroll; weights all in VMEM
        # --- fused Q/K/V projection: one MXU pass, lane width 96 ---
        qkv = jnp.dot(x, qkv_w[l], preferred_element_type=jnp.float32) + qkv_b[l]

        # --- multi-head attention; output projection folded per head so we
        #     never materialize a concatenated ctx slab ---
        attn_acc = None
        for h in range(HEADS):
            q_sl = slice(h * HEAD_DIM, (h + 1) * HEAD_DIM)
            k_sl = slice(HIDDEN + h * HEAD_DIM, HIDDEN + (h + 1) * HEAD_DIM)
            v_sl = slice(2 * HIDDEN + h * HEAD_DIM, 2 * HIDDEN + (h + 1) * HEAD_DIM)
            qh, kh, vh = qkv[:, q_sl], qkv[:, k_sl], qkv[:, v_sl]

            # NT matmul: contract last dims directly (no explicit k.T relayout)
            s = jax.lax.dot_general(qh, kh, (((1,), (1,)), ((), ())),
                                    preferred_element_type=jnp.float32)
            s = s * ATTN_SCALE + mask
            s = s - jnp.max(s, axis=-1, keepdims=True)
            p = jnp.exp(s)
            p = p * pl.reciprocal(jnp.sum(p, axis=-1, keepdims=True), approx=True)
            ctx_h = jnp.dot(p, vh, preferred_element_type=jnp.float32)        # (S, D)
            contrib = jnp.dot(ctx_h, ao_w[l][h * HEAD_DIM:(h + 1) * HEAD_DIM, :],
                              preferred_element_type=jnp.float32)             # (S, H)
            attn_acc = contrib if attn_acc is None else attn_acc + contrib

        # --- attention output bias + fused residual + LayerNorm ---
        x = _ln(attn_acc + ao_b[l] + x, ln1_g[l], ln1_b[l])  # dropout == identity (eval)

        # --- feed-forward (GELU) + fused residual + LayerNorm ---
        inter = _gelu(jnp.dot(x, i_w[l], preferred_element_type=jnp.float32) + i_b[l])
        out = jnp.dot(inter, o_w[l], preferred_element_type=jnp.float32) + o_b[l]
        x = _ln(out + x, ln2_g[l], ln2_b[l])

    # --- pooler folded in: tanh(W @ hidden[:, 0] + b) == outputs[1] ---
    cls = x[0:1, :]                                          # (1, H)
    pooled = jnp.tanh(jnp.dot(cls, pooler_w[...], preferred_element_type=jnp.float32)
                      + pooler_b[...])
    out_ref[0] = pooled


def _full_spec(shape):
    n = len(shape)
    return pl.BlockSpec(shape, lambda b, _n=n: (0,) * _n)


# ---------------- parameter init (deterministic, synthetic) ----------------
def init_params(key):
    def nrm(k, shape):
        return 0.02 * jax.random.normal(k, shape, dtype=jnp.float32)

    keys = iter(jax.random.split(key, 8 + LAYERS * 16))
    p = {
        "word_emb": nrm(next(keys), (VOCAB, HIDDEN)),
        "pos_emb": nrm(next(keys), (MAX_POS, HIDDEN)),
        "type_emb": nrm(next(keys), (TYPE_VOCAB, HIDDEN)),
        "emb_ln_g": jnp.ones((HIDDEN,), jnp.float32),
        "emb_ln_b": jnp.zeros((HIDDEN,), jnp.float32),
        "pooler_w": nrm(next(keys), (HIDDEN, HIDDEN)),
        "pooler_b": jnp.zeros((HIDDEN,), jnp.float32),
        "layers": [],
    }
    for _ in range(LAYERS):
        lp = {
            "q_w": nrm(next(keys), (HIDDEN, HIDDEN)), "q_b": jnp.zeros((HIDDEN,), jnp.float32),
            "k_w": nrm(next(keys), (HIDDEN, HIDDEN)), "k_b": jnp.zeros((HIDDEN,), jnp.float32),
            "v_w": nrm(next(keys), (HIDDEN, HIDDEN)), "v_b": jnp.zeros((HIDDEN,), jnp.float32),
            "ao_w": nrm(next(keys), (HIDDEN, HIDDEN)), "ao_b": jnp.zeros((HIDDEN,), jnp.float32),
            "ln1_g": jnp.ones((HIDDEN,), jnp.float32), "ln1_b": jnp.zeros((HIDDEN,), jnp.float32),
            "i_w": nrm(next(keys), (HIDDEN, INTER)), "i_b": jnp.zeros((INTER,), jnp.float32),
            "o_w": nrm(next(keys), (INTER, HIDDEN)), "o_b": jnp.zeros((HIDDEN,), jnp.float32),
            "ln2_g": jnp.ones((HIDDEN,), jnp.float32), "ln2_b": jnp.zeros((HIDDEN,), jnp.float32),
        }
        p["layers"].append(lp)
    return p


def pack_params(params):
    """Stack per-layer weights along a leading layer axis and fuse Q/K/V once."""
    lps = params["layers"]
    packed = {
        "word_emb": params["word_emb"],
        "pos_emb": params["pos_emb"],
        "type_emb": params["type_emb"],
        "emb_ln_g": params["emb_ln_g"][None, :],
        "emb_ln_b": params["emb_ln_b"][None, :],
        "pooler_w": params["pooler_w"],
        "pooler_b": params["pooler_b"][None, :],
        "qkv_w": jnp.stack([jnp.concatenate([lp["q_w"], lp["k_w"], lp["v_w"]], axis=1)
                            for lp in lps]),                                   # (L, H, 3H)
        "qkv_b": jnp.stack([jnp.concatenate([lp["q_b"], lp["k_b"], lp["v_b"]])[None, :]
                            for lp in lps]),                                   # (L, 1, 3H)
        "ao_w": jnp.stack([lp["ao_w"] for lp in lps]),
        "ao_b": jnp.stack([lp["ao_b"][None, :] for lp in lps]),
        "ln1_g": jnp.stack([lp["ln1_g"][None, :] for lp in lps]),
        "ln1_b": jnp.stack([lp["ln1_b"][None, :] for lp in lps]),
        "i_w": jnp.stack([lp["i_w"] for lp in lps]),
        "i_b": jnp.stack([lp["i_b"][None, :] for lp in lps]),
        "o_w": jnp.stack([lp["o_w"] for lp in lps]),
        "o_b": jnp.stack([lp["o_b"][None, :] for lp in lps]),
        "ln2_g": jnp.stack([lp["ln2_g"][None, :] for lp in lps]),
        "ln2_b": jnp.stack([lp["ln2_b"][None, :] for lp in lps]),
    }
    return packed


# ---------------- forward (embedding gather in XLA, everything else in one kernel) ----------------
@jax.jit
def bert_encoder_forward(packed, input_ids, attention_mask, token_type_ids):
    """Reproduces BertEncoder.forward: runs the BERT model and returns outputs[1]
    (the pooler output = tanh(W @ hidden[:, 0] + b))."""
    B, S = input_ids.shape

    pos_ids = jnp.arange(S, dtype=jnp.int32)[None, :]
    emb = (packed["word_emb"][input_ids]
           + packed["pos_emb"][pos_ids]
           + packed["type_emb"][token_type_ids]).astype(jnp.float32)          # (B, S, H)

    # Extended additive attention mask: (1 - m) * -10000, shared across heads.
    add_mask = ((1.0 - attention_mask.astype(jnp.float32)) * -10000.0)[:, None, :]  # (B, 1, S)

    inputs = (emb, add_mask,
              packed["emb_ln_g"], packed["emb_ln_b"],
              packed["qkv_w"], packed["qkv_b"],
              packed["ao_w"], packed["ao_b"],
              packed["ln1_g"], packed["ln1_b"],
              packed["i_w"], packed["i_b"],
              packed["o_w"], packed["o_b"],
              packed["ln2_g"], packed["ln2_b"],
              packed["pooler_w"], packed["pooler_b"])

    in_specs = [
        pl.BlockSpec((1, S, HIDDEN), lambda b: (b, 0, 0)),     # embeddings, one batch element
        pl.BlockSpec((1, 1, S), lambda b: (b, 0, 0)),          # additive mask
    ] + [_full_spec(x.shape) for x in inputs[2:]]              # all weights, full-array blocks

    pooled = pl.pallas_call(
        _bert_fused_kernel,
        out_shape=jax.ShapeDtypeStruct((B, 1, HIDDEN), jnp.float32),
        grid=(B,),
        in_specs=in_specs,
        out_specs=pl.BlockSpec((1, 1, HIDDEN), lambda b: (b, 0, 0)),
        compiler_params=pltpu.CompilerParams(
            dimension_semantics=("parallel",)),                # 2 batch elems -> 2 TCs on v7x
    )(*inputs)

    # TODO(synk): the original module does `print(embedding)` as a side effect; omitted
    # so the script's stdout is exactly "KERNEL_OK".
    return pooled.reshape(B, HIDDEN)


if __name__ == "__main__":
    key = jax.random.PRNGKey(0)
    k_param, k_ids = jax.random.split(key)

    params = init_params(k_param)
    packed = pack_params(params)

    B, S = 2, 8
    input_ids = jax.random.randint(k_ids, (B, S), 0, VOCAB, dtype=jnp.int32)
    attention_mask = jnp.array([[1, 1, 1, 1, 1, 1, 1, 1],
                                [1, 1, 1, 1, 1, 0, 0, 0]], dtype=jnp.int32)
    token_type_ids = jnp.array([[0, 0, 0, 0, 1, 1, 1, 1],
                                [0, 0, 0, 0, 0, 0, 0, 0]], dtype=jnp.int32)

    pooled = bert_encoder_forward(packed, input_ids, attention_mask, token_type_ids)
    pooled = jax.block_until_ready(pooled)
    assert pooled.shape == (B, HIDDEN) and pooled.dtype == jnp.float32
    assert bool(jnp.all(jnp.isfinite(pooled)))
    print("KERNEL_OK")
</pallas_src>

<mosaic_0001>
module attributes {stable_mosaic.version = 11 : i64} {
  func.func @_bert_fused_kernel(%arg0: i32, %arg1: memref<1x8x32xf32, #tpu.memory_space<vmem>>, %arg2: memref<1x1x8xf32, #tpu.memory_space<vmem>>, %arg3: memref<1x32xf32, #tpu.memory_space<vmem>>, %arg4: memref<1x32xf32, #tpu.memory_space<vmem>>, %arg5: memref<2x32x96xf32, #tpu.memory_space<vmem>>, %arg6: memref<2x1x96xf32, #tpu.memory_space<vmem>>, %arg7: memref<2x32x32xf32, #tpu.memory_space<vmem>>, %arg8: memref<2x1x32xf32, #tpu.memory_space<vmem>>, %arg9: memref<2x1x32xf32, #tpu.memory_space<vmem>>, %arg10: memref<2x1x32xf32, #tpu.memory_space<vmem>>, %arg11: memref<2x32x64xf32, #tpu.memory_space<vmem>>, %arg12: memref<2x1x64xf32, #tpu.memory_space<vmem>>, %arg13: memref<2x64x32xf32, #tpu.memory_space<vmem>>, %arg14: memref<2x1x32xf32, #tpu.memory_space<vmem>>, %arg15: memref<2x1x32xf32, #tpu.memory_space<vmem>>, %arg16: memref<2x1x32xf32, #tpu.memory_space<vmem>>, %arg17: memref<32x32xf32, #tpu.memory_space<vmem>>, %arg18: memref<1x32xf32, #tpu.memory_space<vmem>>, %arg19: memref<1x1x32xf32, #tpu.memory_space<vmem>>) attributes {dimension_semantics = [#tpu.dimension_semantics<parallel>], iteration_bounds = array<i64: 2>, scalar_prefetch = 0 : i64, scratch_operands = 0 : i64, tpu.core_type = #tpu.core_type<tc>, window_params = [{transform_indices = @transform_0, window_bounds = array<i64: 1, 8, 32>}, {transform_indices = @transform_1, window_bounds = array<i64: 1, 1, 8>}, {pipeline_mode = #tpu.pipeline_mode<synchronous>, transform_indices = @transform_2, window_bounds = array<i64: 1, 32>}, {pipeline_mode = #tpu.pipeline_mode<synchronous>, transform_indices = @transform_3, window_bounds = array<i64: 1, 32>}, {pipeline_mode = #tpu.pipeline_mode<synchronous>, transform_indices = @transform_4, window_bounds = array<i64: 2, 32, 96>}, {pipeline_mode = #tpu.pipeline_mode<synchronous>, transform_indices = @transform_5, window_bounds = array<i64: 2, 1, 96>}, {pipeline_mode = #tpu.pipeline_mode<synchronous>, transform_indices = @transform_6, window_bounds = array<i64: 2, 32, 32>}, {pipeline_mode = #tpu.pipeline_mode<synchronous>, transform_indices = @transform_7, window_bounds = array<i64: 2, 1, 32>}, {pipeline_mode = #tpu.pipeline_mode<synchronous>, transform_indices = @transform_8, window_bounds = array<i64: 2, 1, 32>}, {pipeline_mode = #tpu.pipeline_mode<synchronous>, transform_indices = @transform_9, window_bounds = array<i64: 2, 1, 32>}, {pipeline_mode = #tpu.pipeline_mode<synchronous>, transform_indices = @transform_10, window_bounds = array<i64: 2, 32, 64>}, {pipeline_mode = #tpu.pipeline_mode<synchronous>, transform_indices = @transform_11, window_bounds = array<i64: 2, 1, 64>}, {pipeline_mode = #tpu.pipeline_mode<synchronous>, transform_indices = @transform_12, window_bounds = array<i64: 2, 64, 32>}, {pipeline_mode = #tpu.pipeline_mode<synchronous>, transform_indices = @transform_13, window_bounds = array<i64: 2, 1, 32>}, {pipeline_mode = #tpu.pipeline_mode<synchronous>, transform_indices = @transform_14, window_bounds = array<i64: 2, 1, 32>}, {pipeline_mode = #tpu.pipeline_mode<synchronous>, transform_indices = @transform_15, window_bounds = array<i64: 2, 1, 32>}, {pipeline_mode = #tpu.pipeline_mode<synchronous>, transform_indices = @transform_16, window_bounds = array<i64: 32, 32>}, {pipeline_mode = #tpu.pipeline_mode<synchronous>, transform_indices = @transform_17, window_bounds = array<i64: 1, 32>}, {transform_indices = @transform_18, window_bounds = array<i64: 1, 1, 32>}]} {
    %c0 = arith.constant 0 : index
    %c0_0 = arith.constant 0 : index
    %c0_1 = arith.constant 0 : index
    %0 = vector.load %arg1[%c0, %c0_0, %c0_1] : memref<1x8x32xf32, #tpu.memory_space<vmem>>, vector<1x8x32xf32>
    %1 = vector.shape_cast %0 : vector<1x8x32xf32> to vector<8x32xf32>
    %c0_2 = arith.constant 0 : index
    %c0_3 = arith.constant 0 : index
    %2 = vector.load %arg3[%c0_2, %c0_3] : memref<1x32xf32, #tpu.memory_space<vmem>>, vector<1x32xf32>
    %c0_4 = arith.constant 0 : index
    %c0_5 = arith.constant 0 : index
    %3 = vector.load %arg4[%c0_4, %c0_5] : memref<1x32xf32, #tpu.memory_space<vmem>>, vector<1x32xf32>
    %cst = arith.constant dense<0.000000e+00> : vector<8xf32>
    %4 = vector.multi_reduction <add>, %1, %cst [1] : vector<8x32xf32> to vector<8xf32>
    %5 = vector.shape_cast %4 : vector<8xf32> to vector<8x1xf32>
    %cst_6 = arith.constant 3.200000e+01 : f32
    %6 = vector.broadcast %cst_6 : f32 to vector<8x1xf32>
    %7 = arith.divf %5, %6 : vector<8x1xf32>
    %8 = vector.broadcast %7 : vector<8x1xf32> to vector<8x32xf32>
    %9 = arith.subf %1, %8 : vector<8x32xf32>
    %10 = arith.mulf %9, %9 : vector<8x32xf32>
    %cst_7 = arith.constant dense<0.000000e+00> : vector<8xf32>
    %11 = vector.multi_reduction <add>, %10, %cst_7 [1] : vector<8x32xf32> to vector<8xf32>
    %12 = vector.shape_cast %11 : vector<8xf32> to vector<8x1xf32>
    %cst_8 = arith.constant 3.200000e+01 : f32
    %13 = vector.broadcast %cst_8 : f32 to vector<8x1xf32>
    %14 = arith.divf %12, %13 : vector<8x1xf32>
    %cst_9 = arith.constant 9.99999996E-13 : f32
    %15 = vector.broadcast %cst_9 : f32 to vector<8x1xf32>
    %16 = arith.addf %14, %15 : vector<8x1xf32>
    %17 = math.rsqrt %16 : vector<8x1xf32>
    %18 = vector.broadcast %17 : vector<8x1xf32> to vector<8x32xf32>
    %19 = arith.mulf %9, %18 : vector<8x32xf32>
    %20 = vector.broadcast %2 : vector<1x32xf32> to vector<8x32xf32>
    %21 = arith.mulf %19, %20 : vector<8x32xf32>
    %22 = vector.broadcast %3 : vector<1x32xf32> to vector<8x32xf32>
    %23 = arith.addf %21, %22 : vector<8x32xf32>
    %c0_10 = arith.constant 0 : index
    %c0_11 = arith.constant 0 : index
    %c0_12 = arith.constant 0 : index
    %24 = vector.load %arg2[%c0_10, %c0_11, %c0_12] : memref<1x1x8xf32, #tpu.memory_space<vmem>>, vector<1x1x8xf32>
    %25 = vector.shape_cast %24 : vector<1x1x8xf32> to vector<1x8xf32>
    %c0_13 = arith.constant 0 : index
    %c0_14 = arith.constant 0 : index
    %c0_15 = arith.constant 0 : index
    %26 = vector.load %arg5[%c0_13, %c0_14, %c0_15] : memref<2x32x96xf32, #tpu.memory_space<vmem>>, vector<1x32x96xf32>
    %27 = vector.shape_cast %26 : vector<1x32x96xf32> to vector<32x96xf32>
    %cst_16 = arith.constant dense<0.000000e+00> : vector<8x96xf32>
    %28 = tpu.matmul %23, %27, %cst_16 {dimension_numbers = #tpu.dot_dimension_numbers<[1], [0], [0], [1], [0, 0, 1, 1], [], []>} : vector<8x32xf32>, vector<32x96xf32>, vector<8x96xf32> -> vector<8x96xf32>
    %c0_17 = arith.constant 0 : index
    %c0_18 = arith.constant 0 : index
    %c0_19 = arith.constant 0 : index
    %29 = vector.load %arg6[%c0_17, %c0_18, %c0_19] : memref<2x1x96xf32, #tpu.memory_space<vmem>>, vector<1x1x96xf32>
    %30 = vector.shape_cast %29 : vector<1x1x96xf32> to vector<1x96xf32>
    %31 = vector.broadcast %30 : vector<1x96xf32> to vector<8x96xf32>
    %32 = arith.addf %28, %31 : vector<8x96xf32>
    %33 = vector.extract_strided_slice %32 {offsets = [0, 0], sizes = [8, 16], strides = [1, 1]} : vector<8x96xf32> to vector<8x16xf32>
    %34 = vector.extract_strided_slice %32 {offsets = [0, 32], sizes = [8, 16], strides = [1, 1]} : vector<8x96xf32> to vector<8x16xf32>
    %35 = vector.extract_strided_slice %32 {offsets = [0, 64], sizes = [8, 16], strides = [1, 1]} : vector<8x96xf32> to vector<8x16xf32>
    %cst_20 = arith.constant dense<0.000000e+00> : vector<8x8xf32>
    %36 = tpu.matmul %33, %34, %cst_20 {dimension_numbers = #tpu.dot_dimension_numbers<[1], [1], [0], [0], [0, 0, 1, 0], [], []>} : vector<8x16xf32>, vector<8x16xf32>, vector<8x8xf32> -> vector<8x8xf32>
    %cst_21 = arith.constant 2.500000e-01 : f32
    %37 = vector.broadcast %cst_21 : f32 to vector<8x8xf32>
    %38 = arith.mulf %36, %37 : vector<8x8xf32>
    %39 = vector.broadcast %25 : vector<1x8xf32> to vector<8x8xf32>
    %40 = arith.addf %38, %39 : vector<8x8xf32>
    %cst_22 = arith.constant dense<0xFF800000> : vector<8xf32>
    %41 = vector.multi_reduction <maximumf>, %40, %cst_22 [1] : vector<8x8xf32> to vector<8xf32>
    %42 = vector.shape_cast %41 : vector<8xf32> to vector<8x1xf32>
    %43 = vector.broadcast %42 : vector<8x1xf32> to vector<8x8xf32>
    %44 = arith.subf %40, %43 : vector<8x8xf32>
    %45 = math.exp %44 : vector<8x8xf32>
    %cst_23 = arith.constant dense<0.000000e+00> : vector<8xf32>
    %46 = vector.multi_reduction <add>, %45, %cst_23 [1] : vector<8x8xf32> to vector<8xf32>
    %47 = vector.shape_cast %46 : vector<8xf32> to vector<8x1xf32>
    %48 = tpu.reciprocal %47 {approx = true} : vector<8x1xf32> -> vector<8x1xf32>
    %49 = vector.broadcast %48 : vector<8x1xf32> to vector<8x8xf32>
    %50 = arith.mulf %45, %49 : vector<8x8xf32>
    %cst_24 = arith.constant dense<0.000000e+00> : vector<8x16xf32>
    %51 = tpu.matmul %50, %35, %cst_24 {dimension_numbers = #tpu.dot_dimension_numbers<[1], [0], [0], [1], [0, 0, 1, 1], [], []>} : vector<8x8xf32>, vector<8x16xf32>, vector<8x16xf32> -> vector<8x16xf32>
    %c0_25 = arith.constant 0 : index
    %c0_26 = arith.constant 0 : index
    %c0_27 = arith.constant 0 : index
    %52 = vector.load %arg7[%c0_25, %c0_26, %c0_27] : memref<2x32x32xf32, #tpu.memory_space<vmem>>, vector<1x32x32xf32>
    %53 = vector.shape_cast %52 : vector<1x32x32xf32> to vector<32x32xf32>
    %54 = vector.extract_strided_slice %53 {offsets = [0, 0], sizes = [16, 32], strides = [1, 1]} : vector<32x32xf32> to vector<16x32xf32>
    %cst_28 = arith.constant dense<0.000000e+00> : vector<8x32xf32>
    %55 = tpu.matmul %51, %54, %cst_28 {dimension_numbers = #tpu.dot_dimension_numbers<[1], [0], [0], [1], [0, 0, 1, 1], [], []>} : vector<8x16xf32>, vector<16x32xf32>, vector<8x32xf32> -> vector<8x32xf32>
    %56 = vector.extract_strided_slice %32 {offsets = [0, 16], sizes = [8, 16], strides = [1, 1]} : vector<8x96xf32> to vector<8x16xf32>
    %57 = vector.extract_strided_slice %32 {offsets = [0, 48], sizes = [8, 16], strides = [1, 1]} : vector<8x96xf32> to vector<8x16xf32>
    %58 = vector.extract_strided_slice %32 {offsets = [0, 80], sizes = [8, 16], strides = [1, 1]} : vector<8x96xf32> to vector<8x16xf32>
    %cst_29 = arith.constant dense<0.000000e+00> : vector<8x8xf32>
    %59 = tpu.matmul %56, %57, %cst_29 {dimension_numbers = #tpu.dot_dimension_numbers<[1], [1], [0], [0], [0, 0, 1, 0], [], []>} : vector<8x16xf32>, vector<8x16xf32>, vector<8x8xf32> -> vector<8x8xf32>
    %cst_30 = arith.constant 2.500000e-01 : f32
    %60 = vector.broadcast %cst_30 : f32 to vector<8x8xf32>
    %61 = arith.mulf %59, %60 : vector<8x8xf32>
    %62 = vector.broadcast %25 : vector<1x8xf32> to vector<8x8xf32>
    %63 = arith.addf %61, %62 : vector<8x8xf32>
    %cst_31 = arith.constant dense<0xFF800000> : vector<8xf32>
    %64 = vector.multi_reduction <maximumf>, %63, %cst_31 [1] : vector<8x8xf32> to vector<8xf32>
    %65 = vector.shape_cast %64 : vector<8xf32> to vector<8x1xf32>
    %66 = vector.broadcast %65 : vector<8x1xf32> to vector<8x8xf32>
    %67 = arith.subf %63, %66 : vector<8x8xf32>
    %68 = math.exp %67 : vector<8x8xf32>
    %cst_32 = arith.constant dense<0.000000e+00> : vector<8xf32>
    %69 = vector.multi_reduction <add>, %68, %cst_32 [1] : vector<8x8xf32> to vector<8xf32>
    %70 = vector.shape_cast %69 : vector<8xf32> to vector<8x1xf32>
    %71 = tpu.reciprocal %70 {approx = true} : vector<8x1xf32> -> vector<8x1xf32>
    %72 = vector.broadcast %71 : vector<8x1xf32> to vector<8x8xf32>
    %73 = arith.mulf %68, %72 : vector<8x8xf32>
    %cst_33 = arith.constant dense<0.000000e+00> : vector<8x16xf32>
    %74 = tpu.matmul %73, %58, %cst_33 {dimension_numbers = #tpu.dot_dimension_numbers<[1], [0], [0], [1], [0, 0, 1, 1], [], []>} : vector<8x8xf32>, vector<8x16xf32>, vector<8x16xf32> -> vector<8x16xf32>
    %c0_34 = arith.constant 0 : index
    %c0_35 = arith.constant 0 : index
    %c0_36 = arith.constant 0 : index
    %75 = vector.load %arg7[%c0_34, %c0_35, %c0_36] : memref<2x32x32xf32, #tpu.memory_space<vmem>>, vector<1x32x32xf32>
    %76 = vector.shape_cast %75 : vector<1x32x32xf32> to vector<32x32xf32>
    %77 = vector.extract_strided_slice %76 {offsets = [16, 0], sizes = [16, 32], strides = [1, 1]} : vector<32x32xf32> to vector<16x32xf32>
    %cst_37 = arith.constant dense<0.000000e+00> : vector<8x32xf32>
    %78 = tpu.matmul %74, %77, %cst_37 {dimension_numbers = #tpu.dot_dimension_numbers<[1], [0], [0], [1], [0, 0, 1, 1], [], []>} : vector<8x16xf32>, vector<16x32xf32>, vector<8x32xf32> -> vector<8x32xf32>
    %79 = arith.addf %55, %78 : vector<8x32xf32>
    %c0_38 = arith.constant 0 : index
    %c0_39 = arith.constant 0 : index
    %c0_40 = arith.constant 0 : index
    %80 = vector.load %arg8[%c0_38, %c0_39, %c0_40] : memref<2x1x32xf32, #tpu.memory_space<vmem>>, vector<1x1x32xf32>
    %81 = vector.shape_cast %80 : vector<1x1x32xf32> to vector<1x32xf32>
    %82 = vector.broadcast %81 : vector<1x32xf32> to vector<8x32xf32>
    %83 = arith.addf %79, %82 : vector<8x32xf32>
    %84 = arith.addf %83, %23 : vector<8x32xf32>
    %c0_41 = arith.constant 0 : index
    %c0_42 = arith.constant 0 : index
    %c0_43 = arith.constant 0 : index
    %85 = vector.load %arg9[%c0_41, %c0_42, %c0_43] : memref<2x1x32xf32, #tpu.memory_space<vmem>>, vector<1x1x32xf32>
    %86 = vector.shape_cast %85 : vector<1x1x32xf32> to vector<1x32xf32>
    %c0_44 = arith.constant 0 : index
    %c0_45 = arith.constant 0 : index
    %c0_46 = arith.constant 0 : index
    %87 = vector.load %arg10[%c0_44, %c0_45, %c0_46] : memref<2x1x32xf32, #tpu.memory_space<vmem>>, vector<1x1x32xf32>
    %88 = vector.shape_cast %87 : vector<1x1x32xf32> to vector<1x32xf32>
    %cst_47 = arith.constant dense<0.000000e+00> : vector<8xf32>
    %89 = vector.multi_reduction <add>, %84, %cst_47 [1] : vector<8x32xf32> to vector<8xf32>
    %90 = vector.shape_cast %89 : vector<8xf32> to vector<8x1xf32>
    %cst_48 = arith.constant 3.200000e+01 : f32
    %91 = vector.broadcast %cst_48 : f32 to vector<8x1xf32>
    %92 = arith.divf %90, %91 : vector<8x1xf32>
    %93 = vector.broadcast %92 : vector<8x1xf32> to vector<8x32xf32>
    %94 = arith.subf %84, %93 : vector<8x32xf32>
    %95 = arith.mulf %94, %94 : vector<8x32xf32>
    %cst_49 = arith.constant dense<0.000000e+00> : vector<8xf32>
    %96 = vector.multi_reduction <add>, %95, %cst_49 [1] : vector<8x32xf32> to vector<8xf32>
    %97 = vector.shape_cast %96 : vector<8xf32> to vector<8x1xf32>
    %cst_50 = arith.constant 3.200000e+01 : f32
    %98 = vector.broadcast %cst_50 : f32 to vector<8x1xf32>
    %99 = arith.divf %97, %98 : vector<8x1xf32>
    %cst_51 = arith.constant 9.99999996E-13 : f32
    %100 = vector.broadcast %cst_51 : f32 to vector<8x1xf32>
    %101 = arith.addf %99, %100 : vector<8x1xf32>
    %102 = math.rsqrt %101 : vector<8x1xf32>
    %103 = vector.broadcast %102 : vector<8x1xf32> to vector<8x32xf32>
    %104 = arith.mulf %94, %103 : vector<8x32xf32>
    %105 = vector.broadcast %86 : vector<1x32xf32> to vector<8x32xf32>
    %106 = arith.mulf %104, %105 : vector<8x32xf32>
    %107 = vector.broadcast %88 : vector<1x32xf32> to vector<8x32xf32>
    %108 = arith.addf %106, %107 : vector<8x32xf32>
    %c0_52 = arith.constant 0 : index
    %c0_53 = arith.constant 0 : index
    %c0_54 = arith.constant 0 : index
    %109 = vector.load %arg11[%c0_52, %c0_53, %c0_54] : memref<2x32x64xf32, #tpu.memory_space<vmem>>, vector<1x32x64xf32>
    %110 = vector.shape_cast %109 : vector<1x32x64xf32> to vector<32x64xf32>
    %cst_55 = arith.constant dense<0.000000e+00> : vector<8x64xf32>
    %111 = tpu.matmul %108, %110, %cst_55 {dimension_numbers = #tpu.dot_dimension_numbers<[1], [0], [0], [1], [0, 0, 1, 1], [], []>} : vector<8x32xf32>, vector<32x64xf32>, vector<8x64xf32> -> vector<8x64xf32>
    %c0_56 = arith.constant 0 : index
    %c0_57 = arith.constant 0 : index
    %c0_58 = arith.constant 0 : index
    %112 = vector.load %arg12[%c0_56, %c0_57, %c0_58] : memref<2x1x64xf32, #tpu.memory_space<vmem>>, vector<1x1x64xf32>
    %113 = vector.shape_cast %112 : vector<1x1x64xf32> to vector<1x64xf32>
    %114 = vector.broadcast %113 : vector<1x64xf32> to vector<8x64xf32>
    %115 = arith.addf %111, %114 : vector<8x64xf32>
    %cst_59 = arith.constant 5.000000e-01 : f32
    %116 = vector.broadcast %cst_59 : f32 to vector<8x64xf32>
    %117 = arith.mulf %116, %115 : vector<8x64xf32>
    %cst_60 = arith.constant 0.707106769 : f32
    %118 = vector.broadcast %cst_60 : f32 to vector<8x64xf32>
    %119 = arith.mulf %115, %118 : vector<8x64xf32>
    %120 = math.erf %119 : vector<8x64xf32>
    %cst_61 = arith.constant 1.000000e+00 : f32
    %121 = vector.broadcast %cst_61 : f32 to vector<8x64xf32>
    %122 = arith.addf %121, %120 : vector<8x64xf32>
    %123 = arith.mulf %117, %122 : vector<8x64xf32>
    %c0_62 = arith.constant 0 : index
    %c0_63 = arith.constant 0 : index
    %c0_64 = arith.constant 0 : index
    %124 = vector.load %arg13[%c0_62, %c0_63, %c0_64] : memref<2x64x32xf32, #tpu.memory_space<vmem>>, vector<1x64x32xf32>
    %125 = vector.shape_cast %124 : vector<1x64x32xf32> to vector<64x32xf32>
    %cst_65 = arith.constant dense<0.000000e+00> : vector<8x32xf32>
    %126 = tpu.matmul %123, %125, %cst_65 {dimension_numbers = #tpu.dot_dimension_numbers<[1], [0], [0], [1], [0, 0, 1, 1], [], []>} : vector<8x64xf32>, vector<64x32xf32>, vector<8x32xf32> -> vector<8x32xf32>
    %c0_66 = arith.constant 0 : index
    %c0_67 = arith.constant 0 : index
    %c0_68 = arith.constant 0 : index
    %127 = vector.load %arg14[%c0_66, %c0_67, %c0_68] : memref<2x1x32xf32, #tpu.memory_space<vmem>>, vector<1x1x32xf32>
    %128 = vector.shape_cast %127 : vector<1x1x32xf32> to vector<1x32xf32>
    %129 = vector.broadcast %128 : vector<1x32xf32> to vector<8x32xf32>
    %130 = arith.addf %126, %129 : vector<8x32xf32>
    %131 = arith.addf %130, %108 : vector<8x32xf32>
    %c0_69 = arith.constant 0 : index
    %c0_70 = arith.constant 0 : index
    %c0_71 = arith.constant 0 : index
    %132 = vector.load %arg15[%c0_69, %c0_70, %c0_71] : memref<2x1x32xf32, #tpu.memory_space<vmem>>, vector<1x1x32xf32>
    %133 = vector.shape_cast %132 : vector<1x1x32xf32> to vector<1x32xf32>
    %c0_72 = arith.constant 0 : index
    %c0_73 = arith.constant 0 : index
    %c0_74 = arith.constant 0 : index
    %134 = vector.load %arg16[%c0_72, %c0_73, %c0_74] : memref<2x1x32xf32, #tpu.memory_space<vmem>>, vector<1x1x32xf32>
    %135 = vector.shape_cast %134 : vector<1x1x32xf32> to vector<1x32xf32>
    %cst_75 = arith.constant dense<0.000000e+00> : vector<8xf32>
    %136 = vector.multi_reduction <add>, %131, %cst_75 [1] : vector<8x32xf32> to vector<8xf32>
    %137 = vector.shape_cast %136 : vector<8xf32> to vector<8x1xf32>
    %cst_76 = arith.constant 3.200000e+01 : f32
    %138 = vector.broadcast %cst_76 : f32 to vector<8x1xf32>
    %139 = arith.divf %137, %138 : vector<8x1xf32>
    %140 = vector.broadcast %139 : vector<8x1xf32> to vector<8x32xf32>
    %141 = arith.subf %131, %140 : vector<8x32xf32>
    %142 = arith.mulf %141, %141 : vector<8x32xf32>
    %cst_77 = arith.constant dense<0.000000e+00> : vector<8xf32>
    %143 = vector.multi_reduction <add>, %142, %cst_77 [1] : vector<8x32xf32> to vector<8xf32>
    %144 = vector.shape_cast %143 : vector<8xf32> to vector<8x1xf32>
    %cst_78 = arith.constant 3.200000e+01 : f32
    %145 = vector.broadcast %cst_78 : f32 to vector<8x1xf32>
    %146 = arith.divf %144, %145 : vector<8x1xf32>
    %cst_79 = arith.constant 9.99999996E-13 : f32
    %147 = vector.broadcast %cst_79 : f32 to vector<8x1xf32>
    %148 = arith.addf %146, %147 : vector<8x1xf32>
    %149 = math.rsqrt %148 : vector<8x1xf32>
    %150 = vector.broadcast %149 : vector<8x1xf32> to vector<8x32xf32>
    %151 = arith.mulf %141, %150 : vector<8x32xf32>
    %152 = vector.broadcast %133 : vector<1x32xf32> to vector<8x32xf32>
    %153 = arith.mulf %151, %152 : vector<8x32xf32>
    %154 = vector.broadcast %135 : vector<1x32xf32> to vector<8x32xf32>
    %155 = arith.addf %153, %154 : vector<8x32xf32>
    %c1 = arith.constant 1 : index
    %c0_80 = arith.constant 0 : index
    %c0_81 = arith.constant 0 : index
    %156 = vector.load %arg5[%c1, %c0_80, %c0_81] : memref<2x32x96xf32, #tpu.memory_space<vmem>>, vector<1x32x96xf32>
    %157 = vector.shape_cast %156 : vector<1x32x96xf32> to vector<32x96xf32>
    %cst_82 = arith.constant dense<0.000000e+00> : vector<8x96xf32>
    %158 = tpu.matmul %155, %157, %cst_82 {dimension_numbers = #tpu.dot_dimension_numbers<[1], [0], [0], [1], [0, 0, 1, 1], [], []>} : vector<8x32xf32>, vector<32x96xf32>, vector<8x96xf32> -> vector<8x96xf32>
    %c1_83 = arith.constant 1 : index
    %c0_84 = arith.constant 0 : index
    %c0_85 = arith.constant 0 : index
    %159 = vector.load %arg6[%c1_83, %c0_84, %c0_85] : memref<2x1x96xf32, #tpu.memory_space<vmem>>, vector<1x1x96xf32>
    %160 = vector.shape_cast %159 : vector<1x1x96xf32> to vector<1x96xf32>
    %161 = vector.broadcast %160 : vector<1x96xf32> to vector<8x96xf32>
    %162 = arith.addf %158, %161 : vector<8x96xf32>
    %163 = vector.extract_strided_slice %162 {offsets = [0, 0], sizes = [8, 16], strides = [1, 1]} : vector<8x96xf32> to vector<8x16xf32>
    %164 = vector.extract_strided_slice %162 {offsets = [0, 32], sizes = [8, 16], strides = [1, 1]} : vector<8x96xf32> to vector<8x16xf32>
    %165 = vector.extract_strided_slice %162 {offsets = [0, 64], sizes = [8, 16], strides = [1, 1]} : vector<8x96xf32> to vector<8x16xf32>
    %cst_86 = arith.constant dense<0.000000e+00> : vector<8x8xf32>
    %166 = tpu.matmul %163, %164, %cst_86 {dimension_numbers = #tpu.dot_dimension_numbers<[1], [1], [0], [0], [0, 0, 1, 0], [], []>} : vector<8x16xf32>, vector<8x16xf32>, vector<8x8xf32> -> vector<8x8xf32>
    %cst_87 = arith.constant 2.500000e-01 : f32
    %167 = vector.broadcast %cst_87 : f32 to vector<8x8xf32>
    %168 = arith.mulf %166, %167 : vector<8x8xf32>
    %169 = vector.broadcast %25 : vector<1x8xf32> to vector<8x8xf32>
    %170 = arith.addf %168, %169 : vector<8x8xf32>
    %cst_88 = arith.constant dense<0xFF800000> : vector<8xf32>
    %171 = vector.multi_reduction <maximumf>, %170, %cst_88 [1] : vector<8x8xf32> to vector<8xf32>
    %172 = vector.shape_cast %171 : vector<8xf32> to vector<8x1xf32>
    %173 = vector.broadcast %172 : vector<8x1xf32> to vector<8x8xf32>
    %174 = arith.subf %170, %173 : vector<8x8xf32>
    %175 = math.exp %174 : vector<8x8xf32>
    %cst_89 = arith.constant dense<0.000000e+00> : vector<8xf32>
    %176 = vector.multi_reduction <add>, %175, %cst_89 [1] : vector<8x8xf32> to vector<8xf32>
    %177 = vector.shape_cast %176 : vector<8xf32> to vector<8x1xf32>
    %178 = tpu.reciprocal %177 {approx = true} : vector<8x1xf32> -> vector<8x1xf32>
    %179 = vector.broadcast %178 : vector<8x1xf32> to vector<8x8xf32>
    %180 = arith.mulf %175, %179 : vector<8x8xf32>
    %cst_90 = arith.constant dense<0.000000e+00> : vector<8x16xf32>
    %181 = tpu.matmul %180, %165, %cst_90 {dimension_numbers = #tpu.dot_dimension_numbers<[1], [0], [0], [1], [0, 0, 1, 1], [], []>} : vector<8x8xf32>, vector<8x16xf32>, vector<8x16xf32> -> vector<8x16xf32>
    %c1_91 = arith.constant 1 : index
    %c0_92 = arith.constant 0 : index
    %c0_93 = arith.constant 0 : index
    %182 = vector.load %arg7[%c1_91, %c0_92, %c0_93] : memref<2x32x32xf32, #tpu.memory_space<vmem>>, vector<1x32x32xf32>
    %183 = vector.shape_cast %182 : vector<1x32x32xf32> to vector<32x32xf32>
    %184 = vector.extract_strided_slice %183 {offsets = [0, 0], sizes = [16, 32], strides = [1, 1]} : vector<32x32xf32> to vector<16x32xf32>
    %cst_94 = arith.constant dense<0.000000e+00> : vector<8x32xf32>
    %185 = tpu.matmul %181, %184, %cst_94 {dimension_numbers = #tpu.dot_dimension_numbers<[1], [0], [0], [1], [0, 0, 1, 1], [], []>} : vector<8x16xf32>, vector<16x32xf32>, vector<8x32xf32> -> vector<8x32xf32>
    %186 = vector.extract_strided_slice %162 {offsets = [0, 16], sizes = [8, 16], strides = [1, 1]} : vector<8x96xf32> to vector<8x16xf32>
    %187 = vector.extract_strided_slice %162 {offsets = [0, 48], sizes = [8, 16], strides = [1, 1]} : vector<8x96xf32> to vector<8x16xf32>
    %188 = vector.extract_strided_slice %162 {offsets = [0, 80], sizes = [8, 16], strides = [1, 1]} : vector<8x96xf32> to vector<8x16xf32>
    %cst_95 = arith.constant dense<0.000000e+00> : vector<8x8xf32>
    %189 = tpu.matmul %186, %187, %cst_95 {dimension_numbers = #tpu.dot_dimension_numbers<[1], [1], [0], [0], [0, 0, 1, 0], [], []>} : vector<8x16xf32>, vector<8x16xf32>, vector<8x8xf32> -> vector<8x8xf32>
    %cst_96 = arith.constant 2.500000e-01 : f32
    %190 = vector.broadcast %cst_96 : f32 to vector<8x8xf32>
    %191 = arith.mulf %189, %190 : vector<8x8xf32>
    %192 = vector.broadcast %25 : vector<1x8xf32> to vector<8x8xf32>
    %193 = arith.addf %191, %192 : vector<8x8xf32>
    %cst_97 = arith.constant dense<0xFF800000> : vector<8xf32>
    %194 = vector.multi_reduction <maximumf>, %193, %cst_97 [1] : vector<8x8xf32> to vector<8xf32>
    %195 = vector.shape_cast %194 : vector<8xf32> to vector<8x1xf32>
    %196 = vector.broadcast %195 : vector<8x1xf32> to vector<8x8xf32>
    %197 = arith.subf %193, %196 : vector<8x8xf32>
    %198 = math.exp %197 : vector<8x8xf32>
    %cst_98 = arith.constant dense<0.000000e+00> : vector<8xf32>
    %199 = vector.multi_reduction <add>, %198, %cst_98 [1] : vector<8x8xf32> to vector<8xf32>
    %200 = vector.shape_cast %199 : vector<8xf32> to vector<8x1xf32>
    %201 = tpu.reciprocal %200 {approx = true} : vector<8x1xf32> -> vector<8x1xf32>
    %202 = vector.broadcast %201 : vector<8x1xf32> to vector<8x8xf32>
    %203 = arith.mulf %198, %202 : vector<8x8xf32>
    %cst_99 = arith.constant dense<0.000000e+00> : vector<8x16xf32>
    %204 = tpu.matmul %203, %188, %cst_99 {dimension_numbers = #tpu.dot_dimension_numbers<[1], [0], [0], [1], [0, 0, 1, 1], [], []>} : vector<8x8xf32>, vector<8x16xf32>, vector<8x16xf32> -> vector<8x16xf32>
    %c1_100 = arith.constant 1 : index
    %c0_101 = arith.constant 0 : index
    %c0_102 = arith.constant 0 : index
    %205 = vector.load %arg7[%c1_100, %c0_101, %c0_102] : memref<2x32x32xf32, #tpu.memory_space<vmem>>, vector<1x32x32xf32>
    %206 = vector.shape_cast %205 : vector<1x32x32xf32> to vector<32x32xf32>
    %207 = vector.extract_strided_slice %206 {offsets = [16, 0], sizes = [16, 32], strides = [1, 1]} : vector<32x32xf32> to vector<16x32xf32>
    %cst_103 = arith.constant dense<0.000000e+00> : vector<8x32xf32>
    %208 = tpu.matmul %204, %207, %cst_103 {dimension_numbers = #tpu.dot_dimension_numbers<[1], [0], [0], [1], [0, 0, 1, 1], [], []>} : vector<8x16xf32>, vector<16x32xf32>, vector<8x32xf32> -> vector<8x32xf32>
    %209 = arith.addf %185, %208 : vector<8x32xf32>
    %c1_104 = arith.constant 1 : index
    %c0_105 = arith.constant 0 : index
    %c0_106 = arith.constant 0 : index
    %210 = vector.load %arg8[%c1_104, %c0_105, %c0_106] : memref<2x1x32xf32, #tpu.memory_space<vmem>>, vector<1x1x32xf32>
    %211 = vector.shape_cast %210 : vector<1x1x32xf32> to vector<1x32xf32>
    %212 = vector.broadcast %211 : vector<1x32xf32> to vector<8x32xf32>
    %213 = arith.addf %209, %212 : vector<8x32xf32>
    %214 = arith.addf %213, %155 : vector<8x32xf32>
    %c1_107 = arith.constant 1 : index
    %c0_108 = arith.constant 0 : index
    %c0_109 = arith.constant 0 : index
    %215 = vector.load %arg9[%c1_107, %c0_108, %c0_109] : memref<2x1x32xf32, #tpu.memory_space<vmem>>, vector<1x1x32xf32>
    %216 = vector.shape_cast %215 : vector<1x1x32xf32> to vector<1x32xf32>
    %c1_110 = arith.constant 1 : index
    %c0_111 = arith.constant 0 : index
    %c0_112 = arith.constant 0 : index
    %217 = vector.load %arg10[%c1_110, %c0_111, %c0_112] : memref<2x1x32xf32, #tpu.memory_space<vmem>>, vector<1x1x32xf32>
    %218 = vector.shape_cast %217 : vector<1x1x32xf32> to vector<1x32xf32>
    %cst_113 = arith.constant dense<0.000000e+00> : vector<8xf32>
    %219 = vector.multi_reduction <add>, %214, %cst_113 [1] : vector<8x32xf32> to vector<8xf32>
    %220 = vector.shape_cast %219 : vector<8xf32> to vector<8x1xf32>
    %cst_114 = arith.constant 3.200000e+01 : f32
    %221 = vector.broadcast %cst_114 : f32 to vector<8x1xf32>
    %222 = arith.divf %220, %221 : vector<8x1xf32>
    %223 = vector.broadcast %222 : vector<8x1xf32> to vector<8x32xf32>
    %224 = arith.subf %214, %223 : vector<8x32xf32>
    %225 = arith.mulf %224, %224 : vector<8x32xf32>
    %cst_115 = arith.constant dense<0.000000e+00> : vector<8xf32>
    %226 = vector.multi_reduction <add>, %225, %cst_115 [1] : vector<8x32xf32> to vector<8xf32>
    %227 = vector.shape_cast %226 : vector<8xf32> to vector<8x1xf32>
    %cst_116 = arith.constant 3.200000e+01 : f32
    %228 = vector.broadcast %cst_116 : f32 to vector<8x1xf32>
    %229 = arith.divf %227, %228 : vector<8x1xf32>
    %cst_117 = arith.constant 9.99999996E-13 : f32
    %230 = vector.broadcast %cst_117 : f32 to vector<8x1xf32>
    %231 = arith.addf %229, %230 : vector<8x1xf32>
    %232 = math.rsqrt %231 : vector<8x1xf32>
    %233 = vector.broadcast %232 : vector<8x1xf32> to vector<8x32xf32>
    %234 = arith.mulf %224, %233 : vector<8x32xf32>
    %235 = vector.broadcast %216 : vector<1x32xf32> to vector<8x32xf32>
    %236 = arith.mulf %234, %235 : vector<8x32xf32>
    %237 = vector.broadcast %218 : vector<1x32xf32> to vector<8x32xf32>
    %238 = arith.addf %236, %237 : vector<8x32xf32>
    %c1_118 = arith.constant 1 : index
    %c0_119 = arith.constant 0 : index
    %c0_120 = arith.constant 0 : index
    %239 = vector.load %arg11[%c1_118, %c0_119, %c0_120] : memref<2x32x64xf32, #tpu.memory_space<vmem>>, vector<1x32x64xf32>
    %240 = vector.shape_cast %239 : vector<1x32x64xf32> to vector<32x64xf32>
    %cst_121 = arith.constant dense<0.000000e+00> : vector<8x64xf32>
    %241 = tpu.matmul %238, %240, %cst_121 {dimension_numbers = #tpu.dot_dimension_numbers<[1], [0], [0], [1], [0, 0, 1, 1], [], []>} : vector<8x32xf32>, vector<32x64xf32>, vector<8x64xf32> -> vector<8x64xf32>
    %c1_122 = arith.constant 1 : index
    %c0_123 = arith.constant 0 : index
    %c0_124 = arith.constant 0 : index
    %242 = vector.load %arg12[%c1_122, %c0_123, %c0_124] : memref<2x1x64xf32, #tpu.memory_space<vmem>>, vector<1x1x64xf32>
    %243 = vector.shape_cast %242 : vector<1x1x64xf32> to vector<1x64xf32>
    %244 = vector.broadcast %243 : vector<1x64xf32> to vector<8x64xf32>
    %245 = arith.addf %241, %244 : vector<8x64xf32>
    %cst_125 = arith.constant 5.000000e-01 : f32
    %246 = vector.broadcast %cst_125 : f32 to vector<8x64xf32>
    %247 = arith.mulf %246, %245 : vector<8x64xf32>
    %cst_126 = arith.constant 0.707106769 : f32
    %248 = vector.broadcast %cst_126 : f32 to vector<8x64xf32>
    %249 = arith.mulf %245, %248 : vector<8x64xf32>
    %250 = math.erf %249 : vector<8x64xf32>
    %cst_127 = arith.constant 1.000000e+00 : f32
    %251 = vector.broadcast %cst_127 : f32 to vector<8x64xf32>
    %252 = arith.addf %251, %250 : vector<8x64xf32>
    %253 = arith.mulf %247, %252 : vector<8x64xf32>
    %c1_128 = arith.constant 1 : index
    %c0_129 = arith.constant 0 : index
    %c0_130 = arith.constant 0 : index
    %254 = vector.load %arg13[%c1_128, %c0_129, %c0_130] : memref<2x64x32xf32, #tpu.memory_space<vmem>>, vector<1x64x32xf32>
    %255 = vector.shape_cast %254 : vector<1x64x32xf32> to vector<64x32xf32>
    %cst_131 = arith.constant dense<0.000000e+00> : vector<8x32xf32>
    %256 = tpu.matmul %253, %255, %cst_131 {dimension_numbers = #tpu.dot_dimension_numbers<[1], [0], [0], [1], [0, 0, 1, 1], [], []>} : vector<8x64xf32>, vector<64x32xf32>, vector<8x32xf32> -> vector<8x32xf32>
    %c1_132 = arith.constant 1 : index
    %c0_133 = arith.constant 0 : index
    %c0_134 = arith.constant 0 : index
    %257 = vector.load %arg14[%c1_132, %c0_133, %c0_134] : memref<2x1x32xf32, #tpu.memory_space<vmem>>, vector<1x1x32xf32>
    %258 = vector.shape_cast %257 : vector<1x1x32xf32> to vector<1x32xf32>
    %259 = vector.broadcast %258 : vector<1x32xf32> to vector<8x32xf32>
    %260 = arith.addf %256, %259 : vector<8x32xf32>
    %261 = arith.addf %260, %238 : vector<8x32xf32>
    %c1_135 = arith.constant 1 : index
    %c0_136 = arith.constant 0 : index
    %c0_137 = arith.constant 0 : index
    %262 = vector.load %arg15[%c1_135, %c0_136, %c0_137] : memref<2x1x32xf32, #tpu.memory_space<vmem>>, vector<1x1x32xf32>
    %263 = vector.shape_cast %262 : vector<1x1x32xf32> to vector<1x32xf32>
    %c1_138 = arith.constant 1 : index
    %c0_139 = arith.constant 0 : index
    %c0_140 = arith.constant 0 : index
    %264 = vector.load %arg16[%c1_138, %c0_139, %c0_140] : memref<2x1x32xf32, #tpu.memory_space<vmem>>, vector<1x1x32xf32>
    %265 = vector.shape_cast %264 : vector<1x1x32xf32> to vector<1x32xf32>
    %cst_141 = arith.constant dense<0.000000e+00> : vector<8xf32>
    %266 = vector.multi_reduction <add>, %261, %cst_141 [1] : vector<8x32xf32> to vector<8xf32>
    %267 = vector.shape_cast %266 : vector<8xf32> to vector<8x1xf32>
    %cst_142 = arith.constant 3.200000e+01 : f32
    %268 = vector.broadcast %cst_142 : f32 to vector<8x1xf32>
    %269 = arith.divf %267, %268 : vector<8x1xf32>
    %270 = vector.broadcast %269 : vector<8x1xf32> to vector<8x32xf32>
    %271 = arith.subf %261, %270 : vector<8x32xf32>
    %272 = arith.mulf %271, %271 : vector<8x32xf32>
    %cst_143 = arith.constant dense<0.000000e+00> : vector<8xf32>
    %273 = vector.multi_reduction <add>, %272, %cst_143 [1] : vector<8x32xf32> to vector<8xf32>
    %274 = vector.shape_cast %273 : vector<8xf32> to vector<8x1xf32>
    %cst_144 = arith.constant 3.200000e+01 : f32
    %275 = vector.broadcast %cst_144 : f32 to vector<8x1xf32>
    %276 = arith.divf %274, %275 : vector<8x1xf32>
    %cst_145 = arith.constant 9.99999996E-13 : f32
    %277 = vector.broadcast %cst_145 : f32 to vector<8x1xf32>
    %278 = arith.addf %276, %277 : vector<8x1xf32>
    %279 = math.rsqrt %278 : vector<8x1xf32>
    %280 = vector.broadcast %279 : vector<8x1xf32> to vector<8x32xf32>
    %281 = arith.mulf %271, %280 : vector<8x32xf32>
    %282 = vector.broadcast %263 : vector<1x32xf32> to vector<8x32xf32>
    %283 = arith.mulf %281, %282 : vector<8x32xf32>
    %284 = vector.broadcast %265 : vector<1x32xf32> to vector<8x32xf32>
    %285 = arith.addf %283, %284 : vector<8x32xf32>
    %286 = vector.extract_strided_slice %285 {offsets = [0, 0], sizes = [1, 32], strides = [1, 1]} : vector<8x32xf32> to vector<1x32xf32>
    %c0_146 = arith.constant 0 : index
    %c0_147 = arith.constant 0 : index
    %287 = vector.load %arg17[%c0_146, %c0_147] : memref<32x32xf32, #tpu.memory_space<vmem>>, vector<32x32xf32>
    %cst_148 = arith.constant dense<0.000000e+00> : vector<1x32xf32>
    %288 = tpu.matmul %286, %287, %cst_148 {dimension_numbers = #tpu.dot_dimension_numbers<[1], [0], [0], [1], [0, 0, 1, 1], [], []>} : vector<1x32xf32>, vector<32x32xf32>, vector<1x32xf32> -> vector<1x32xf32>
    %c0_149 = arith.constant 0 : index
    %c0_150 = arith.constant 0 : index
    %289 = vector.load %arg18[%c0_149, %c0_150] : memref<1x32xf32, #tpu.memory_space<vmem>>, vector<1x32xf32>
    %290 = arith.addf %288, %289 : vector<1x32xf32>
    %291 = math.tanh %290 : vector<1x32xf32>
    %c0_151 = arith.constant 0 : index
    %c0_152 = arith.constant 0 : index
    %c0_153 = arith.constant 0 : index
    %292 = vector.load %arg19[%c0_151, %c0_152, %c0_153] : memref<1x1x32xf32, #tpu.memory_space<vmem>>, vector<1x1x32xf32>
    %293 = vector.shape_cast %292 : vector<1x1x32xf32> to vector<1x32xf32>
    %294 = vector.shape_cast %291 : vector<1x32xf32> to vector<1x1x32xf32>
    tpu.vector_store %arg19[%c0_151, %c0_152, %c0_153], %294 {strides = array<i32>} : memref<1x1x32xf32, #tpu.memory_space<vmem>>, vector<1x1x32xf32>,
    return
  }
  func.func @transform_0(%arg0: i32) -> (i32, i32, i32) {
    %c0_i32 = arith.constant 0 : i32
    %c0_i32_0 = arith.constant 0 : i32
    %c0_i32_1 = arith.constant 0 : i32
    return %arg0, %c0_i32, %c0_i32_0 : i32, i32, i32
  }
  func.func @transform_1(%arg0: i32) -> (i32, i32, i32) {
    %c0_i32 = arith.constant 0 : i32
    %c0_i32_0 = arith.constant 0 : i32
    %c0_i32_1 = arith.constant 0 : i32
    return %arg0, %c0_i32, %c0_i32_0 : i32, i32, i32
  }
  func.func @transform_2(%arg0: i32) -> (i32, i32) {
    %c0_i32 = arith.constant 0 : i32
    %c0_i32_0 = arith.constant 0 : i32
    %c0_i32_1 = arith.constant 0 : i32
    return %c0_i32, %c0_i32_0 : i32, i32
  }
  func.func @transform_3(%arg0: i32) -> (i32, i32) {
    %c0_i32 = arith.constant 0 : i32
    %c0_i32_0 = arith.constant 0 : i32
    %c0_i32_1 = arith.constant 0 : i32
    return %c0_i32, %c0_i32_0 : i32, i32
  }
  func.func @transform_4(%arg0: i32) -> (i32, i32, i32) {
    %c0_i32 = arith.constant 0 : i32
    %c0_i32_0 = arith.constant 0 : i32
    %c0_i32_1 = arith.constant 0 : i32
    %c0_i32_2 = arith.constant 0 : i32
    return %c0_i32, %c0_i32_0, %c0_i32_1 : i32, i32, i32
  }
  func.func @transform_5(%arg0: i32) -> (i32, i32, i32) {
    %c0_i32 = arith.constant 0 : i32
    %c0_i32_0 = arith.constant 0 : i32
    %c0_i32_1 = arith.constant 0 : i32
    %c0_i32_2 = arith.constant 0 : i32
    return %c0_i32, %c0_i32_0, %c0_i32_1 : i32, i32, i32
  }
  func.func @transform_6(%arg0: i32) -> (i32, i32, i32) {
    %c0_i32 = arith.constant 0 : i32
    %c0_i32_0 = arith.constant 0 : i32
    %c0_i32_1 = arith.constant 0 : i32
    %c0_i32_2 = arith.constant 0 : i32
    return %c0_i32, %c0_i32_0, %c0_i32_1 : i32, i32, i32
  }
  func.func @transform_7(%arg0: i32) -> (i32, i32, i32) {
    %c0_i32 = arith.constant 0 : i32
    %c0_i32_0 = arith.constant 0 : i32
    %c0_i32_1 = arith.constant 0 : i32
    %c0_i32_2 = arith.constant 0 : i32
    return %c0_i32, %c0_i32_0, %c0_i32_1 : i32, i32, i32
  }
  func.func @transform_8(%arg0: i32) -> (i32, i32, i32) {
    %c0_i32 = arith.constant 0 : i32
    %c0_i32_0 = arith.constant 0 : i32
    %c0_i32_1 = arith.constant 0 : i32
    %c0_i32_2 = arith.constant 0 : i32
    return %c0_i32, %c0_i32_0, %c0_i32_1 : i32, i32, i32
  }
  func.func @transform_9(%arg0: i32) -> (i32, i32, i32) {
    %c0_i32 = arith.constant 0 : i32
    %c0_i32_0 = arith.constant 0 : i32
    %c0_i32_1 = arith.constant 0 : i32
    %c0_i32_2 = arith.constant 0 : i32
    return %c0_i32, %c0_i32_0, %c0_i32_1 : i32, i32, i32
  }
  func.func @transform_10(%arg0: i32) -> (i32, i32, i32) {
    %c0_i32 = arith.constant 0 : i32
    %c0_i32_0 = arith.constant 0 : i32
    %c0_i32_1 = arith.constant 0 : i32
    %c0_i32_2 = arith.constant 0 : i32
    return %c0_i32, %c0_i32_0, %c0_i32_1 : i32, i32, i32
  }
  func.func @transform_11(%arg0: i32) -> (i32, i32, i32) {
    %c0_i32 = arith.constant 0 : i32
    %c0_i32_0 = arith.constant 0 : i32
    %c0_i32_1 = arith.constant 0 : i32
    %c0_i32_2 = arith.constant 0 : i32
    return %c0_i32, %c0_i32_0, %c0_i32_1 : i32, i32, i32
  }
  func.func @transform_12(%arg0: i32) -> (i32, i32, i32) {
    %c0_i32 = arith.constant 0 : i32
    %c0_i32_0 = arith.constant 0 : i32
    %c0_i32_1 = arith.constant 0 : i32
    %c0_i32_2 = arith.constant 0 : i32
    return %c0_i32, %c0_i32_0, %c0_i32_1 : i32, i32, i32
  }
  func.func @transform_13(%arg0: i32) -> (i32, i32, i32) {
    %c0_i32 = arith.constant 0 : i32
    %c0_i32_0 = arith.constant 0 : i32
    %c0_i32_1 = arith.constant 0 : i32
    %c0_i32_2 = arith.constant 0 : i32
    return %c0_i32, %c0_i32_0, %c0_i32_1 : i32, i32, i32
  }
  func.func @transform_14(%arg0: i32) -> (i32, i32, i32) {
    %c0_i32 = arith.constant 0 : i32
    %c0_i32_0 = arith.constant 0 : i32
    %c0_i32_1 = arith.constant 0 : i32
    %c0_i32_2 = arith.constant 0 : i32
    return %c0_i32, %c0_i32_0, %c0_i32_1 : i32, i32, i32
  }
  func.func @transform_15(%arg0: i32) -> (i32, i32, i32) {
    %c0_i32 = arith.constant 0 : i32
    %c0_i32_0 = arith.constant 0 : i32
    %c0_i32_1 = arith.constant 0 : i32
    %c0_i32_2 = arith.constant 0 : i32
    return %c0_i32, %c0_i32_0, %c0_i32_1 : i32, i32, i32
  }
  func.func @transform_16(%arg0: i32) -> (i32, i32) {
    %c0_i32 = arith.constant 0 : i32
    %c0_i32_0 = arith.constant 0 : i32
    %c0_i32_1 = arith.constant 0 : i32
    return %c0_i32, %c0_i32_0 : i32, i32
  }
  func.func @transform_17(%arg0: i32) -> (i32, i32) {
    %c0_i32 = arith.constant 0 : i32
    %c0_i32_0 = arith.constant 0 : i32
    %c0_i32_1 = arith.constant 0 : i32
    return %c0_i32, %c0_i32_0 : i32, i32
  }
  func.func @transform_18(%arg0: i32) -> (i32, i32, i32) {
    %c0_i32 = arith.constant 0 : i32
    %c0_i32_0 = arith.constant 0 : i32
    %c0_i32_1 = arith.constant 0 : i32
    return %arg0, %c0_i32, %c0_i32_0 : i32, i32, i32
  }
}

</mosaic_0001>

<llo_original>
// kernel: bert_encoder_forward.1
$region0: #{bert_encoder_forward.1}
  #allocation0 [shape = 'u32[]', space=smem, size = 0x4, offset = 0x4, fixed_abs, tag = 'smem constant byte address 0x4 - core index']
  #allocation1 [shape = 'u32[144,128]{1,0:T(1,128)}', space=vmem, size = 0x12000, scoped, tag = 'internal scratch']
  %s0 = inlined_call_operand.vmem [shape: f32[2,8,32], index: 0, kind: input, shape index: {}]
  %s1 = inlined_call_operand.vmem [shape: f32[2,1,8], index: 1, kind: input, shape index: {}]
  %s2 = inlined_call_operand.vmem [shape: f32[1,32], index: 2, kind: input, shape index: {}]
  %s3 = inlined_call_operand.vmem [shape: f32[1,32], index: 3, kind: input, shape index: {}]
  %s4 = inlined_call_operand.vmem [shape: f32[2,32,96], index: 4, kind: input, shape index: {}]
  %s5 = inlined_call_operand.vmem [shape: f32[2,1,96], index: 5, kind: input, shape index: {}]
  %s6 = inlined_call_operand.vmem [shape: f32[2,32,32], index: 6, kind: input, shape index: {}]
  %s7 = inlined_call_operand.vmem [shape: f32[2,1,32], index: 7, kind: input, shape index: {}]
  %s8 = inlined_call_operand.vmem [shape: f32[2,1,32], index: 8, kind: input, shape index: {}]
  %s9 = inlined_call_operand.vmem [shape: f32[2,1,32], index: 9, kind: input, shape index: {}]
  %s10 = inlined_call_operand.vmem [shape: f32[2,32,64], index: 10, kind: input, shape index: {}]
  %s11 = inlined_call_operand.vmem [shape: f32[2,1,64], index: 11, kind: input, shape index: {}]
  %s12 = inlined_call_operand.vmem [shape: f32[2,64,32], index: 12, kind: input, shape index: {}]
  %s13 = inlined_call_operand.vmem [shape: f32[2,1,32], index: 13, kind: input, shape index: {}]
  %s14 = inlined_call_operand.vmem [shape: f32[2,1,32], index: 14, kind: input, shape index: {}]
  %s15 = inlined_call_operand.vmem [shape: f32[2,1,32], index: 15, kind: input, shape index: {}]
  %s16 = inlined_call_operand.vmem [shape: f32[32,32], index: 16, kind: input, shape index: {}]
  %s17 = inlined_call_operand.vmem [shape: f32[1,32], index: 17, kind: input, shape index: {}]
  %s18 = inlined_call_operand.hbm [shape: f32[2,1,32], index: 18, kind: output, shape index: {}]
  %s19 = sld [smem:[#allocation0]]
  $region105: #{bert_encoder_forward.1} parent=0
    _
  %s21 = ssub.s32 1, %s19
  %s22 = scalar_select 0, %s21, %s19
  $region1: #{bert_encoder_forward.1} parent=0
    #allocation2 [shape = 'u8[1024]{0}', space=vmem, size = 0x400, scoped, tag = 'output window, operand 0']
    #allocation3 [shape = 's32[2]{0}', space=sflag, size = 0x8, scoped, tag = 'scoped memory for bert_encoder_forward.1']
    %23 = vsyncpa [#allocation3], 0
    %s24 = scalar_lea.sflag [#allocation3], 1
    %25 = vsyncpa %s24, 0
    loop: start=0, step=1, limit=4
    $region2: #{bert_encoder_forward.1} parent=1 // loop_pre_header
      _
    $region3: #{bert_encoder_forward.1} parent=1 // loop_header
      %s27 = sphi 0, %s31
      %p28 = scmp.ge.s32.totalorder %s27, 4
      %s37 = sphi 0, %s39
      %s40 = sphi 0, %s37
      %s41 = sphi 0, %s40
      %s57 = sphi 0, %s41
      %s63 = sphi 0, %s65
      %s66 = sphi 0, %s63
      %s67 = sphi 0, %s66
      %s83 = sphi 0, %s67
      %s87 = sphi 0, %s87
      %s89 = sphi 0, %s87
      %s90 = sphi 0, %s89
      %s104 = sphi 0, %s90
      %s108 = sphi 0, %s108
      %s110 = sphi 0, %s108
      %s111 = sphi 0, %s110
      %s125 = sphi 0, %s111
      %s129 = sphi 0, %s129
      %s131 = sphi 0, %s129
      %s132 = sphi 0, %s131
      %s146 = sphi 0, %s132
      %s150 = sphi 0, %s150
      %s152 = sphi 0, %s150
      %s153 = sphi 0, %s152
      %s167 = sphi 0, %s153
      %s171 = sphi 0, %s171
      %s173 = sphi 0, %s171
      %s174 = sphi 0, %s173
      %s188 = sphi 0, %s174
      %s192 = sphi 0, %s192
      %s194 = sphi 0, %s192
      %s195 = sphi 0, %s194
      %s209 = sphi 0, %s195
      %s213 = sphi 0, %s213
      %s215 = sphi 0, %s213
      %s216 = sphi 0, %s215
      %s230 = sphi 0, %s216
      %s234 = sphi 0, %s234
      %s236 = sphi 0, %s234
      %s237 = sphi 0, %s236
      %s251 = sphi 0, %s237
      %s255 = sphi 0, %s255
      %s257 = sphi 0, %s255
      %s258 = sphi 0, %s257
      %s272 = sphi 0, %s258
      %s276 = sphi 0, %s276
      %s278 = sphi 0, %s276
      %s279 = sphi 0, %s278
      %s293 = sphi 0, %s279
      %s297 = sphi 0, %s297
      %s299 = sphi 0, %s297
      %s300 = sphi 0, %s299
      %s314 = sphi 0, %s300
      %s318 = sphi 0, %s318
      %s320 = sphi 0, %s318
      %s321 = sphi 0, %s320
      %s335 = sphi 0, %s321
      %s339 = sphi 0, %s339
      %s341 = sphi 0, %s339
      %s342 = sphi 0, %s341
      %s356 = sphi 0, %s342
      %s360 = sphi 0, %s360
      %s362 = sphi 0, %s360
      %s363 = sphi 0, %s362
      %s377 = sphi 0, %s363
      %s381 = sphi 0, %s381
      %s383 = sphi 0, %s381
      %s384 = sphi 0, %s383
      %s398 = sphi 0, %s384
      %s402 = sphi 0, %s402
      %s404 = sphi 0, %s402
      %s405 = sphi 0, %s404
      %s419 = sphi 0, %s405
      %s425 = sphi 0, %s427
      %s428 = sphi 0, %s425
      %s429 = sphi 0, %s428
      %s445 = sphi 0, %s429
    $region4: #{bert_encoder_forward.1} parent=1 // loop_header_branch
      %30 = sbr.rel (%p28) target = $region8
    $region5: #{bert_encoder_forward.1} parent=1 // loop_body
      %s32 = ssub.s32 %s27, 1
      %s33 = ssub.s32 %s27, 2
      %s34 = sadd.s32 %s27, 1
      %s35 = ssub.s32 %s27, %s34
      %p36 = scmp.eq.s32.totalorder %s35, 0
      %s38 = sadd.s32 %s37, 1
      %s39 = scalar_select %p36, %s37, %s38
      %p42 = pneg %p36
      %p43 = scmp.eq.s32.totalorder %s27, 1
      %p44 = por %p42, %p43
      %p45 = scmp.ne.s32.totalorder %s37, %s40
      %p46 = scmp.eq.s32.totalorder %s27, 0
      %p47 = por %p45, %p46
      %p48 = scmp.ne.s32.totalorder %s37, %s40
      %p49 = scmp.eq.s32.totalorder %s32, 1
      %p50 = por %p48, %p49
      %p51 = scmp.ne.s32.totalorder %s40, %s41
      %p52 = scmp.eq.s32.totalorder %s32, 0
      %p53 = por %p51, %p52
      %p54 = scmp.ne.s32.totalorder %s40, %s41
      %p55 = scmp.eq.s32.totalorder %s33, 1
      %p56 = por %p54, %p55
      %p58 = scmp.ne.s32.totalorder %s41, %s57
      %p59 = scmp.eq.s32.totalorder %s33, 0
      %p60 = por %p58, %p59
      %s61 = ssub.s32 %s27, %s34
      %p62 = scmp.eq.s32.totalorder %s61, 0
      %s64 = sadd.s32 %s63, 1
      %s65 = scalar_select %p62, %s63, %s64
      %p68 = pneg %p62
      %p69 = scmp.eq.s32.totalorder %s27, 1
      %p70 = por %p68, %p69
      %p71 = scmp.ne.s32.totalorder %s63, %s66
      %p72 = scmp.eq.s32.totalorder %s27, 0
      %p73 = por %p71, %p72
      %p74 = scmp.ne.s32.totalorder %s63, %s66
      %p75 = scmp.eq.s32.totalorder %s32, 1
      %p76 = por %p74, %p75
      %p77 = scmp.ne.s32.totalorder %s66, %s67
      %p78 = scmp.eq.s32.totalorder %s32, 0
      %p79 = por %p77, %p78
      %p80 = scmp.ne.s32.totalorder %s66, %s67
      %p81 = scmp.eq.s32.totalorder %s33, 1
      %p82 = por %p80, %p81
      %p84 = scmp.ne.s32.totalorder %s67, %s83
      %p85 = scmp.eq.s32.totalorder %s33, 0
      %p86 = por %p84, %p85
      %s88 = sadd.s32 %s87, 1
      %p91 = scmp.eq.s32.totalorder %s27, 1
      %p92 = scmp.ne.s32.totalorder %s87, %s89
      %p93 = scmp.eq.s32.totalorder %s27, 0
      %p94 = por %p92, %p93
      %p95 = scmp.ne.s32.totalorder %s87, %s89
      %p96 = scmp.eq.s32.totalorder %s32, 1
      %p97 = por %p95, %p96
      %p98 = scmp.ne.s32.totalorder %s89, %s90
      %p99 = scmp.eq.s32.totalorder %s32, 0
      %p100 = por %p98, %p99
      %p101 = scmp.ne.s32.totalorder %s89, %s90
      %p102 = scmp.eq.s32.totalorder %s33, 1
      %p103 = por %p101, %p102
      %p105 = scmp.ne.s32.totalorder %s90, %s104
      %p106 = scmp.eq.s32.totalorder %s33, 0
      %p107 = por %p105, %p106
      %s109 = sadd.s32 %s108, 1
      %p112 = scmp.eq.s32.totalorder %s27, 1
      %p113 = scmp.ne.s32.totalorder %s108, %s110
      %p114 = scmp.eq.s32.totalorder %s27, 0
      %p115 = por %p113, %p114
      %p116 = scmp.ne.s32.totalorder %s108, %s110
      %p117 = scmp.eq.s32.totalorder %s32, 1
      %p118 = por %p116, %p117
      %p119 = scmp.ne.s32.totalorder %s110, %s111
      %p120 = scmp.eq.s32.totalorder %s32, 0
      %p121 = por %p119, %p120
      %p122 = scmp.ne.s32.totalorder %s110, %s111
      %p123 = scmp.eq.s32.totalorder %s33, 1
      %p124 = por %p122, %p123
      %p126 = scmp.ne.s32.totalorder %s111, %s125
      %p127 = scmp.eq.s32.totalorder %s33, 0
      %p128 = por %p126, %p127
      %s130 = sadd.s32 %s129, 1
      %p133 = scmp.eq.s32.totalorder %s27, 1
      %p134 = scmp.ne.s32.totalorder %s129, %s131
      %p135 = scmp.eq.s32.totalorder %s27, 0
      %p136 = por %p134, %p135
      %p137 = scmp.ne.s32.totalorder %s129, %s131
      %p138 = scmp.eq.s32.totalorder %s32, 1
      %p139 = por %p137, %p138
      %p140 = scmp.ne.s32.totalorder %s131, %s132
      %p141 = scmp.eq.s32.totalorder %s32, 0
      %p142 = por %p140, %p141
      %p143 = scmp.ne.s32.totalorder %s131, %s132
      %p144 = scmp.eq.s32.totalorder %s33, 1
      %p145 = por %p143, %p144
      %p147 = scmp.ne.s32.totalorder %s132, %s146
      %p148 = scmp.eq.s32.totalorder %s33, 0
      %p149 = por %p147, %p148
      %s151 = sadd.s32 %s150, 1
      %p154 = scmp.eq.s32.totalorder %s27, 1
      %p155 = scmp.ne.s32.totalorder %s150, %s152
      %p156 = scmp.eq.s32.totalorder %s27, 0
      %p157 = por %p155, %p156
      %p158 = scmp.ne.s32.totalorder %s150, %s152
      %p159 = scmp.eq.s32.totalorder %s32, 1
      %p160 = por %p158, %p159
      %p161 = scmp.ne.s32.totalorder %s152, %s153
      %p162 = scmp.eq.s32.totalorder %s32, 0
      %p163 = por %p161, %p162
      %p164 = scmp.ne.s32.totalorder %s152, %s153
      %p165 = scmp.eq.s32.totalorder %s33, 1
      %p166 = por %p164, %p165
      %p168 = scmp.ne.s32.totalorder %s153, %s167
      %p169 = scmp.eq.s32.totalorder %s33, 0
      %p170 = por %p168, %p169
      %s172 = sadd.s32 %s171, 1
      %p175 = scmp.eq.s32.totalorder %s27, 1
      %p176 = scmp.ne.s32.totalorder %s171, %s173
      %p177 = scmp.eq.s32.totalorder %s27, 0
      %p178 = por %p176, %p177
      %p179 = scmp.ne.s32.totalorder %s171, %s173
      %p180 = scmp.eq.s32.totalorder %s32, 1
      %p181 = por %p179, %p180
      %p182 = scmp.ne.s32.totalorder %s173, %s174
      %p183 = scmp.eq.s32.totalorder %s32, 0
      %p184 = por %p182, %p183
      %p185 = scmp.ne.s32.totalorder %s173, %s174
      %p186 = scmp.eq.s32.totalorder %s33, 1
      %p187 = por %p185, %p186
      %p189 = scmp.ne.s32.totalorder %s174, %s188
      %p190 = scmp.eq.s32.totalorder %s33, 0
      %p191 = por %p189, %p190
      %s193 = sadd.s32 %s192, 1
      %p196 = scmp.eq.s32.totalorder %s27, 1
      %p197 = scmp.ne.s32.totalorder %s192, %s194
      %p198 = scmp.eq.s32.totalorder %s27, 0
      %p199 = por %p197, %p198
      %p200 = scmp.ne.s32.totalorder %s192, %s194
      %p201 = scmp.eq.s32.totalorder %s32, 1
      %p202 = por %p200, %p201
      %p203 = scmp.ne.s32.totalorder %s194, %s195
      %p204 = scmp.eq.s32.totalorder %s32, 0
      %p205 = por %p203, %p204
      %p206 = scmp.ne.s32.totalorder %s194, %s195
      %p207 = scmp.eq.s32.totalorder %s33, 1
      %p208 = por %p206, %p207
      %p210 = scmp.ne.s32.totalorder %s195, %s209
      %p211 = scmp.eq.s32.totalorder %s33, 0
      %p212 = por %p210, %p211
      %s214 = sadd.s32 %s213, 1
      %p217 = scmp.eq.s32.totalorder %s27, 1
      %p218 = scmp.ne.s32.totalorder %s213, %s215
      %p219 = scmp.eq.s32.totalorder %s27, 0
      %p220 = por %p218, %p219
      %p221 = scmp.ne.s32.totalorder %s213, %s215
      %p222 = scmp.eq.s32.totalorder %s32, 1
      %p223 = por %p221, %p222
      %p224 = scmp.ne.s32.totalorder %s215, %s216
      %p225 = scmp.eq.s32.totalorder %s32, 0
      %p226 = por %p224, %p225
      %p227 = scmp.ne.s32.totalorder %s215, %s216
      %p228 = scmp.eq.s32.totalorder %s33, 1
      %p229 = por %p227, %p228
      %p231 = scmp.ne.s32.totalorder %s216, %s230
      %p232 = scmp.eq.s32.totalorder %s33, 0
      %p233 = por %p231, %p232
      %s235 = sadd.s32 %s234, 1
      %p238 = scmp.eq.s32.totalorder %s27, 1
      %p239 = scmp.ne.s32.totalorder %s234, %s236
      %p240 = scmp.eq.s32.totalorder %s27, 0
      %p241 = por %p239, %p240
      %p242 = scmp.ne.s32.totalorder %s234, %s236
      %p243 = scmp.eq.s32.totalorder %s32, 1
      %p244 = por %p242, %p243
      %p245 = scmp.ne.s32.totalorder %s236, %s237
      %p246 = scmp.eq.s32.totalorder %s32, 0
      %p247 = por %p245, %p246
      %p248 = scmp.ne.s32.totalorder %s236, %s237
      %p249 = scmp.eq.s32.totalorder %s33, 1
      %p250 = por %p248, %p249
      %p252 = scmp.ne.s32.totalorder %s237, %s251
      %p253 = scmp.eq.s32.totalorder %s33, 0
      %p254 = por %p252, %p253
      %s256 = sadd.s32 %s255, 1
      %p259 = scmp.eq.s32.totalorder %s27, 1
      %p260 = scmp.ne.s32.totalorder %s255, %s257
      %p261 = scmp.eq.s32.totalorder %s27, 0
      %p262 = por %p260, %p261
      %p263 = scmp.ne.s32.totalorder %s255, %s257
      %p264 = scmp.eq.s32.totalorder %s32, 1
      %p265 = por %p263, %p264
      %p266 = scmp.ne.s32.totalorder %s257, %s258
      %p267 = scmp.eq.s32.totalorder %s32, 0
      %p268 = por %p266, %p267
      %p269 = scmp.ne.s32.totalorder %s257, %s258
      %p270 = scmp.eq.s32.totalorder %s33, 1
      %p271 = por %p269, %p270
      %p273 = scmp.ne.s32.totalorder %s258, %s272
      %p274 = scmp.eq.s32.totalorder %s33, 0
      %p275 = por %p273, %p274
      %s277 = sadd.s32 %s276, 1
      %p280 = scmp.eq.s32.totalorder %s27, 1
      %p281 = scmp.ne.s32.totalorder %s276, %s278
      %p282 = scmp.eq.s32.totalorder %s27, 0
      %p283 = por %p281, %p282
      %p284 = scmp.ne.s32.totalorder %s276, %s278
      %p285 = scmp.eq.s32.totalorder %s32, 1
      %p286 = por %p284, %p285
      %p287 = scmp.ne.s32.totalorder %s278, %s279
      %p288 = scmp.eq.s32.totalorder %s32, 0
      %p289 = por %p287, %p288
      %p290 = scmp.ne.s32.totalorder %s278, %s279
      %p291 = scmp.eq.s32.totalorder %s33, 1
      %p292 = por %p290, %p291
      %p294 = scmp.ne.s32.totalorder %s279, %s293
      %p295 = scmp.eq.s32.totalorder %s33, 0
      %p296 = por %p294, %p295
      %s298 = sadd.s32 %s297, 1
      %p301 = scmp.eq.s32.totalorder %s27, 1
      %p302 = scmp.ne.s32.totalorder %s297, %s299
      %p303 = scmp.eq.s32.totalorder %s27, 0
      %p304 = por %p302, %p303
      %p305 = scmp.ne.s32.totalorder %s297, %s299
      %p306 = scmp.eq.s32.totalorder %s32, 1
      %p307 = por %p305, %p306
      %p308 = scmp.ne.s32.totalorder %s299, %s300
      %p309 = scmp.eq.s32.totalorder %s32, 0
      %p310 = por %p308, %p309
      %p311 = scmp.ne.s32.totalorder %s299, %s300
      %p312 = scmp.eq.s32.totalorder %s33, 1
      %p313 = por %p311, %p312
      %p315 = scmp.ne.s32.totalorder %s300, %s314
      %p316 = scmp.eq.s32.totalorder %s33, 0
      %p317 = por %p315, %p316
      %s319 = sadd.s32 %s318, 1
      %p322 = scmp.eq.s32.totalorder %s27, 1
      %p323 = scmp.ne.s32.totalorder %s318, %s320
      %p324 = scmp.eq.s32.totalorder %s27, 0
      %p325 = por %p323, %p324
      %p326 = scmp.ne.s32.totalorder %s318, %s320
      %p327 = scmp.eq.s32.totalorder %s32, 1
      %p328 = por %p326, %p327
      %p329 = scmp.ne.s32.totalorder %s320, %s321
      %p330 = scmp.eq.s32.totalorder %s32, 0
      %p331 = por %p329, %p330
      %p332 = scmp.ne.s32.totalorder %s320, %s321
      %p333 = scmp.eq.s32.totalorder %s33, 1
      %p334 = por %p332, %p333
      %p336 = scmp.ne.s32.totalorder %s321, %s335
      %p337 = scmp.eq.s32.totalorder %s33, 0
      %p338 = por %p336, %p337
      %s340 = sadd.s32 %s339, 1
      %p343 = scmp.eq.s32.totalorder %s27, 1
      %p344 = scmp.ne.s32.totalorder %s339, %s341
      %p345 = scmp.eq.s32.totalorder %s27, 0
      %p346 = por %p344, %p345
      %p347 = scmp.ne.s32.totalorder %s339, %s341
      %p348 = scmp.eq.s32.totalorder %s32, 1
      %p349 = por %p347, %p348
      %p350 = scmp.ne.s32.totalorder %s341, %s342
      %p351 = scmp.eq.s32.totalorder %s32, 0
      %p352 = por %p350, %p351
      %p353 = scmp.ne.s32.totalorder %s341, %s342
      %p354 = scmp.eq.s32.totalorder %s33, 1
      %p355 = por %p353, %p354
      %p357 = scmp.ne.s32.totalorder %s342, %s356
      %p358 = scmp.eq.s32.totalorder %s33, 0
      %p359 = por %p357, %p358
      %s361 = sadd.s32 %s360, 1
      %p364 = scmp.eq.s32.totalorder %s27, 1
      %p365 = scmp.ne.s32.totalorder %s360, %s362
      %p366 = scmp.eq.s32.totalorder %s27, 0
      %p367 = por %p365, %p366
      %p368 = scmp.ne.s32.totalorder %s360, %s362
      %p369 = scmp.eq.s32.totalorder %s32, 1
      %p370 = por %p368, %p369
      %p371 = scmp.ne.s32.totalorder %s362, %s363
      %p372 = scmp.eq.s32.totalorder %s32, 0
      %p373 = por %p371, %p372
      %p374 = scmp.ne.s32.totalorder %s362, %s363
      %p375 = scmp.eq.s32.totalorder %s33, 1
      %p376 = por %p374, %p375
      %p378 = scmp.ne.s32.totalorder %s363, %s377
      %p379 = scmp.eq.s32.totalorder %s33, 0
      %p380 = por %p378, %p379
      %s382 = sadd.s32 %s381, 1
      %p385 = scmp.eq.s32.totalorder %s27, 1
      %p386 = scmp.ne.s32.totalorder %s381, %s383
      %p387 = scmp.eq.s32.totalorder %s27, 0
      %p388 = por %p386, %p387
      %p389 = scmp.ne.s32.totalorder %s381, %s383
      %p390 = scmp.eq.s32.totalorder %s32, 1
      %p391 = por %p389, %p390
      %p392 = scmp.ne.s32.totalorder %s383, %s384
      %p393 = scmp.eq.s32.totalorder %s32, 0
      %p394 = por %p392, %p393
      %p395 = scmp.ne.s32.totalorder %s383, %s384
      %p396 = scmp.eq.s32.totalorder %s33, 1
      %p397 = por %p395, %p396
      %p399 = scmp.ne.s32.totalorder %s384, %s398
      %p400 = scmp.eq.s32.totalorder %s33, 0
      %p401 = por %p399, %p400
      %s403 = sadd.s32 %s402, 1
      %p406 = scmp.eq.s32.totalorder %s27, 1
      %p407 = scmp.ne.s32.totalorder %s402, %s404
      %p408 = scmp.eq.s32.totalorder %s27, 0
      %p409 = por %p407, %p408
      %p410 = scmp.ne.s32.totalorder %s402, %s404
      %p411 = scmp.eq.s32.totalorder %s32, 1
      %p412 = por %p410, %p411
      %p413 = scmp.ne.s32.totalorder %s404, %s405
      %p414 = scmp.eq.s32.totalorder %s32, 0
      %p415 = por %p413, %p414
      %p416 = scmp.ne.s32.totalorder %s404, %s405
      %p417 = scmp.eq.s32.totalorder %s33, 1
      %p418 = por %p416, %p417
      %p420 = scmp.ne.s32.totalorder %s405, %s419
      %p421 = scmp.eq.s32.totalorder %s33, 0
      %p422 = por %p420, %p421
      %s423 = ssub.s32 %s27, %s34
      %p424 = scmp.eq.s32.totalorder %s423, 0
      %s426 = sadd.s32 %s425, 1
      %s427 = scalar_select %p424, %s425, %s426
      %p430 = pneg %p424
      %p431 = scmp.eq.s32.totalorder %s27, 1
      %p432 = por %p430, %p431
      %p433 = scmp.ne.s32.totalorder %s425, %s428
      %p434 = scmp.eq.s32.totalorder %s27, 0
      %p435 = por %p433, %p434
      %p436 = scmp.ne.s32.totalorder %s425, %s428
      %p437 = scmp.eq.s32.totalorder %s32, 1
      %p438 = por %p436, %p437
      %p439 = scmp.ne.s32.totalorder %s428, %s429
      %p440 = scmp.eq.s32.totalorder %s32, 0
      %p441 = por %p439, %p440
      %p442 = scmp.ne.s32.totalorder %s428, %s429
      %p443 = scmp.eq.s32.totalorder %s33, 1
      %p444 = por %p442, %p443
      %p446 = scmp.ne.s32.totalorder %s429, %s445
      %p447 = scmp.eq.s32.totalorder %s33, 0
      %p448 = por %p446, %p447
      %p449 = scmp.le.s32.totalorder 1, %s27
      %p450 = scmp.lt.s32.totalorder %s27, 3
      %p451 = pnand %p449, %p450
      %p452 = pneg %p451
      // Predicated region
      $region9: #{bert_encoder_forward.1} parent=5 // pred_check
        _
      $region10: #{bert_encoder_forward.1} parent=5 // pred_check_branch
        %454 = sbr.rel (%p451) target = $region12
      $region11: #{bert_encoder_forward.1} parent=5 // pred_region
        %s455 = ssub.s32 %s27, 1
        // Predicated region
        $region13: #{bert_encoder_forward.1} parent=11 // pred_check
          %p456 = pneg %p100
        $region14: #{bert_encoder_forward.1} parent=11 // pred_check_branch
          %458 = sbr.rel (%p456) target = $region16
        $region15: #{bert_encoder_forward.1} parent=11 // pred_region
          _
        $region16: #{bert_encoder_forward.1} parent=11 // pred_fallthru
          _
        // Predicated region
        $region17: #{bert_encoder_forward.1} parent=11 // pred_check
          %p459 = pneg %p121
        $region18: #{bert_encoder_forward.1} parent=11 // pred_check_branch
          %461 = sbr.rel (%p459) target = $region20
        $region19: #{bert_encoder_forward.1} parent=11 // pred_region
          _
        $region20: #{bert_encoder_forward.1} parent=11 // pred_fallthru
          _
        // Predicated region
        $region21: #{bert_encoder_forward.1} parent=11 // pred_check
          %p462 = pneg %p142
        $region22: #{bert_encoder_forward.1} parent=11 // pred_check_branch
          %464 = sbr.rel (%p462) target = $region24
        $region23: #{bert_encoder_forward.1} parent=11 // pred_region
          _
        $region24: #{bert_encoder_forward.1} parent=11 // pred_fallthru
          _
        // Predicated region
        $region25: #{bert_encoder_forward.1} parent=11 // pred_check
          %p465 = pneg %p163
        $region26: #{bert_encoder_forward.1} parent=11 // pred_check_branch
          %467 = sbr.rel (%p465) target = $region28
        $region27: #{bert_encoder_forward.1} parent=11 // pred_region
          _
        $region28: #{bert_encoder_forward.1} parent=11 // pred_fallthru
          _
        // Predicated region
        $region29: #{bert_encoder_forward.1} parent=11 // pred_check
          %p468 = pneg %p184
        $region30: #{bert_encoder_forward.1} parent=11 // pred_check_branch
          %470 = sbr.rel (%p468) target = $region32
        $region31: #{bert_encoder_forward.1} parent=11 // pred_region
          _
        $region32: #{bert_encoder_forward.1} parent=11 // pred_fallthru
          _
        // Predicated region
        $region33: #{bert_encoder_forward.1} parent=11 // pred_check
          %p471 = pneg %p205
        $region34: #{bert_encoder_forward.1} parent=11 // pred_check_branch
          %473 = sbr.rel (%p471) target = $region36
        $region35: #{bert_encoder_forward.1} parent=11 // pred_region
          _
        $region36: #{bert_encoder_forward.1} parent=11 // pred_fallthru
          _
        // Predicated region
        $region37: #{bert_encoder_forward.1} parent=11 // pred_check
          %p474 = pneg %p226
        $region38: #{bert_encoder_forward.1} parent=11 // pred_check_branch
          %476 = sbr.rel (%p474) target = $region40
        $region39: #{bert_encoder_forward.1} parent=11 // pred_region
          _
        $region40: #{bert_encoder_forward.1} parent=11 // pred_fallthru
          _
        // Predicated region
        $region41: #{bert_encoder_forward.1} parent=11 // pred_check
          %p477 = pneg %p247
        $region42: #{bert_encoder_forward.1} parent=11 // pred_check_branch
          %479 = sbr.rel (%p477) target = $region44
        $region43: #{bert_encoder_forward.1} parent=11 // pred_region
          _
        $region44: #{bert_encoder_forward.1} parent=11 // pred_fallthru
          _
        // Predicated region
        $region45: #{bert_encoder_forward.1} parent=11 // pred_check
          %p480 = pneg %p268
        $region46: #{bert_encoder_forward.1} parent=11 // pred_check_branch
          %482 = sbr.rel (%p480) target = $region48
        $region47: #{bert_encoder_forward.1} parent=11 // pred_region
          _
        $region48: #{bert_encoder_forward.1} parent=11 // pred_fallthru
          _
        // Predicated region
        $region49: #{bert_encoder_forward.1} parent=11 // pred_check
          %p483 = pneg %p289
        $region50: #{bert_encoder_forward.1} parent=11 // pred_check_branch
          %485 = sbr.rel (%p483) target = $region52
        $region51: #{bert_encoder_forward.1} parent=11 // pred_region
          _
        $region52: #{bert_encoder_forward.1} parent=11 // pred_fallthru
          _
        // Predicated region
        $region53: #{bert_encoder_forward.1} parent=11 // pred_check
          %p486 = pneg %p310
        $region54: #{bert_encoder_forward.1} parent=11 // pred_check_branch
          %488 = sbr.rel (%p486) target = $region56
        $region55: #{bert_encoder_forward.1} parent=11 // pred_region
          _
        $region56: #{bert_encoder_forward.1} parent=11 // pred_fallthru
          _
        // Predicated region
        $region57: #{bert_encoder_forward.1} parent=11 // pred_check
          %p489 = pneg %p331
        $region58: #{bert_encoder_forward.1} parent=11 // pred_check_branch
          %491 = sbr.rel (%p489) target = $region60
        $region59: #{bert_encoder_forward.1} parent=11 // pred_region
          _
        $region60: #{bert_encoder_forward.1} parent=11 // pred_fallthru
          _
        // Predicated region
        $region61: #{bert_encoder_forward.1} parent=11 // pred_check
          %p492 = pneg %p352
        $region62: #{bert_encoder_forward.1} parent=11 // pred_check_branch
          %494 = sbr.rel (%p492) target = $region64
        $region63: #{bert_encoder_forward.1} parent=11 // pred_region
          _
        $region64: #{bert_encoder_forward.1} parent=11 // pred_fallthru
          _
        // Predicated region
        $region65: #{bert_encoder_forward.1} parent=11 // pred_check
          %p495 = pneg %p373
        $region66: #{bert_encoder_forward.1} parent=11 // pred_check_branch
          %497 = sbr.rel (%p495) target = $region68
        $region67: #{bert_encoder_forward.1} parent=11 // pred_region
          _
        $region68: #{bert_encoder_forward.1} parent=11 // pred_fallthru
          _
        // Predicated region
        $region69: #{bert_encoder_forward.1} parent=11 // pred_check
          %p498 = pneg %p394
        $region70: #{bert_encoder_forward.1} parent=11 // pred_check_branch
          %500 = sbr.rel (%p498) target = $region72
        $region71: #{bert_encoder_forward.1} parent=11 // pred_region
          _
        $region72: #{bert_encoder_forward.1} parent=11 // pred_fallthru
          _
        // Predicated region
        $region73: #{bert_encoder_forward.1} parent=11 // pred_check
          %p501 = pneg %p415
        $region74: #{bert_encoder_forward.1} parent=11 // pred_check_branch
          %503 = sbr.rel (%p501) target = $region76
        $region75: #{bert_encoder_forward.1} parent=11 // pred_region
          _
        $region76: #{bert_encoder_forward.1} parent=11 // pred_fallthru
          _
      $region12: #{bert_encoder_forward.1} parent=5 // pred_fallthru
        _
      %p504 = scmp.lt.s32.totalorder %s27, 2
      // Predicated region
      $region77: #{bert_encoder_forward.1} parent=5 // pred_check
        %p505 = pneg %p504
      $region78: #{bert_encoder_forward.1} parent=5 // pred_check_branch
        %507 = sbr.rel (%p505) target = $region80
      $region79: #{bert_encoder_forward.1} parent=5 // pred_region
        // Predicated region
        $region81: #{bert_encoder_forward.1} parent=79 // pred_check
          %p508 = pneg %p47
        $region82: #{bert_encoder_forward.1} parent=79 // pred_check_branch
          %510 = sbr.rel (%p508) target = $region84
        $region83: #{bert_encoder_forward.1} parent=79 // pred_region
          %p511 = scmp.lt.s32.totalorder %s27, 1
          %s512 = scalar_select %p511, %s27, 1
          %s513 = smul.addr %s512, 8
          %s514 = scalar_lea.vmem %s0, %s513
        $region84: #{bert_encoder_forward.1} parent=79 // pred_fallthru
          _
        // Predicated region
        $region85: #{bert_encoder_forward.1} parent=79 // pred_check
          %p515 = pneg %p73
        $region86: #{bert_encoder_forward.1} parent=79 // pred_check_branch
          %517 = sbr.rel (%p515) target = $region88
        $region87: #{bert_encoder_forward.1} parent=79 // pred_region
          %p518 = scmp.lt.s32.totalorder %s27, 1
          %s519 = scalar_select %p518, %s27, 1
          %s520 = scalar_lea.vmem %s1, %s519
        $region88: #{bert_encoder_forward.1} parent=79 // pred_fallthru
          _
      $region80: #{bert_encoder_forward.1} parent=5 // pred_fallthru
        _
      %p521 = scmp.le.s32.totalorder 1, %s27
      %p522 = scmp.lt.s32.totalorder %s27, 3
      %p523 = pnand %p521, %p522
      %p524 = pneg %p523
      // Predicated region
      $region89: #{bert_encoder_forward.1} parent=5 // pred_check
        _
      $region90: #{bert_encoder_forward.1} parent=5 // pred_check_branch
        %526 = sbr.rel (%p523) target = $region92
      $region91: #{bert_encoder_forward.1} parent=5 // pred_region
        %s527 = ssub.s32 %s27, 1
        %p528 = scmp.lt.s32.totalorder %s32, 1
        %s529 = scalar_select %p528, %s32, 1
        %s530 = smul.addr %s529, 8
        %s531 = scalar_lea.vmem %s0, %s530
        %p532 = pneg %p53
        %p533 = pneg %p50
        %p534 = scmp.lt.s32.totalorder %s32, 1
        %s535 = scalar_select %p534, %s32, 1
        %s536 = scalar_lea.vmem %s1, %s535
        %p537 = pneg %p79
        %p538 = pneg %p76
        %p539 = pneg %p100
        %p540 = pneg %p97
        %p541 = pneg %p121
        %p542 = pneg %p118
        %p543 = pneg %p142
        %p544 = pneg %p139
        %p545 = pneg %p163
        %p546 = pneg %p160
        %p547 = pneg %p184
        %p548 = pneg %p181
        %p549 = pneg %p205
        %p550 = pneg %p202
        %p551 = pneg %p226
        %p552 = pneg %p223
        %p553 = pneg %p247
        %p554 = pneg %p244
        %p555 = pneg %p268
        %p556 = pneg %p265
        %p557 = pneg %p289
        %p558 = pneg %p286
        %p559 = pneg %p310
        %p560 = pneg %p307
        %p561 = pneg %p331
        %p562 = pneg %p328
        %p563 = pneg %p352
        %p564 = pneg %p349
        %p565 = pneg %p373
        %p566 = pneg %p370
        %p567 = pneg %p394
        %p568 = pneg %p391
        %p569 = pneg %p415
        %p570 = pneg %p412
        %p571 = pneg %p441
        %p572 = pneg %p438
        %s573 = sand.u32 %s428, 1
        %s574 = scalar_lea.sflag [#allocation3], %s573
        %s575 = sand.u32 %s428, 1
        %s576 = scalar_lea.vmem [#allocation2], %s575
        %p577 = scmp.lt.s32.totalorder %s32, 1
        %s578 = scalar_select %p577, %s32, 1
        %s579 = smul.addr %s578, 8
        %s580 = scalar_lea.vmem %s0, %s579
        %p581 = scmp.lt.s32.totalorder %s32, 1
        %s582 = scalar_select %p581, %s32, 1
        %s583 = scalar_lea.vmem %s1, %s582
        %v584 = vld [vmem:[%s580] sm:$0xff]
        %v585 = vld [vmem:[%s2] sm:$0x1]
        %v586 = vld [vmem:[%s3] sm:$0x1]
        %vm587 = vcmask 261120
        %v588 = vsel %vm587, %v584, 0.0
        %589 = vadd.xlane.f32.xlu0 %v588
        %v590 = vpop.xlane.xlu0 %589
        %v591 = vrcp.pop 32.0
        %v592 = vmul.f32 %v590, %v591
        %v593 = vsub.f32 %v584, %v592
        %v594 = vmul.f32 %v593, %v593
        %v595 = vsel %vm587, %v594, 0.0
        %596 = vadd.xlane.f32.xlu0 %v595
        %v597 = vpop.xlane.xlu0 %596
        %v598 = vmul.f32 %v597, %v591
        %v599 = vadd.f32 %v598, 1e-12
        %v600 = vrsqrt.pop %v599
        %v601 = vmul.f32 %v593, %v600
        %v603 = vlaneseq
        %v604 = vshrl.u32 %v603, 7
        %v605 = vsub.s32 0, %v604
        %v606 = vrot.slane %v585, %v605
        %v608 = vmul.f32 %v601, %v606
        %v610 = vlaneseq
        %v611 = vshrl.u32 %v610, 7
        %v612 = vsub.s32 0, %v611
        %v613 = vrot.slane %v586, %v612
        %v615 = vadd.f32 %v608, %v613
        %v616 = vld [vmem:[%s583] sm:$0x1]
        %v617 = vld [vmem:[%s4] sm:$0xff]
        %v618 = vld [vmem:[%s4 + $0x8] sm:$0xff]
        %v619 = vld [vmem:[%s4 + $0x10] sm:$0xff]
        %v620 = vld [vmem:[%s4 + $0x18] sm:$0xff]
        %v621 = vld [vmem:[%s5] sm:$0x1]
        %v623 = vlaneseq
        %v624 = vshrl.u32 %v623, 7
        %v625 = vsub.s32 0, %v624
        %v626 = vrot.slane %v621, %v625
        %v629 = vsel %vm587, %v615, 0
        %631 = vmatprep.subr.mxu0 0.0
        %632 = vmatpush1.msra.mxu0 %v617
        %633 = vmatprep.subr.mxu0 0.0
        %634 = vmatpush1.msra.mxu0 %v618
        %635 = vmatprep.subr.mxu0 0.0
        %636 = vmatpush1.msra.mxu0 %v619
        %637 = vmatprep.subr.mxu0 0.0
        %638 = vmatpush1.msra.mxu0 %v620
        %639 = vmatprep.subr.mxu0 0.0
        %640 = vmatpush1.msra.mxu0 0.0
        %641 = vmatprep.subr.mxu0 0.0
        %642 = vmatpush1.msra.mxu0 0.0
        %643 = vmatprep.subr.mxu0 0.0
        %644 = vmatpush1.msra.mxu0 0.0
        %645 = vmatprep.subr.mxu0 0.0
        %646 = vmatpush1.msra.mxu0 0.0
        %647 = vmatprep.subr.mxu0 0.0
        %648 = vmatpush1.msra.mxu0 0.0
        %649 = vmatprep.subr.mxu0 0.0
        %650 = vmatpush1.msra.mxu0 0.0
        %651 = vmatprep.subr.mxu0 0.0
        %652 = vmatpush1.msra.mxu0 0.0
        %653 = vmatprep.subr.mxu0 0.0
        %654 = vmatpush1.msra.mxu0 0.0
        %655 = vmatprep.subr.mxu0 0.0
        %656 = vmatpush1.msra.mxu0 0.0
        %657 = vmatprep.subr.mxu0 0.0
        %658 = vmatpush1.msra.mxu0 0.0
        %659 = vmatprep.subr.mxu0 0.0
        %660 = vmatpush1.msra.mxu0 0.0
        %661 = vmatprep.subr.mxu0 0.0
        %662 = vmatpush1.msra.mxu0 0.0
        %663 = vmatprep.subr.mxu0 0.0
        %664 = vmatpush1.msra.mxu0 0.0
        %665 = vmatprep.subr.mxu0 0.0
        %666 = vmatpush1.msra.mxu0 0.0
        %667 = vmatprep.subr.mxu0 0.0
        %668 = vmatpush1.msra.mxu0 0.0
        %669 = vmatprep.subr.mxu0 0.0
        %670 = vmatpush1.msra.mxu0 0.0
        %671 = vmatprep.subr.mxu0 0.0
        %672 = vmatpush1.msra.mxu0 0.0
        %673 = vmatprep.subr.mxu0 0.0
        %674 = vmatpush1.msra.mxu0 0.0
        %675 = vmatprep.subr.mxu0 0.0
        %676 = vmatpush1.msra.mxu0 0.0
        %677 = vmatprep.subr.mxu0 0.0
        %678 = vmatpush1.msra.mxu0 0.0
        %679 = vmatprep.subr.mxu0 0.0
        %680 = vmatpush1.msra.mxu0 0.0
        %681 = vmatprep.subr.mxu0 0.0
        %682 = vmatpush1.msra.mxu0 0.0
        %683 = vmatprep.subr.mxu0 0.0
        %684 = vmatpush1.msra.mxu0 0.0
        %685 = vmatprep.subr.mxu0 0.0
        %686 = vmatpush1.msra.mxu0 0.0
        %687 = vmatprep.subr.mxu0 0.0
        %688 = vmatpush1.msra.mxu0 0.0
        %689 = vmatprep.subr.mxu0 0.0
        %690 = vmatpush1.msra.mxu0 0.0
        %691 = vmatprep.subr.mxu0 0.0
        %692 = vmatpush1.msra.mxu0 0.0
        %693 = vmatprep.subr.mxu0 0.0
        %694 = vmatpush1.msra.mxu0 0.0
        %695 = vmatprep.mubr.f32.mxu0 0.0
        %696 = vmatmul.mubr.f32.gmra.mrb[0].mxu0 %v629
        %v697 = vpop.f32.mrb[0].mxu0
        %v698 = vadd.f32 %v626, %v697
        %v699 = vpop.f32.mrb[0].mxu0
        %700 = vdwg.mxu0
        %702 = vrot.lane.b32.xlu0 %v698, 96
        %v703 = vpop.permute.xlu0 %702
        %vm704 = vcmask 130048
        %v705 = vsel %vm704, %v698, 0
        %v707 = vsel %vm704, %v703, 0
        %709 = vmatprep.subr.mxu0 0.0
        %710 = vmatpush1.xpose.msra.mxu0 %v707
        %711 = vmatprep.subr.mxu0 0.0
        %712 = vmatpush1.xpose.msra.mxu0 0.0
        %713 = vmatprep.subr.mxu0 0.0
        %714 = vmatpush1.xpose.msra.mxu0 0.0
        %715 = vmatprep.subr.mxu0 0.0
        %716 = vmatpush1.xpose.msra.mxu0 0.0
        %717 = vmatprep.subr.mxu0 0.0
        %718 = vmatpush1.xpose.msra.mxu0 0.0
        %719 = vmatprep.subr.mxu0 0.0
        %720 = vmatpush1.xpose.msra.mxu0 0.0
        %721 = vmatprep.subr.mxu0 0.0
        %722 = vmatpush1.xpose.msra.mxu0 0.0
        %723 = vmatprep.subr.mxu0 0.0
        %724 = vmatpush1.xpose.msra.mxu0 0.0
        %725 = vmatprep.subr.mxu0 0.0
        %726 = vmatpush1.xpose.msra.mxu0 0.0
        %727 = vmatprep.subr.mxu0 0.0
        %728 = vmatpush1.xpose.msra.mxu0 0.0
        %729 = vmatprep.subr.mxu0 0.0
        %730 = vmatpush1.xpose.msra.mxu0 0.0
        %731 = vmatprep.subr.mxu0 0.0
        %732 = vmatpush1.xpose.msra.mxu0 0.0
        %733 = vmatprep.subr.mxu0 0.0
        %734 = vmatpush1.xpose.msra.mxu0 0.0
        %735 = vmatprep.subr.mxu0 0.0
        %736 = vmatpush1.xpose.msra.mxu0 0.0
        %737 = vmatprep.subr.mxu0 0.0
        %738 = vmatpush1.xpose.msra.mxu0 0.0
        %739 = vmatprep.subr.mxu0 0.0
        %740 = vmatpush1.xpose.msra.mxu0 0.0
        %741 = vmatprep.subr.mxu0 0.0
        %742 = vmatpush1.xpose.msra.mxu0 0.0
        %743 = vmatprep.subr.mxu0 0.0
        %744 = vmatpush1.xpose.msra.mxu0 0.0
        %745 = vmatprep.subr.mxu0 0.0
        %746 = vmatpush1.xpose.msra.mxu0 0.0
        %747 = vmatprep.subr.mxu0 0.0
        %748 = vmatpush1.xpose.msra.mxu0 0.0
        %749 = vmatprep.subr.mxu0 0.0
        %750 = vmatpush1.xpose.msra.mxu0 0.0
        %751 = vmatprep.subr.mxu0 0.0
        %752 = vmatpush1.xpose.msra.mxu0 0.0
        %753 = vmatprep.subr.mxu0 0.0
        %754 = vmatpush1.xpose.msra.mxu0 0.0
        %755 = vmatprep.subr.mxu0 0.0
        %756 = vmatpush1.xpose.msra.mxu0 0.0
        %757 = vmatprep.subr.mxu0 0.0
        %758 = vmatpush1.xpose.msra.mxu0 0.0
        %759 = vmatprep.subr.mxu0 0.0
        %760 = vmatpush1.xpose.msra.mxu0 0.0
        %761 = vmatprep.subr.mxu0 0.0
        %762 = vmatpush1.xpose.msra.mxu0 0.0
        %763 = vmatprep.subr.mxu0 0.0
        %764 = vmatpush1.xpose.msra.mxu0 0.0
        %765 = vmatprep.subr.mxu0 0.0
        %766 = vmatpush1.xpose.msra.mxu0 0.0
        %767 = vmatprep.subr.mxu0 0.0
        %768 = vmatpush1.xpose.msra.mxu0 0.0
        %769 = vmatprep.subr.mxu0 0.0
        %770 = vmatpush1.xpose.msra.mxu0 0.0
        %771 = vmatprep.subr.mxu0 0.0
        %772 = vmatpush1.xpose.msra.mxu0 0.0
        %773 = vmatprep.mubr.f32.mxu0 0.0
        %774 = vmatmul.mubr.f32.gmra.mrb[0].mxu0 %v705
        %v775 = vpop.f32.mrb[0].mxu0
        %v776 = vadd.f32 0.0, %v775
        %v777 = vpop.f32.mrb[0].mxu0
        %778 = vdwg.mxu0
        %v779 = vmul.f32 %v776, 0.25
        %v781 = vlaneseq
        %v782 = vshrl.u32 %v781, 7
        %v783 = vsub.s32 0, %v782
        %v784 = vrot.slane %v616, %v783
        %v786 = vadd.f32 %v779, %v784
        %vm787 = vcmask 64512
        %v788 = vsel %vm787, %v786, -inf
        %789 = vmax.xlane.f32.xlu0 %v788
        %v790 = vpop.xlane.xlu0 %789
        %v791 = vsub.f32 %v786, %v790
        %v792 = vmul.f32 %v791, 1.442695
        %v793 = vpow.pop %v792
        %v794 = vsel %vm787, %v793, 0.0
        %795 = vadd.xlane.f32.xlu0 %v794
        %v796 = vpop.xlane.xlu0 %795
        %v797 = vrcp.pop %v796
        %v798 = vmul.f32 %v793, %v797
        %799 = vrot.lane.b32.xlu0 %v698, 64
        %v800 = vpop.permute.xlu0 %799
        %v803 = vsel %vm787, %v798, 0
        %805 = vmatprep.subr.mxu0 0.0
        %806 = vmatpush1.msra.mxu0 %v800
        %807 = vmatprep.subr.mxu0 0.0
        %808 = vmatpush1.msra.mxu0 0.0
        %809 = vmatprep.subr.mxu0 0.0
        %810 = vmatpush1.msra.mxu0 0.0
        %811 = vmatprep.subr.mxu0 0.0
        %812 = vmatpush1.msra.mxu0 0.0
        %813 = vmatprep.subr.mxu0 0.0
        %814 = vmatpush1.msra.mxu0 0.0
        %815 = vmatprep.subr.mxu0 0.0
        %816 = vmatpush1.msra.mxu0 0.0
        %817 = vmatprep.subr.mxu0 0.0
        %818 = vmatpush1.msra.mxu0 0.0
        %819 = vmatprep.subr.mxu0 0.0
        %820 = vmatpush1.msra.mxu0 0.0
        %821 = vmatprep.subr.mxu0 0.0
        %822 = vmatpush1.msra.mxu0 0.0
        %823 = vmatprep.subr.mxu0 0.0
        %824 = vmatpush1.msra.mxu0 0.0
        %825 = vmatprep.subr.mxu0 0.0
        %826 = vmatpush1.msra.mxu0 0.0
        %827 = vmatprep.subr.mxu0 0.0
        %828 = vmatpush1.msra.mxu0 0.0
        %829 = vmatprep.subr.mxu0 0.0
        %830 = vmatpush1.msra.mxu0 0.0
        %831 = vmatprep.subr.mxu0 0.0
        %832 = vmatpush1.msra.mxu0 0.0
        %833 = vmatprep.subr.mxu0 0.0
        %834 = vmatpush1.msra.mxu0 0.0
        %835 = vmatprep.subr.mxu0 0.0
        %836 = vmatpush1.msra.mxu0 0.0
        %837 = vmatprep.subr.mxu0 0.0
        %838 = vmatpush1.msra.mxu0 0.0
        %839 = vmatprep.subr.mxu0 0.0
        %840 = vmatpush1.msra.mxu0 0.0
        %841 = vmatprep.subr.mxu0 0.0
        %842 = vmatpush1.msra.mxu0 0.0
        %843 = vmatprep.subr.mxu0 0.0
        %844 = vmatpush1.msra.mxu0 0.0
        %845 = vmatprep.subr.mxu0 0.0
        %846 = vmatpush1.msra.mxu0 0.0
        %847 = vmatprep.subr.mxu0 0.0
        %848 = vmatpush1.msra.mxu0 0.0
        %849 = vmatprep.subr.mxu0 0.0
        %850 = vmatpush1.msra.mxu0 0.0
        %851 = vmatprep.subr.mxu0 0.0
        %852 = vmatpush1.msra.mxu0 0.0
        %853 = vmatprep.subr.mxu0 0.0
        %854 = vmatpush1.msra.mxu0 0.0
        %855 = vmatprep.subr.mxu0 0.0
        %856 = vmatpush1.msra.mxu0 0.0
        %857 = vmatprep.subr.mxu0 0.0
        %858 = vmatpush1.msra.mxu0 0.0
        %859 = vmatprep.subr.mxu0 0.0
        %860 = vmatpush1.msra.mxu0 0.0
        %861 = vmatprep.subr.mxu0 0.0
        %862 = vmatpush1.msra.mxu0 0.0
        %863 = vmatprep.subr.mxu0 0.0
        %864 = vmatpush1.msra.mxu0 0.0
        %865 = vmatprep.subr.mxu0 0.0
        %866 = vmatpush1.msra.mxu0 0.0
        %867 = vmatprep.subr.mxu0 0.0
        %868 = vmatpush1.msra.mxu0 0.0
        %869 = vmatprep.mubr.f32.mxu0 0.0
        %870 = vmatmul.mubr.f32.gmra.mrb[0].mxu0 %v803
        %v871 = vpop.f32.mrb[0].mxu0
        %v872 = vadd.f32 0.0, %v871
        %v873 = vpop.f32.mrb[0].mxu0
        %874 = vdwg.mxu0
        %v875 = vld [vmem:[%s6] sm:$0xff]
        %v876 = vld [vmem:[%s6 + $0x8] sm:$0xff]
        %v877 = vld [vmem:[%s6 + $0x10] sm:$0xff]
        %v878 = vld [vmem:[%s6 + $0x18] sm:$0xff]
        %879 = vrot.lane.b32.xlu0 %v698, 112
        %v880 = vpop.permute.xlu0 %879
        %881 = vrot.lane.b32.xlu0 %v698, 80
        %v882 = vpop.permute.xlu0 %881
        %v883 = vsel %vm704, %v880, 0
        %v885 = vsel %vm704, %v882, 0
        %887 = vmatprep.subr.mxu0 0.0
        %888 = vmatpush1.xpose.msra.mxu0 %v885
        %889 = vmatprep.subr.mxu0 0.0
        %890 = vmatpush1.xpose.msra.mxu0 0.0
        %891 = vmatprep.subr.mxu0 0.0
        %892 = vmatpush1.xpose.msra.mxu0 0.0
        %893 = vmatprep.subr.mxu0 0.0
        %894 = vmatpush1.xpose.msra.mxu0 0.0
        %895 = vmatprep.subr.mxu0 0.0
        %896 = vmatpush1.xpose.msra.mxu0 0.0
        %897 = vmatprep.subr.mxu0 0.0
        %898 = vmatpush1.xpose.msra.mxu0 0.0
        %899 = vmatprep.subr.mxu0 0.0
        %900 = vmatpush1.xpose.msra.mxu0 0.0
        %901 = vmatprep.subr.mxu0 0.0
        %902 = vmatpush1.xpose.msra.mxu0 0.0
        %903 = vmatprep.subr.mxu0 0.0
        %904 = vmatpush1.xpose.msra.mxu0 0.0
        %905 = vmatprep.subr.mxu0 0.0
        %906 = vmatpush1.xpose.msra.mxu0 0.0
        %907 = vmatprep.subr.mxu0 0.0
        %908 = vmatpush1.xpose.msra.mxu0 0.0
        %909 = vmatprep.subr.mxu0 0.0
        %910 = vmatpush1.xpose.msra.mxu0 0.0
        %911 = vmatprep.subr.mxu0 0.0
        %912 = vmatpush1.xpose.msra.mxu0 0.0
        %913 = vmatprep.subr.mxu0 0.0
        %914 = vmatpush1.xpose.msra.mxu0 0.0
        %915 = vmatprep.subr.mxu0 0.0
        %916 = vmatpush1.xpose.msra.mxu0 0.0
        %917 = vmatprep.subr.mxu0 0.0
        %918 = vmatpush1.xpose.msra.mxu0 0.0
        %919 = vmatprep.subr.mxu0 0.0
        %920 = vmatpush1.xpose.msra.mxu0 0.0
        %921 = vmatprep.subr.mxu0 0.0
        %922 = vmatpush1.xpose.msra.mxu0 0.0
        %923 = vmatprep.subr.mxu0 0.0
        %924 = vmatpush1.xpose.msra.mxu0 0.0
        %925 = vmatprep.subr.mxu0 0.0
        %926 = vmatpush1.xpose.msra.mxu0 0.0
        %927 = vmatprep.subr.mxu0 0.0
        %928 = vmatpush1.xpose.msra.mxu0 0.0
        %929 = vmatprep.subr.mxu0 0.0
        %930 = vmatpush1.xpose.msra.mxu0 0.0
        %931 = vmatprep.subr.mxu0 0.0
        %932 = vmatpush1.xpose.msra.mxu0 0.0
        %933 = vmatprep.subr.mxu0 0.0
        %934 = vmatpush1.xpose.msra.mxu0 0.0
        %935 = vmatprep.subr.mxu0 0.0
        %936 = vmatpush1.xpose.msra.mxu0 0.0
        %937 = vmatprep.subr.mxu0 0.0
        %938 = vmatpush1.xpose.msra.mxu0 0.0
        %939 = vmatprep.subr.mxu0 0.0
        %940 = vmatpush1.xpose.msra.mxu0 0.0
        %941 = vmatprep.subr.mxu0 0.0
        %942 = vmatpush1.xpose.msra.mxu0 0.0
        %943 = vmatprep.subr.mxu0 0.0
        %944 = vmatpush1.xpose.msra.mxu0 0.0
        %945 = vmatprep.subr.mxu0 0.0
        %946 = vmatpush1.xpose.msra.mxu0 0.0
        %947 = vmatprep.subr.mxu0 0.0
        %948 = vmatpush1.xpose.msra.mxu0 0.0
        %949 = vmatprep.subr.mxu0 0.0
        %950 = vmatpush1.xpose.msra.mxu0 0.0
        %951 = vmatprep.mubr.f32.mxu0 0.0
        %952 = vmatmul.mubr.f32.gmra.mrb[0].mxu0 %v883
        %v953 = vpop.f32.mrb[0].mxu0
        %v954 = vadd.f32 0.0, %v953
        %v955 = vpop.f32.mrb[0].mxu0
        %956 = vdwg.mxu0
        %v957 = vmul.f32 %v954, 0.25
        %v958 = vadd.f32 %v957, %v784
        %v959 = vsel %vm787, %v958, -inf
        %960 = vmax.xlane.f32.xlu0 %v959
        %v961 = vpop.xlane.xlu0 %960
        %v962 = vsub.f32 %v958, %v961
        %v963 = vmul.f32 %v962, 1.442695
        %v964 = vpow.pop %v963
        %v965 = vsel %vm787, %v964, 0.0
        %966 = vadd.xlane.f32.xlu0 %v965
        %v967 = vpop.xlane.xlu0 %966
        %v968 = vrcp.pop %v967
        %v969 = vmul.f32 %v964, %v968
        %970 = vrot.lane.b32.xlu0 %v698, 48
        %v971 = vpop.permute.xlu0 %970
        %v974 = vsel %vm787, %v969, 0
        %976 = vmatprep.subr.mxu0 0.0
        %977 = vmatpush1.msra.mxu0 %v971
        %978 = vmatprep.subr.mxu0 0.0
        %979 = vmatpush1.msra.mxu0 0.0
        %980 = vmatprep.subr.mxu0 0.0
        %981 = vmatpush1.msra.mxu0 0.0
        %982 = vmatprep.subr.mxu0 0.0
        %983 = vmatpush1.msra.mxu0 0.0
        %984 = vmatprep.subr.mxu0 0.0
        %985 = vmatpush1.msra.mxu0 0.0
        %986 = vmatprep.subr.mxu0 0.0
        %987 = vmatpush1.msra.mxu0 0.0
        %988 = vmatprep.subr.mxu0 0.0
        %989 = vmatpush1.msra.mxu0 0.0
        %990 = vmatprep.subr.mxu0 0.0
        %991 = vmatpush1.msra.mxu0 0.0
        %992 = vmatprep.subr.mxu0 0.0
        %993 = vmatpush1.msra.mxu0 0.0
        %994 = vmatprep.subr.mxu0 0.0
        %995 = vmatpush1.msra.mxu0 0.0
        %996 = vmatprep.subr.mxu0 0.0
        %997 = vmatpush1.msra.mxu0 0.0
        %998 = vmatprep.subr.mxu0 0.0
        %999 = vmatpush1.msra.mxu0 0.0
        %1000 = vmatprep.subr.mxu0 0.0
        %1001 = vmatpush1.msra.mxu0 0.0
        %1002 = vmatprep.subr.mxu0 0.0
        %1003 = vmatpush1.msra.mxu0 0.0
        %1004 = vmatprep.subr.mxu0 0.0
        %1005 = vmatpush1.msra.mxu0 0.0
        %1006 = vmatprep.subr.mxu0 0.0
        %1007 = vmatpush1.msra.mxu0 0.0
        %1008 = vmatprep.subr.mxu0 0.0
        %1009 = vmatpush1.msra.mxu0 0.0
        %1010 = vmatprep.subr.mxu0 0.0
        %1011 = vmatpush1.msra.mxu0 0.0
        %1012 = vmatprep.subr.mxu0 0.0
        %1013 = vmatpush1.msra.mxu0 0.0
        %1014 = vmatprep.subr.mxu0 0.0
        %1015 = vmatpush1.msra.mxu0 0.0
        %1016 = vmatprep.subr.mxu0 0.0
        %1017 = vmatpush1.msra.mxu0 0.0
        %1018 = vmatprep.subr.mxu0 0.0
        %1019 = vmatpush1.msra.mxu0 0.0
        %1020 = vmatprep.subr.mxu0 0.0
        %1021 = vmatpush1.msra.mxu0 0.0
        %1022 = vmatprep.subr.mxu0 0.0
        %1023 = vmatpush1.msra.mxu0 0.0
        %1024 = vmatprep.subr.mxu0 0.0
        %1025 = vmatpush1.msra.mxu0 0.0
        %1026 = vmatprep.subr.mxu0 0.0
        %1027 = vmatpush1.msra.mxu0 0.0
        %1028 = vmatprep.subr.mxu0 0.0
        %1029 = vmatpush1.msra.mxu0 0.0
        %1030 = vmatprep.subr.mxu0 0.0
        %1031 = vmatpush1.msra.mxu0 0.0
        %1032 = vmatprep.subr.mxu0 0.0
        %1033 = vmatpush1.msra.mxu0 0.0
        %1034 = vmatprep.subr.mxu0 0.0
        %1035 = vmatpush1.msra.mxu0 0.0
        %1036 = vmatprep.subr.mxu0 0.0
        %1037 = vmatpush1.msra.mxu0 0.0
        %1038 = vmatprep.subr.mxu0 0.0
        %1039 = vmatpush1.msra.mxu0 0.0
        %1040 = vmatprep.mubr.f32.mxu0 0.0
        %1041 = vmatmul.mubr.f32.gmra.mrb[0].mxu0 %v974
        %v1042 = vpop.f32.mrb[0].mxu0
        %v1043 = vadd.f32 0.0, %v1042
        %v1044 = vpop.f32.mrb[0].mxu0
        %1045 = vdwg.mxu0
        %v1047 = vsel %vm704, %v1043, 0
        %1049 = vmatprep.subr.mxu0 0.0
        %1050 = vmatpush1.msra.mxu0 %v877
        %1051 = vmatprep.subr.mxu0 0.0
        %1052 = vmatpush1.msra.mxu0 %v878
        %1053 = vmatprep.subr.mxu0 0.0
        %1054 = vmatpush1.msra.mxu0 0.0
        %1055 = vmatprep.subr.mxu0 0.0
        %1056 = vmatpush1.msra.mxu0 0.0
        %1057 = vmatprep.subr.mxu0 0.0
        %1058 = vmatpush1.msra.mxu0 0.0
        %1059 = vmatprep.subr.mxu0 0.0
        %1060 = vmatpush1.msra.mxu0 0.0
        %1061 = vmatprep.subr.mxu0 0.0
        %1062 = vmatpush1.msra.mxu0 0.0
        %1063 = vmatprep.subr.mxu0 0.0
        %1064 = vmatpush1.msra.mxu0 0.0
        %1065 = vmatprep.subr.mxu0 0.0
        %1066 = vmatpush1.msra.mxu0 0.0
        %1067 = vmatprep.subr.mxu0 0.0
        %1068 = vmatpush1.msra.mxu0 0.0
        %1069 = vmatprep.subr.mxu0 0.0
        %1070 = vmatpush1.msra.mxu0 0.0
        %1071 = vmatprep.subr.mxu0 0.0
        %1072 = vmatpush1.msra.mxu0 0.0
        %1073 = vmatprep.subr.mxu0 0.0
        %1074 = vmatpush1.msra.mxu0 0.0
        %1075 = vmatprep.subr.mxu0 0.0
        %1076 = vmatpush1.msra.mxu0 0.0
        %1077 = vmatprep.subr.mxu0 0.0
        %1078 = vmatpush1.msra.mxu0 0.0
        %1079 = vmatprep.subr.mxu0 0.0
        %1080 = vmatpush1.msra.mxu0 0.0
        %1081 = vmatprep.subr.mxu0 0.0
        %1082 = vmatpush1.msra.mxu0 0.0
        %1083 = vmatprep.subr.mxu0 0.0
        %1084 = vmatpush1.msra.mxu0 0.0
        %1085 = vmatprep.subr.mxu0 0.0
        %1086 = vmatpush1.msra.mxu0 0.0
        %1087 = vmatprep.subr.mxu0 0.0
        %1088 = vmatpush1.msra.mxu0 0.0
        %1089 = vmatprep.subr.mxu0 0.0
        %1090 = vmatpush1.msra.mxu0 0.0
        %1091 = vmatprep.subr.mxu0 0.0
        %1092 = vmatpush1.msra.mxu0 0.0
        %1093 = vmatprep.subr.mxu0 0.0
        %1094 = vmatpush1.msra.mxu0 0.0
        %1095 = vmatprep.subr.mxu0 0.0
        %1096 = vmatpush1.msra.mxu0 0.0
        %1097 = vmatprep.subr.mxu0 0.0
        %1098 = vmatpush1.msra.mxu0 0.0
        %1099 = vmatprep.subr.mxu0 0.0
        %1100 = vmatpush1.msra.mxu0 0.0
        %1101 = vmatprep.subr.mxu0 0.0
        %1102 = vmatpush1.msra.mxu0 0.0
        %1103 = vmatprep.subr.mxu0 0.0
        %1104 = vmatpush1.msra.mxu0 0.0
        %1105 = vmatprep.subr.mxu0 0.0
        %1106 = vmatpush1.msra.mxu0 0.0
        %1107 = vmatprep.subr.mxu0 0.0
        %1108 = vmatpush1.msra.mxu0 0.0
        %1109 = vmatprep.subr.mxu0 0.0
        %1110 = vmatpush1.msra.mxu0 0.0
        %1111 = vmatprep.subr.mxu0 0.0
        %1112 = vmatpush1.msra.mxu0 0.0
        %1113 = vmatprep.mubr.f32.mxu0 0.0
        %1114 = vmatmul.mubr.f32.gmra.mrb[0].mxu0 %v1047
        %v1115 = vpop.f32.mrb[0].mxu0
        %v1116 = vadd.f32 0.0, %v1115
        %v1117 = vpop.f32.mrb[0].mxu0
        %1118 = vdwg.mxu0
        %v1120 = vsel %vm704, %v872, 0
        %1122 = vmatprep.subr.mxu0 0.0
        %1123 = vmatpush1.msra.mxu0 %v875
        %1124 = vmatprep.subr.mxu0 0.0
        %1125 = vmatpush1.msra.mxu0 %v876
        %1126 = vmatprep.subr.mxu0 0.0
        %1127 = vmatpush1.msra.mxu0 0.0
        %1128 = vmatprep.subr.mxu0 0.0
        %1129 = vmatpush1.msra.mxu0 0.0
        %1130 = vmatprep.subr.mxu0 0.0
        %1131 = vmatpush1.msra.mxu0 0.0
        %1132 = vmatprep.subr.mxu0 0.0
        %1133 = vmatpush1.msra.mxu0 0.0
        %1134 = vmatprep.subr.mxu0 0.0
        %1135 = vmatpush1.msra.mxu0 0.0
        %1136 = vmatprep.subr.mxu0 0.0
        %1137 = vmatpush1.msra.mxu0 0.0
        %1138 = vmatprep.subr.mxu0 0.0
        %1139 = vmatpush1.msra.mxu0 0.0
        %1140 = vmatprep.subr.mxu0 0.0
        %1141 = vmatpush1.msra.mxu0 0.0
        %1142 = vmatprep.subr.mxu0 0.0
        %1143 = vmatpush1.msra.mxu0 0.0
        %1144 = vmatprep.subr.mxu0 0.0
        %1145 = vmatpush1.msra.mxu0 0.0
        %1146 = vmatprep.subr.mxu0 0.0
        %1147 = vmatpush1.msra.mxu0 0.0
        %1148 = vmatprep.subr.mxu0 0.0
        %1149 = vmatpush1.msra.mxu0 0.0
        %1150 = vmatprep.subr.mxu0 0.0
        %1151 = vmatpush1.msra.mxu0 0.0
        %1152 = vmatprep.subr.mxu0 0.0
        %1153 = vmatpush1.msra.mxu0 0.0
        %1154 = vmatprep.subr.mxu0 0.0
        %1155 = vmatpush1.msra.mxu0 0.0
        %1156 = vmatprep.subr.mxu0 0.0
        %1157 = vmatpush1.msra.mxu0 0.0
        %1158 = vmatprep.subr.mxu0 0.0
        %1159 = vmatpush1.msra.mxu0 0.0
        %1160 = vmatprep.subr.mxu0 0.0
        %1161 = vmatpush1.msra.mxu0 0.0
        %1162 = vmatprep.subr.mxu0 0.0
        %1163 = vmatpush1.msra.mxu0 0.0
        %1164 = vmatprep.subr.mxu0 0.0
        %1165 = vmatpush1.msra.mxu0 0.0
        %1166 = vmatprep.subr.mxu0 0.0
        %1167 = vmatpush1.msra.mxu0 0.0
        %1168 = vmatprep.subr.mxu0 0.0
        %1169 = vmatpush1.msra.mxu0 0.0
        %1170 = vmatprep.subr.mxu0 0.0
        %1171 = vmatpush1.msra.mxu0 0.0
        %1172 = vmatprep.subr.mxu0 0.0
        %1173 = vmatpush1.msra.mxu0 0.0
        %1174 = vmatprep.subr.mxu0 0.0
        %1175 = vmatpush1.msra.mxu0 0.0
        %1176 = vmatprep.subr.mxu0 0.0
        %1177 = vmatpush1.msra.mxu0 0.0
        %1178 = vmatprep.subr.mxu0 0.0
        %1179 = vmatpush1.msra.mxu0 0.0
        %1180 = vmatprep.subr.mxu0 0.0
        %1181 = vmatpush1.msra.mxu0 0.0
        %1182 = vmatprep.subr.mxu0 0.0
        %1183 = vmatpush1.msra.mxu0 0.0
        %1184 = vmatprep.subr.mxu0 0.0
        %1185 = vmatpush1.msra.mxu0 0.0
        %1186 = vmatprep.mubr.f32.mxu0 0.0
        %1187 = vmatmul.mubr.f32.gmra.mrb[0].mxu0 %v1120
        %v1188 = vpop.f32.mrb[0].mxu0
        %v1189 = vadd.f32 %v1116, %v1188
        %v1190 = vpop.f32.mrb[0].mxu0
        %1191 = vdwg.mxu0
        %v1192 = vld [vmem:[%s7] sm:$0x1]
        %v1194 = vlaneseq
        %v1195 = vshrl.u32 %v1194, 7
        %v1196 = vsub.s32 0, %v1195
        %v1197 = vrot.slane %v1192, %v1196
        %v1199 = vadd.f32 %v1189, %v1197
        %v1200 = vadd.f32 %v1199, %v615
        %v1201 = vld [vmem:[%s8] sm:$0x1]
        %v1202 = vld [vmem:[%s9] sm:$0x1]
        %v1203 = vsel %vm587, %v1200, 0.0
        %1204 = vadd.xlane.f32.xlu0 %v1203
        %v1205 = vpop.xlane.xlu0 %1204
        %v1206 = vmul.f32 %v1205, %v591
        %v1207 = vsub.f32 %v1200, %v1206
        %v1208 = vmul.f32 %v1207, %v1207
        %v1209 = vsel %vm587, %v1208, 0.0
        %1210 = vadd.xlane.f32.xlu0 %v1209
        %v1211 = vpop.xlane.xlu0 %1210
        %v1212 = vmul.f32 %v1211, %v591
        %v1213 = vadd.f32 %v1212, 1e-12
        %v1214 = vrsqrt.pop %v1213
        %v1215 = vmul.f32 %v1207, %v1214
        %v1217 = vlaneseq
        %v1218 = vshrl.u32 %v1217, 7
        %v1219 = vsub.s32 0, %v1218
        %v1220 = vrot.slane %v1201, %v1219
        %v1222 = vmul.f32 %v1215, %v1220
        %v1224 = vlaneseq
        %v1225 = vshrl.u32 %v1224, 7
        %v1226 = vsub.s32 0, %v1225
        %v1227 = vrot.slane %v1202, %v1226
        %v1229 = vadd.f32 %v1222, %v1227
        %v1230 = vld [vmem:[%s10] sm:$0xff]
        %v1231 = vld [vmem:[%s10 + $0x8] sm:$0xff]
        %v1232 = vld [vmem:[%s10 + $0x10] sm:$0xff]
        %v1233 = vld [vmem:[%s10 + $0x18] sm:$0xff]
        %v1234 = vld [vmem:[%s11] sm:$0x1]
        %v1236 = vlaneseq
        %v1237 = vshrl.u32 %v1236, 7
        %v1238 = vsub.s32 0, %v1237
        %v1239 = vrot.slane %v1234, %v1238
        %v1242 = vsel %vm587, %v1229, 0
        %1244 = vmatprep.subr.mxu0 0.0
        %1245 = vmatpush1.msra.mxu0 %v1230
        %1246 = vmatprep.subr.mxu0 0.0
        %1247 = vmatpush1.msra.mxu0 %v1231
        %1248 = vmatprep.subr.mxu0 0.0
        %1249 = vmatpush1.msra.mxu0 %v1232
        %1250 = vmatprep.subr.mxu0 0.0
        %1251 = vmatpush1.msra.mxu0 %v1233
        %1252 = vmatprep.subr.mxu0 0.0
        %1253 = vmatpush1.msra.mxu0 0.0
        %1254 = vmatprep.subr.mxu0 0.0
        %1255 = vmatpush1.msra.mxu0 0.0
        %1256 = vmatprep.subr.mxu0 0.0
        %1257 = vmatpush1.msra.mxu0 0.0
        %1258 = vmatprep.subr.mxu0 0.0
        %1259 = vmatpush1.msra.mxu0 0.0
        %1260 = vmatprep.subr.mxu0 0.0
        %1261 = vmatpush1.msra.mxu0 0.0
        %1262 = vmatprep.subr.mxu0 0.0
        %1263 = vmatpush1.msra.mxu0 0.0
        %1264 = vmatprep.subr.mxu0 0.0
        %1265 = vmatpush1.msra.mxu0 0.0
        %1266 = vmatprep.subr.mxu0 0.0
        %1267 = vmatpush1.msra.mxu0 0.0
        %1268 = vmatprep.subr.mxu0 0.0
        %1269 = vmatpush1.msra.mxu0 0.0
        %1270 = vmatprep.subr.mxu0 0.0
        %1271 = vmatpush1.msra.mxu0 0.0
        %1272 = vmatprep.subr.mxu0 0.0
        %1273 = vmatpush1.msra.mxu0 0.0
        %1274 = vmatprep.subr.mxu0 0.0
        %1275 = vmatpush1.msra.mxu0 0.0
        %1276 = vmatprep.subr.mxu0 0.0
        %1277 = vmatpush1.msra.mxu0 0.0
        %1278 = vmatprep.subr.mxu0 0.0
        %1279 = vmatpush1.msra.mxu0 0.0
        %1280 = vmatprep.subr.mxu0 0.0
        %1281 = vmatpush1.msra.mxu0 0.0
        %1282 = vmatprep.subr.mxu0 0.0
        %1283 = vmatpush1.msra.mxu0 0.0
        %1284 = vmatprep.subr.mxu0 0.0
        %1285 = vmatpush1.msra.mxu0 0.0
        %1286 = vmatprep.subr.mxu0 0.0
        %1287 = vmatpush1.msra.mxu0 0.0
        %1288 = vmatprep.subr.mxu0 0.0
        %1289 = vmatpush1.msra.mxu0 0.0
        %1290 = vmatprep.subr.mxu0 0.0
        %1291 = vmatpush1.msra.mxu0 0.0
        %1292 = vmatprep.subr.mxu0 0.0
        %1293 = vmatpush1.msra.mxu0 0.0
        %1294 = vmatprep.subr.mxu0 0.0
        %1295 = vmatpush1.msra.mxu0 0.0
        %1296 = vmatprep.subr.mxu0 0.0
        %1297 = vmatpush1.msra.mxu0 0.0
        %1298 = vmatprep.subr.mxu0 0.0
        %1299 = vmatpush1.msra.mxu0 0.0
        %1300 = vmatprep.subr.mxu0 0.0
        %1301 = vmatpush1.msra.mxu0 0.0
        %1302 = vmatprep.subr.mxu0 0.0
        %1303 = vmatpush1.msra.mxu0 0.0
        %1304 = vmatprep.subr.mxu0 0.0
        %1305 = vmatpush1.msra.mxu0 0.0
        %1306 = vmatprep.subr.mxu0 0.0
        %1307 = vmatpush1.msra.mxu0 0.0
        %1308 = vmatprep.mubr.f32.mxu0 0.0
        %1309 = vmatmul.mubr.f32.gmra.mrb[0].mxu0 %v1242
        %v1310 = vpop.f32.mrb[0].mxu0
        %v1311 = vadd.f32 %v1239, %v1310
        %v1312 = vpop.f32.mrb[0].mxu0
        %1313 = vdwg.mxu0
        %v1314 = vmul.f32 %v1311, 0.5
        %v1315 = vmul.f32 %v1311, 0.70710677
        %v1316 = verf.f32.pop %v1315
        %v1317 = vadd.f32 %v1316, 1.0
        %v1318 = vmul.f32 %v1314, %v1317
        %v1319 = vld [vmem:[%s12] sm:$0xff]
        %v1320 = vld [vmem:[%s12 + $0x8] sm:$0xff]
        %v1321 = vld [vmem:[%s12 + $0x10] sm:$0xff]
        %v1322 = vld [vmem:[%s12 + $0x18] sm:$0xff]
        %v1323 = vld [vmem:[%s12 + $0x20] sm:$0xff]
        %v1324 = vld [vmem:[%s12 + $0x28] sm:$0xff]
        %v1325 = vld [vmem:[%s12 + $0x30] sm:$0xff]
        %v1326 = vld [vmem:[%s12 + $0x38] sm:$0xff]
        %v1327 = vld [vmem:[%s13] sm:$0x1]
        %v1329 = vlaneseq
        %v1330 = vshrl.u32 %v1329, 7
        %v1331 = vsub.s32 0, %v1330
        %v1332 = vrot.slane %v1327, %v1331
        %vm1334 = vcmask 523264
        %v1336 = vsel %vm1334, %v1318, 0
        %1338 = vmatprep.subr.mxu0 0.0
        %1339 = vmatpush1.msra.mxu0 %v1319
        %1340 = vmatprep.subr.mxu0 0.0
        %1341 = vmatpush1.msra.mxu0 %v1320
        %1342 = vmatprep.subr.mxu0 0.0
        %1343 = vmatpush1.msra.mxu0 %v1321
        %1344 = vmatprep.subr.mxu0 0.0
        %1345 = vmatpush1.msra.mxu0 %v1322
        %1346 = vmatprep.subr.mxu0 0.0
        %1347 = vmatpush1.msra.mxu0 %v1323
        %1348 = vmatprep.subr.mxu0 0.0
        %1349 = vmatpush1.msra.mxu0 %v1324
        %1350 = vmatprep.subr.mxu0 0.0
        %1351 = vmatpush1.msra.mxu0 %v1325
        %1352 = vmatprep.subr.mxu0 0.0
        %1353 = vmatpush1.msra.mxu0 %v1326
        %1354 = vmatprep.subr.mxu0 0.0
        %1355 = vmatpush1.msra.mxu0 0.0
        %1356 = vmatprep.subr.mxu0 0.0
        %1357 = vmatpush1.msra.mxu0 0.0
        %1358 = vmatprep.subr.mxu0 0.0
        %1359 = vmatpush1.msra.mxu0 0.0
        %1360 = vmatprep.subr.mxu0 0.0
        %1361 = vmatpush1.msra.mxu0 0.0
        %1362 = vmatprep.subr.mxu0 0.0
        %1363 = vmatpush1.msra.mxu0 0.0
        %1364 = vmatprep.subr.mxu0 0.0
        %1365 = vmatpush1.msra.mxu0 0.0
        %1366 = vmatprep.subr.mxu0 0.0
        %1367 = vmatpush1.msra.mxu0 0.0
        %1368 = vmatprep.subr.mxu0 0.0
        %1369 = vmatpush1.msra.mxu0 0.0
        %1370 = vmatprep.subr.mxu0 0.0
        %1371 = vmatpush1.msra.mxu0 0.0
        %1372 = vmatprep.subr.mxu0 0.0
        %1373 = vmatpush1.msra.mxu0 0.0
        %1374 = vmatprep.subr.mxu0 0.0
        %1375 = vmatpush1.msra.mxu0 0.0
        %1376 = vmatprep.subr.mxu0 0.0
        %1377 = vmatpush1.msra.mxu0 0.0
        %1378 = vmatprep.subr.mxu0 0.0
        %1379 = vmatpush1.msra.mxu0 0.0
        %1380 = vmatprep.subr.mxu0 0.0
        %1381 = vmatpush1.msra.mxu0 0.0
        %1382 = vmatprep.subr.mxu0 0.0
        %1383 = vmatpush1.msra.mxu0 0.0
        %1384 = vmatprep.subr.mxu0 0.0
        %1385 = vmatpush1.msra.mxu0 0.0
        %1386 = vmatprep.subr.mxu0 0.0
        %1387 = vmatpush1.msra.mxu0 0.0
        %1388 = vmatprep.subr.mxu0 0.0
        %1389 = vmatpush1.msra.mxu0 0.0
        %1390 = vmatprep.subr.mxu0 0.0
        %1391 = vmatpush1.msra.mxu0 0.0
        %1392 = vmatprep.subr.mxu0 0.0
        %1393 = vmatpush1.msra.mxu0 0.0
        %1394 = vmatprep.subr.mxu0 0.0
        %1395 = vmatpush1.msra.mxu0 0.0
        %1396 = vmatprep.subr.mxu0 0.0
        %1397 = vmatpush1.msra.mxu0 0.0
        %1398 = vmatprep.subr.mxu0 0.0
        %1399 = vmatpush1.msra.mxu0 0.0
        %1400 = vmatprep.subr.mxu0 0.0
        %1401 = vmatpush1.msra.mxu0 0.0
        %1402 = vmatprep.mubr.f32.mxu0 0.0
        %1403 = vmatmul.mubr.f32.gmra.mrb[0].mxu0 %v1336
        %v1404 = vpop.f32.mrb[0].mxu0
        %v1405 = vadd.f32 %v1332, %v1404
        %v1406 = vpop.f32.mrb[0].mxu0
        %1407 = vdwg.mxu0
        %v1408 = vadd.f32 %v1405, %v1229
        %v1409 = vld [vmem:[%s14] sm:$0x1]
        %v1410 = vld [vmem:[%s15] sm:$0x1]
        %v1411 = vsel %vm587, %v1408, 0.0
        %1412 = vadd.xlane.f32.xlu0 %v1411
        %v1413 = vpop.xlane.xlu0 %1412
        %v1414 = vmul.f32 %v1413, %v591
        %v1415 = vsub.f32 %v1408, %v1414
        %v1416 = vmul.f32 %v1415, %v1415
        %v1417 = vsel %vm587, %v1416, 0.0
        %1418 = vadd.xlane.f32.xlu0 %v1417
        %v1419 = vpop.xlane.xlu0 %1418
        %v1420 = vmul.f32 %v1419, %v591
        %v1421 = vadd.f32 %v1420, 1e-12
        %v1422 = vrsqrt.pop %v1421
        %v1423 = vmul.f32 %v1415, %v1422
        %v1425 = vlaneseq
        %v1426 = vshrl.u32 %v1425, 7
        %v1427 = vsub.s32 0, %v1426
        %v1428 = vrot.slane %v1409, %v1427
        %v1430 = vmul.f32 %v1423, %v1428
        %v1432 = vlaneseq
        %v1433 = vshrl.u32 %v1432, 7
        %v1434 = vsub.s32 0, %v1433
        %v1435 = vrot.slane %v1410, %v1434
        %v1437 = vadd.f32 %v1430, %v1435
        %s1438 = scalar_lea.vmem %s4, 32
        %v1439 = vld [vmem:[%s1438] sm:$0xff]
        %v1440 = vld [vmem:[%s1438 + $0x8] sm:$0xff]
        %v1441 = vld [vmem:[%s1438 + $0x10] sm:$0xff]
        %v1442 = vld [vmem:[%s1438 + $0x18] sm:$0xff]
        %s1443 = scalar_lea.vmem %s5, 1
        %v1444 = vld [vmem:[%s1443] sm:$0x1]
        %v1446 = vlaneseq
        %v1447 = vshrl.u32 %v1446, 7
        %v1448 = vsub.s32 0, %v1447
        %v1449 = vrot.slane %v1444, %v1448
        %v1452 = vsel %vm587, %v1437, 0
        %1454 = vmatprep.subr.mxu0 0.0
        %1455 = vmatpush1.msra.mxu0 %v1439
        %1456 = vmatprep.subr.mxu0 0.0
        %1457 = vmatpush1.msra.mxu0 %v1440
        %1458 = vmatprep.subr.mxu0 0.0
        %1459 = vmatpush1.msra.mxu0 %v1441
        %1460 = vmatprep.subr.mxu0 0.0
        %1461 = vmatpush1.msra.mxu0 %v1442
        %1462 = vmatprep.subr.mxu0 0.0
        %1463 = vmatpush1.msra.mxu0 0.0
        %1464 = vmatprep.subr.mxu0 0.0
        %1465 = vmatpush1.msra.mxu0 0.0
        %1466 = vmatprep.subr.mxu0 0.0
        %1467 = vmatpush1.msra.mxu0 0.0
        %1468 = vmatprep.subr.mxu0 0.0
        %1469 = vmatpush1.msra.mxu0 0.0
        %1470 = vmatprep.subr.mxu0 0.0
        %1471 = vmatpush1.msra.mxu0 0.0
        %1472 = vmatprep.subr.mxu0 0.0
        %1473 = vmatpush1.msra.mxu0 0.0
        %1474 = vmatprep.subr.mxu0 0.0
        %1475 = vmatpush1.msra.mxu0 0.0
        %1476 = vmatprep.subr.mxu0 0.0
        %1477 = vmatpush1.msra.mxu0 0.0
        %1478 = vmatprep.subr.mxu0 0.0
        %1479 = vmatpush1.msra.mxu0 0.0
        %1480 = vmatprep.subr.mxu0 0.0
        %1481 = vmatpush1.msra.mxu0 0.0
        %1482 = vmatprep.subr.mxu0 0.0
        %1483 = vmatpush1.msra.mxu0 0.0
        %1484 = vmatprep.subr.mxu0 0.0
        %1485 = vmatpush1.msra.mxu0 0.0
        %1486 = vmatprep.subr.mxu0 0.0
        %1487 = vmatpush1.msra.mxu0 0.0
        %1488 = vmatprep.subr.mxu0 0.0
        %1489 = vmatpush1.msra.mxu0 0.0
        %1490 = vmatprep.subr.mxu0 0.0
        %1491 = vmatpush1.msra.mxu0 0.0
        %1492 = vmatprep.subr.mxu0 0.0
        %1493 = vmatpush1.msra.mxu0 0.0
        %1494 = vmatprep.subr.mxu0 0.0
        %1495 = vmatpush1.msra.mxu0 0.0
        %1496 = vmatprep.subr.mxu0 0.0
        %1497 = vmatpush1.msra.mxu0 0.0
        %1498 = vmatprep.subr.mxu0 0.0
        %1499 = vmatpush1.msra.mxu0 0.0
        %1500 = vmatprep.subr.mxu0 0.0
        %1501 = vmatpush1.msra.mxu0 0.0
        %1502 = vmatprep.subr.mxu0 0.0
        %1503 = vmatpush1.msra.mxu0 0.0
        %1504 = vmatprep.subr.mxu0 0.0
        %1505 = vmatpush1.msra.mxu0 0.0
        %1506 = vmatprep.subr.mxu0 0.0
        %1507 = vmatpush1.msra.mxu0 0.0
        %1508 = vmatprep.subr.mxu0 0.0
        %1509 = vmatpush1.msra.mxu0 0.0
        %1510 = vmatprep.subr.mxu0 0.0
        %1511 = vmatpush1.msra.mxu0 0.0
        %1512 = vmatprep.subr.mxu0 0.0
        %1513 = vmatpush1.msra.mxu0 0.0
        %1514 = vmatprep.subr.mxu0 0.0
        %1515 = vmatpush1.msra.mxu0 0.0
        %1516 = vmatprep.subr.mxu0 0.0
        %1517 = vmatpush1.msra.mxu0 0.0
        %1518 = vmatprep.mubr.f32.mxu0 0.0
        %1519 = vmatmul.mubr.f32.gmra.mrb[0].mxu0 %v1452
        %v1520 = vpop.f32.mrb[0].mxu0
        %v1521 = vadd.f32 %v1449, %v1520
        %v1522 = vpop.f32.mrb[0].mxu0
        %1523 = vdwg.mxu0
        %1525 = vrot.lane.b32.xlu0 %v1521, 96
        %v1526 = vpop.permute.xlu0 %1525
        %v1527 = vsel %vm704, %v1521, 0
        %v1529 = vsel %vm704, %v1526, 0
        %1531 = vmatprep.subr.mxu0 0.0
        %1532 = vmatpush1.xpose.msra.mxu0 %v1529
        %1533 = vmatprep.subr.mxu0 0.0
        %1534 = vmatpush1.xpose.msra.mxu0 0.0
        %1535 = vmatprep.subr.mxu0 0.0
        %1536 = vmatpush1.xpose.msra.mxu0 0.0
        %1537 = vmatprep.subr.mxu0 0.0
        %1538 = vmatpush1.xpose.msra.mxu0 0.0
        %1539 = vmatprep.subr.mxu0 0.0
        %1540 = vmatpush1.xpose.msra.mxu0 0.0
        %1541 = vmatprep.subr.mxu0 0.0
        %1542 = vmatpush1.xpose.msra.mxu0 0.0
        %1543 = vmatprep.subr.mxu0 0.0
        %1544 = vmatpush1.xpose.msra.mxu0 0.0
        %1545 = vmatprep.subr.mxu0 0.0
        %1546 = vmatpush1.xpose.msra.mxu0 0.0
        %1547 = vmatprep.subr.mxu0 0.0
        %1548 = vmatpush1.xpose.msra.mxu0 0.0
        %1549 = vmatprep.subr.mxu0 0.0
        %1550 = vmatpush1.xpose.msra.mxu0 0.0
        %1551 = vmatprep.subr.mxu0 0.0
        %1552 = vmatpush1.xpose.msra.mxu0 0.0
        %1553 = vmatprep.subr.mxu0 0.0
        %1554 = vmatpush1.xpose.msra.mxu0 0.0
        %1555 = vmatprep.subr.mxu0 0.0
        %1556 = vmatpush1.xpose.msra.mxu0 0.0
        %1557 = vmatprep.subr.mxu0 0.0
        %1558 = vmatpush1.xpose.msra.mxu0 0.0
        %1559 = vmatprep.subr.mxu0 0.0
        %1560 = vmatpush1.xpose.msra.mxu0 0.0
        %1561 = vmatprep.subr.mxu0 0.0
        %1562 = vmatpush1.xpose.msra.mxu0 0.0
        %1563 = vmatprep.subr.mxu0 0.0
        %1564 = vmatpush1.xpose.msra.mxu0 0.0
        %1565 = vmatprep.subr.mxu0 0.0
        %1566 = vmatpush1.xpose.msra.mxu0 0.0
        %1567 = vmatprep.subr.mxu0 0.0
        %1568 = vmatpush1.xpose.msra.mxu0 0.0
        %1569 = vmatprep.subr.mxu0 0.0
        %1570 = vmatpush1.xpose.msra.mxu0 0.0
        %1571 = vmatprep.subr.mxu0 0.0
        %1572 = vmatpush1.xpose.msra.mxu0 0.0
        %1573 = vmatprep.subr.mxu0 0.0
        %1574 = vmatpush1.xpose.msra.mxu0 0.0
        %1575 = vmatprep.subr.mxu0 0.0
        %1576 = vmatpush1.xpose.msra.mxu0 0.0
        %1577 = vmatprep.subr.mxu0 0.0
        %1578 = vmatpush1.xpose.msra.mxu0 0.0
        %1579 = vmatprep.subr.mxu0 0.0
        %1580 = vmatpush1.xpose.msra.mxu0 0.0
        %1581 = vmatprep.subr.mxu0 0.0
        %1582 = vmatpush1.xpose.msra.mxu0 0.0
        %1583 = vmatprep.subr.mxu0 0.0
        %1584 = vmatpush1.xpose.msra.mxu0 0.0
        %1585 = vmatprep.subr.mxu0 0.0
        %1586 = vmatpush1.xpose.msra.mxu0 0.0
        %1587 = vmatprep.subr.mxu0 0.0
        %1588 = vmatpush1.xpose.msra.mxu0 0.0
        %1589 = vmatprep.subr.mxu0 0.0
        %1590 = vmatpush1.xpose.msra.mxu0 0.0
        %1591 = vmatprep.subr.mxu0 0.0
        %1592 = vmatpush1.xpose.msra.mxu0 0.0
        %1593 = vmatprep.subr.mxu0 0.0
        %1594 = vmatpush1.xpose.msra.mxu0 0.0
        %1595 = vmatprep.mubr.f32.mxu0 0.0
        %1596 = vmatmul.mubr.f32.gmra.mrb[0].mxu0 %v1527
        %v1597 = vpop.f32.mrb[0].mxu0
        %v1598 = vadd.f32 0.0, %v1597
        %v1599 = vpop.f32.mrb[0].mxu0
        %1600 = vdwg.mxu0
        %v1601 = vmul.f32 %v1598, 0.25
        %v1602 = vadd.f32 %v1601, %v784
        %v1603 = vsel %vm787, %v1602, -inf
        %1604 = vmax.xlane.f32.xlu0 %v1603
        %v1605 = vpop.xlane.xlu0 %1604
        %v1606 = vsub.f32 %v1602, %v1605
        %v1607 = vmul.f32 %v1606, 1.442695
        %v1608 = vpow.pop %v1607
        %v1609 = vsel %vm787, %v1608, 0.0
        %1610 = vadd.xlane.f32.xlu0 %v1609
        %v1611 = vpop.xlane.xlu0 %1610
        %v1612 = vrcp.pop %v1611
        %v1613 = vmul.f32 %v1608, %v1612
        %1614 = vrot.lane.b32.xlu0 %v1521, 64
        %v1615 = vpop.permute.xlu0 %1614
        %v1618 = vsel %vm787, %v1613, 0
        %1620 = vmatprep.subr.mxu0 0.0
        %1621 = vmatpush1.msra.mxu0 %v1615
        %1622 = vmatprep.subr.mxu0 0.0
        %1623 = vmatpush1.msra.mxu0 0.0
        %1624 = vmatprep.subr.mxu0 0.0
        %1625 = vmatpush1.msra.mxu0 0.0
        %1626 = vmatprep.subr.mxu0 0.0
        %1627 = vmatpush1.msra.mxu0 0.0
        %1628 = vmatprep.subr.mxu0 0.0
        %1629 = vmatpush1.msra.mxu0 0.0
        %1630 = vmatprep.subr.mxu0 0.0
        %1631 = vmatpush1.msra.mxu0 0.0
        %1632 = vmatprep.subr.mxu0 0.0
        %1633 = vmatpush1.msra.mxu0 0.0
        %1634 = vmatprep.subr.mxu0 0.0
        %1635 = vmatpush1.msra.mxu0 0.0
        %1636 = vmatprep.subr.mxu0 0.0
        %1637 = vmatpush1.msra.mxu0 0.0
        %1638 = vmatprep.subr.mxu0 0.0
        %1639 = vmatpush1.msra.mxu0 0.0
        %1640 = vmatprep.subr.mxu0 0.0
        %1641 = vmatpush1.msra.mxu0 0.0
        %1642 = vmatprep.subr.mxu0 0.0
        %1643 = vmatpush1.msra.mxu0 0.0
        %1644 = vmatprep.subr.mxu0 0.0
        %1645 = vmatpush1.msra.mxu0 0.0
        %1646 = vmatprep.subr.mxu0 0.0
        %1647 = vmatpush1.msra.mxu0 0.0
        %1648 = vmatprep.subr.mxu0 0.0
        %1649 = vmatpush1.msra.mxu0 0.0
        %1650 = vmatprep.subr.mxu0 0.0
        %1651 = vmatpush1.msra.mxu0 0.0
        %1652 = vmatprep.subr.mxu0 0.0
        %1653 = vmatpush1.msra.mxu0 0.0
        %1654 = vmatprep.subr.mxu0 0.0
        %1655 = vmatpush1.msra.mxu0 0.0
        %1656 = vmatprep.subr.mxu0 0.0
        %1657 = vmatpush1.msra.mxu0 0.0
        %1658 = vmatprep.subr.mxu0 0.0
        %1659 = vmatpush1.msra.mxu0 0.0
        %1660 = vmatprep.subr.mxu0 0.0
        %1661 = vmatpush1.msra.mxu0 0.0
        %1662 = vmatprep.subr.mxu0 0.0
        %1663 = vmatpush1.msra.mxu0 0.0
        %1664 = vmatprep.subr.mxu0 0.0
        %1665 = vmatpush1.msra.mxu0 0.0
        %1666 = vmatprep.subr.mxu0 0.0
        %1667 = vmatpush1.msra.mxu0 0.0
        %1668 = vmatprep.subr.mxu0 0.0
        %1669 = vmatpush1.msra.mxu0 0.0
        %1670 = vmatprep.subr.mxu0 0.0
        %1671 = vmatpush1.msra.mxu0 0.0
        %1672 = vmatprep.subr.mxu0 0.0
        %1673 = vmatpush1.msra.mxu0 0.0
        %1674 = vmatprep.subr.mxu0 0.0
        %1675 = vmatpush1.msra.mxu0 0.0
        %1676 = vmatprep.subr.mxu0 0.0
        %1677 = vmatpush1.msra.mxu0 0.0
        %1678 = vmatprep.subr.mxu0 0.0
        %1679 = vmatpush1.msra.mxu0 0.0
        %1680 = vmatprep.subr.mxu0 0.0
        %1681 = vmatpush1.msra.mxu0 0.0
        %1682 = vmatprep.subr.mxu0 0.0
        %1683 = vmatpush1.msra.mxu0 0.0
        %1684 = vmatprep.mubr.f32.mxu0 0.0
        %1685 = vmatmul.mubr.f32.gmra.mrb[0].mxu0 %v1618
        %v1686 = vpop.f32.mrb[0].mxu0
        %v1687 = vadd.f32 0.0, %v1686
        %v1688 = vpop.f32.mrb[0].mxu0
        %1689 = vdwg.mxu0
        %s1690 = scalar_lea.vmem %s6, 32
        %v1691 = vld [vmem:[%s1690] sm:$0xff]
        %v1692 = vld [vmem:[%s1690 + $0x8] sm:$0xff]
        %v1693 = vld [vmem:[%s1690 + $0x10] sm:$0xff]
        %v1694 = vld [vmem:[%s1690 + $0x18] sm:$0xff]
        %1695 = vrot.lane.b32.xlu0 %v1521, 112
        %v1696 = vpop.permute.xlu0 %1695
        %1697 = vrot.lane.b32.xlu0 %v1521, 80
        %v1698 = vpop.permute.xlu0 %1697
        %v1699 = vsel %vm704, %v1696, 0
        %v1701 = vsel %vm704, %v1698, 0
        %1703 = vmatprep.subr.mxu0 0.0
        %1704 = vmatpush1.xpose.msra.mxu0 %v1701
        %1705 = vmatprep.subr.mxu0 0.0
        %1706 = vmatpush1.xpose.msra.mxu0 0.0
        %1707 = vmatprep.subr.mxu0 0.0
        %1708 = vmatpush1.xpose.msra.mxu0 0.0
        %1709 = vmatprep.subr.mxu0 0.0
        %1710 = vmatpush1.xpose.msra.mxu0 0.0
        %1711 = vmatprep.subr.mxu0 0.0
        %1712 = vmatpush1.xpose.msra.mxu0 0.0
        %1713 = vmatprep.subr.mxu0 0.0
        %1714 = vmatpush1.xpose.msra.mxu0 0.0
        %1715 = vmatprep.subr.mxu0 0.0
        %1716 = vmatpush1.xpose.msra.mxu0 0.0
        %1717 = vmatprep.subr.mxu0 0.0
        %1718 = vmatpush1.xpose.msra.mxu0 0.0
        %1719 = vmatprep.subr.mxu0 0.0
        %1720 = vmatpush1.xpose.msra.mxu0 0.0
        %1721 = vmatprep.subr.mxu0 0.0
        %1722 = vmatpush1.xpose.msra.mxu0 0.0
        %1723 = vmatprep.subr.mxu0 0.0
        %1724 = vmatpush1.xpose.msra.mxu0 0.0
        %1725 = vmatprep.subr.mxu0 0.0
        %1726 = vmatpush1.xpose.msra.mxu0 0.0
        %1727 = vmatprep.subr.mxu0 0.0
        %1728 = vmatpush1.xpose.msra.mxu0 0.0
        %1729 = vmatprep.subr.mxu0 0.0
        %1730 = vmatpush1.xpose.msra.mxu0 0.0
        %1731 = vmatprep.subr.mxu0 0.0
        %1732 = vmatpush1.xpose.msra.mxu0 0.0
        %1733 = vmatprep.subr.mxu0 0.0
        %1734 = vmatpush1.xpose.msra.mxu0 0.0
        %1735 = vmatprep.subr.mxu0 0.0
        %1736 = vmatpush1.xpose.msra.mxu0 0.0
        %1737 = vmatprep.subr.mxu0 0.0
        %1738 = vmatpush1.xpose.msra.mxu0 0.0
        %1739 = vmatprep.subr.mxu0 0.0
        %1740 = vmatpush1.xpose.msra.mxu0 0.0
        %1741 = vmatprep.subr.mxu0 0.0
        %1742 = vmatpush1.xpose.msra.mxu0 0.0
        %1743 = vmatprep.subr.mxu0 0.0
        %1744 = vmatpush1.xpose.msra.mxu0 0.0
        %1745 = vmatprep.subr.mxu0 0.0
        %1746 = vmatpush1.xpose.msra.mxu0 0.0
        %1747 = vmatprep.subr.mxu0 0.0
        %1748 = vmatpush1.xpose.msra.mxu0 0.0
        %1749 = vmatprep.subr.mxu0 0.0
        %1750 = vmatpush1.xpose.msra.mxu0 0.0
        %1751 = vmatprep.subr.mxu0 0.0
        %1752 = vmatpush1.xpose.msra.mxu0 0.0
        %1753 = vmatprep.subr.mxu0 0.0
        %1754 = vmatpush1.xpose.msra.mxu0 0.0
        %1755 = vmatprep.subr.mxu0 0.0
        %1756 = vmatpush1.xpose.msra.mxu0 0.0
        %1757 = vmatprep.subr.mxu0 0.0
        %1758 = vmatpush1.xpose.msra.mxu0 0.0
        %1759 = vmatprep.subr.mxu0 0.0
        %1760 = vmatpush1.xpose.msra.mxu0 0.0
        %1761 = vmatprep.subr.mxu0 0.0
        %1762 = vmatpush1.xpose.msra.mxu0 0.0
        %1763 = vmatprep.subr.mxu0 0.0
        %1764 = vmatpush1.xpose.msra.mxu0 0.0
        %1765 = vmatprep.subr.mxu0 0.0
        %1766 = vmatpush1.xpose.msra.mxu0 0.0
        %1767 = vmatprep.mubr.f32.mxu0 0.0
        %1768 = vmatmul.mubr.f32.gmra.mrb[0].mxu0 %v1699
        %v1769 = vpop.f32.mrb[0].mxu0
        %v1770 = vadd.f32 0.0, %v1769
        %v1771 = vpop.f32.mrb[0].mxu0
        %1772 = vdwg.mxu0
        %v1773 = vmul.f32 %v1770, 0.25
        %v1774 = vadd.f32 %v1773, %v784
        %v1775 = vsel %vm787, %v1774, -inf
        %1776 = vmax.xlane.f32.xlu0 %v1775
        %v1777 = vpop.xlane.xlu0 %1776
        %v1778 = vsub.f32 %v1774, %v1777
        %v1779 = vmul.f32 %v1778, 1.442695
        %v1780 = vpow.pop %v1779
        %v1781 = vsel %vm787, %v1780, 0.0
        %1782 = vadd.xlane.f32.xlu0 %v1781
        %v1783 = vpop.xlane.xlu0 %1782
        %v1784 = vrcp.pop %v1783
        %v1785 = vmul.f32 %v1780, %v1784
        %1786 = vrot.lane.b32.xlu0 %v1521, 48
        %v1787 = vpop.permute.xlu0 %1786
        %v1790 = vsel %vm787, %v1785, 0
        %1792 = vmatprep.subr.mxu0 0.0
        %1793 = vmatpush1.msra.mxu0 %v1787
        %1794 = vmatprep.subr.mxu0 0.0
        %1795 = vmatpush1.msra.mxu0 0.0
        %1796 = vmatprep.subr.mxu0 0.0
        %1797 = vmatpush1.msra.mxu0 0.0
        %1798 = vmatprep.subr.mxu0 0.0
        %1799 = vmatpush1.msra.mxu0 0.0
        %1800 = vmatprep.subr.mxu0 0.0
        %1801 = vmatpush1.msra.mxu0 0.0
        %1802 = vmatprep.subr.mxu0 0.0
        %1803 = vmatpush1.msra.mxu0 0.0
        %1804 = vmatprep.subr.mxu0 0.0
        %1805 = vmatpush1.msra.mxu0 0.0
        %1806 = vmatprep.subr.mxu0 0.0
        %1807 = vmatpush1.msra.mxu0 0.0
        %1808 = vmatprep.subr.mxu0 0.0
        %1809 = vmatpush1.msra.mxu0 0.0
        %1810 = vmatprep.subr.mxu0 0.0
        %1811 = vmatpush1.msra.mxu0 0.0
        %1812 = vmatprep.subr.mxu0 0.0
        %1813 = vmatpush1.msra.mxu0 0.0
        %1814 = vmatprep.subr.mxu0 0.0
        %1815 = vmatpush1.msra.mxu0 0.0
        %1816 = vmatprep.subr.mxu0 0.0
        %1817 = vmatpush1.msra.mxu0 0.0
        %1818 = vmatprep.subr.mxu0 0.0
        %1819 = vmatpush1.msra.mxu0 0.0
        %1820 = vmatprep.subr.mxu0 0.0
        %1821 = vmatpush1.msra.mxu0 0.0
        %1822 = vmatprep.subr.mxu0 0.0
        %1823 = vmatpush1.msra.mxu0 0.0
        %1824 = vmatprep.subr.mxu0 0.0
        %1825 = vmatpush1.msra.mxu0 0.0
        %1826 = vmatprep.subr.mxu0 0.0
        %1827 = vmatpush1.msra.mxu0 0.0
        %1828 = vmatprep.subr.mxu0 0.0
        %1829 = vmatpush1.msra.mxu0 0.0
        %1830 = vmatprep.subr.mxu0 0.0
        %1831 = vmatpush1.msra.mxu0 0.0
        %1832 = vmatprep.subr.mxu0 0.0
        %1833 = vmatpush1.msra.mxu0 0.0
        %1834 = vmatprep.subr.mxu0 0.0
        %1835 = vmatpush1.msra.mxu0 0.0
        %1836 = vmatprep.subr.mxu0 0.0
        %1837 = vmatpush1.msra.mxu0 0.0
        %1838 = vmatprep.subr.mxu0 0.0
        %1839 = vmatpush1.msra.mxu0 0.0
        %1840 = vmatprep.subr.mxu0 0.0
        %1841 = vmatpush1.msra.mxu0 0.0
        %1842 = vmatprep.subr.mxu0 0.0
        %1843 = vmatpush1.msra.mxu0 0.0
        %1844 = vmatprep.subr.mxu0 0.0
        %1845 = vmatpush1.msra.mxu0 0.0
        %1846 = vmatprep.subr.mxu0 0.0
        %1847 = vmatpush1.msra.mxu0 0.0
        %1848 = vmatprep.subr.mxu0 0.0
        %1849 = vmatpush1.msra.mxu0 0.0
        %1850 = vmatprep.subr.mxu0 0.0
        %1851 = vmatpush1.msra.mxu0 0.0
        %1852 = vmatprep.subr.mxu0 0.0
        %1853 = vmatpush1.msra.mxu0 0.0
        %1854 = vmatprep.subr.mxu0 0.0
        %1855 = vmatpush1.msra.mxu0 0.0
        %1856 = vmatprep.mubr.f32.mxu0 0.0
        %1857 = vmatmul.mubr.f32.gmra.mrb[0].mxu0 %v1790
        %v1858 = vpop.f32.mrb[0].mxu0
        %v1859 = vadd.f32 0.0, %v1858
        %v1860 = vpop.f32.mrb[0].mxu0
        %1861 = vdwg.mxu0
        %v1863 = vsel %vm704, %v1859, 0
        %1865 = vmatprep.subr.mxu0 0.0
        %1866 = vmatpush1.msra.mxu0 %v1693
        %1867 = vmatprep.subr.mxu0 0.0
        %1868 = vmatpush1.msra.mxu0 %v1694
        %1869 = vmatprep.subr.mxu0 0.0
        %1870 = vmatpush1.msra.mxu0 0.0
        %1871 = vmatprep.subr.mxu0 0.0
        %1872 = vmatpush1.msra.mxu0 0.0
        %1873 = vmatprep.subr.mxu0 0.0
        %1874 = vmatpush1.msra.mxu0 0.0
        %1875 = vmatprep.subr.mxu0 0.0
        %1876 = vmatpush1.msra.mxu0 0.0
        %1877 = vmatprep.subr.mxu0 0.0
        %1878 = vmatpush1.msra.mxu0 0.0
        %1879 = vmatprep.subr.mxu0 0.0
        %1880 = vmatpush1.msra.mxu0 0.0
        %1881 = vmatprep.subr.mxu0 0.0
        %1882 = vmatpush1.msra.mxu0 0.0
        %1883 = vmatprep.subr.mxu0 0.0
        %1884 = vmatpush1.msra.mxu0 0.0
        %1885 = vmatprep.subr.mxu0 0.0
        %1886 = vmatpush1.msra.mxu0 0.0
        %1887 = vmatprep.subr.mxu0 0.0
        %1888 = vmatpush1.msra.mxu0 0.0
        %1889 = vmatprep.subr.mxu0 0.0
        %1890 = vmatpush1.msra.mxu0 0.0
        %1891 = vmatprep.subr.mxu0 0.0
        %1892 = vmatpush1.msra.mxu0 0.0
        %1893 = vmatprep.subr.mxu0 0.0
        %1894 = vmatpush1.msra.mxu0 0.0
        %1895 = vmatprep.subr.mxu0 0.0
        %1896 = vmatpush1.msra.mxu0 0.0
        %1897 = vmatprep.subr.mxu0 0.0
        %1898 = vmatpush1.msra.mxu0 0.0
        %1899 = vmatprep.subr.mxu0 0.0
        %1900 = vmatpush1.msra.mxu0 0.0
        %1901 = vmatprep.subr.mxu0 0.0
        %1902 = vmatpush1.msra.mxu0 0.0
        %1903 = vmatprep.subr.mxu0 0.0
        %1904 = vmatpush1.msra.mxu0 0.0
        %1905 = vmatprep.subr.mxu0 0.0
        %1906 = vmatpush1.msra.mxu0 0.0
        %1907 = vmatprep.subr.mxu0 0.0
        %1908 = vmatpush1.msra.mxu0 0.0
        %1909 = vmatprep.subr.mxu0 0.0
        %1910 = vmatpush1.msra.mxu0 0.0
        %1911 = vmatprep.subr.mxu0 0.0
        %1912 = vmatpush1.msra.mxu0 0.0
        %1913 = vmatprep.subr.mxu0 0.0
        %1914 = vmatpush1.msra.mxu0 0.0
        %1915 = vmatprep.subr.mxu0 0.0
        %1916 = vmatpush1.msra.mxu0 0.0
        %1917 = vmatprep.subr.mxu0 0.0
        %1918 = vmatpush1.msra.mxu0 0.0
        %1919 = vmatprep.subr.mxu0 0.0
        %1920 = vmatpush1.msra.mxu0 0.0
        %1921 = vmatprep.subr.mxu0 0.0
        %1922 = vmatpush1.msra.mxu0 0.0
        %1923 = vmatprep.subr.mxu0 0.0
        %1924 = vmatpush1.msra.mxu0 0.0
        %1925 = vmatprep.subr.mxu0 0.0
        %1926 = vmatpush1.msra.mxu0 0.0
        %1927 = vmatprep.subr.mxu0 0.0
        %1928 = vmatpush1.msra.mxu0 0.0
        %1929 = vmatprep.mubr.f32.mxu0 0.0
        %1930 = vmatmul.mubr.f32.gmra.mrb[0].mxu0 %v1863
        %v1931 = vpop.f32.mrb[0].mxu0
        %v1932 = vadd.f32 0.0, %v1931
        %v1933 = vpop.f32.mrb[0].mxu0
        %1934 = vdwg.mxu0
        %v1936 = vsel %vm704, %v1687, 0
        %1938 = vmatprep.subr.mxu0 0.0
        %1939 = vmatpush1.msra.mxu0 %v1691
        %1940 = vmatprep.subr.mxu0 0.0
        %1941 = vmatpush1.msra.mxu0 %v1692
        %1942 = vmatprep.subr.mxu0 0.0
        %1943 = vmatpush1.msra.mxu0 0.0
        %1944 = vmatprep.subr.mxu0 0.0
        %1945 = vmatpush1.msra.mxu0 0.0
        %1946 = vmatprep.subr.mxu0 0.0
        %1947 = vmatpush1.msra.mxu0 0.0
        %1948 = vmatprep.subr.mxu0 0.0
        %1949 = vmatpush1.msra.mxu0 0.0
        %1950 = vmatprep.subr.mxu0 0.0
        %1951 = vmatpush1.msra.mxu0 0.0
        %1952 = vmatprep.subr.mxu0 0.0
        %1953 = vmatpush1.msra.mxu0 0.0
        %1954 = vmatprep.subr.mxu0 0.0
        %1955 = vmatpush1.msra.mxu0 0.0
        %1956 = vmatprep.subr.mxu0 0.0
        %1957 = vmatpush1.msra.mxu0 0.0
        %1958 = vmatprep.subr.mxu0 0.0
        %1959 = vmatpush1.msra.mxu0 0.0
        %1960 = vmatprep.subr.mxu0 0.0
        %1961 = vmatpush1.msra.mxu0 0.0
        %1962 = vmatprep.subr.mxu0 0.0
        %1963 = vmatpush1.msra.mxu0 0.0
        %1964 = vmatprep.subr.mxu0 0.0
        %1965 = vmatpush1.msra.mxu0 0.0
        %1966 = vmatprep.subr.mxu0 0.0
        %1967 = vmatpush1.msra.mxu0 0.0
        %1968 = vmatprep.subr.mxu0 0.0
        %1969 = vmatpush1.msra.mxu0 0.0
        %1970 = vmatprep.subr.mxu0 0.0
        %1971 = vmatpush1.msra.mxu0 0.0
        %1972 = vmatprep.subr.mxu0 0.0
        %1973 = vmatpush1.msra.mxu0 0.0
        %1974 = vmatprep.subr.mxu0 0.0
        %1975 = vmatpush1.msra.mxu0 0.0
        %1976 = vmatprep.subr.mxu0 0.0
        %1977 = vmatpush1.msra.mxu0 0.0
        %1978 = vmatprep.subr.mxu0 0.0
        %1979 = vmatpush1.msra.mxu0 0.0
        %1980 = vmatprep.subr.mxu0 0.0
        %1981 = vmatpush1.msra.mxu0 0.0
        %1982 = vmatprep.subr.mxu0 0.0
        %1983 = vmatpush1.msra.mxu0 0.0
        %1984 = vmatprep.subr.mxu0 0.0
        %1985 = vmatpush1.msra.mxu0 0.0
        %1986 = vmatprep.subr.mxu0 0.0
        %1987 = vmatpush1.msra.mxu0 0.0
        %1988 = vmatprep.subr.mxu0 0.0
        %1989 = vmatpush1.msra.mxu0 0.0
        %1990 = vmatprep.subr.mxu0 0.0
        %1991 = vmatpush1.msra.mxu0 0.0
        %1992 = vmatprep.subr.mxu0 0.0
        %1993 = vmatpush1.msra.mxu0 0.0
        %1994 = vmatprep.subr.mxu0 0.0
        %1995 = vmatpush1.msra.mxu0 0.0
        %1996 = vmatprep.subr.mxu0 0.0
        %1997 = vmatpush1.msra.mxu0 0.0
        %1998 = vmatprep.subr.mxu0 0.0
        %1999 = vmatpush1.msra.mxu0 0.0
        %2000 = vmatprep.subr.mxu0 0.0
        %2001 = vmatpush1.msra.mxu0 0.0
        %2002 = vmatprep.mubr.f32.mxu0 0.0
        %2003 = vmatmul.mubr.f32.gmra.mrb[0].mxu0 %v1936
        %v2004 = vpop.f32.mrb[0].mxu0
        %v2005 = vadd.f32 %v1932, %v2004
        %v2006 = vpop.f32.mrb[0].mxu0
        %2007 = vdwg.mxu0
        %s2008 = scalar_lea.vmem %s7, 1
        %v2009 = vld [vmem:[%s2008] sm:$0x1]
        %v2011 = vlaneseq
        %v2012 = vshrl.u32 %v2011, 7
        %v2013 = vsub.s32 0, %v2012
        %v2014 = vrot.slane %v2009, %v2013
        %v2016 = vadd.f32 %v2005, %v2014
        %v2017 = vadd.f32 %v2016, %v1437
        %s2018 = scalar_lea.vmem %s8, 1
        %v2019 = vld [vmem:[%s2018] sm:$0x1]
        %s2020 = scalar_lea.vmem %s9, 1
        %v2021 = vld [vmem:[%s2020] sm:$0x1]
        %v2022 = vsel %vm587, %v2017, 0.0
        %2023 = vadd.xlane.f32.xlu0 %v2022
        %v2024 = vpop.xlane.xlu0 %2023
        %v2025 = vmul.f32 %v2024, %v591
        %v2026 = vsub.f32 %v2017, %v2025
        %v2027 = vmul.f32 %v2026, %v2026
        %v2028 = vsel %vm587, %v2027, 0.0
        %2029 = vadd.xlane.f32.xlu0 %v2028
        %v2030 = vpop.xlane.xlu0 %2029
        %v2031 = vmul.f32 %v2030, %v591
        %v2032 = vadd.f32 %v2031, 1e-12
        %v2033 = vrsqrt.pop %v2032
        %v2034 = vmul.f32 %v2026, %v2033
        %v2036 = vlaneseq
        %v2037 = vshrl.u32 %v2036, 7
        %v2038 = vsub.s32 0, %v2037
        %v2039 = vrot.slane %v2019, %v2038
        %v2041 = vmul.f32 %v2034, %v2039
        %v2043 = vlaneseq
        %v2044 = vshrl.u32 %v2043, 7
        %v2045 = vsub.s32 0, %v2044
        %v2046 = vrot.slane %v2021, %v2045
        %v2048 = vadd.f32 %v2041, %v2046
        %s2049 = scalar_lea.vmem %s10, 32
        %v2050 = vld [vmem:[%s2049] sm:$0xff]
        %v2051 = vld [vmem:[%s2049 + $0x8] sm:$0xff]
        %v2052 = vld [vmem:[%s2049 + $0x10] sm:$0xff]
        %v2053 = vld [vmem:[%s2049 + $0x18] sm:$0xff]
        %s2054 = scalar_lea.vmem %s11, 1
        %v2055 = vld [vmem:[%s2054] sm:$0x1]
        %v2057 = vlaneseq
        %v2058 = vshrl.u32 %v2057, 7
        %v2059 = vsub.s32 0, %v2058
        %v2060 = vrot.slane %v2055, %v2059
        %v2063 = vsel %vm587, %v2048, 0
        %2065 = vmatprep.subr.mxu0 0.0
        %2066 = vmatpush1.msra.mxu0 %v2050
        %2067 = vmatprep.subr.mxu0 0.0
        %2068 = vmatpush1.msra.mxu0 %v2051
        %2069 = vmatprep.subr.mxu0 0.0
        %2070 = vmatpush1.msra.mxu0 %v2052
        %2071 = vmatprep.subr.mxu0 0.0
        %2072 = vmatpush1.msra.mxu0 %v2053
        %2073 = vmatprep.subr.mxu0 0.0
        %2074 = vmatpush1.msra.mxu0 0.0
        %2075 = vmatprep.subr.mxu0 0.0
        %2076 = vmatpush1.msra.mxu0 0.0
        %2077 = vmatprep.subr.mxu0 0.0
        %2078 = vmatpush1.msra.mxu0 0.0
        %2079 = vmatprep.subr.mxu0 0.0
        %2080 = vmatpush1.msra.mxu0 0.0
        %2081 = vmatprep.subr.mxu0 0.0
        %2082 = vmatpush1.msra.mxu0 0.0
        %2083 = vmatprep.subr.mxu0 0.0
        %2084 = vmatpush1.msra.mxu0 0.0
        %2085 = vmatprep.subr.mxu0 0.0
        %2086 = vmatpush1.msra.mxu0 0.0
        %2087 = vmatprep.subr.mxu0 0.0
        %2088 = vmatpush1.msra.mxu0 0.0
        %2089 = vmatprep.subr.mxu0 0.0
        %2090 = vmatpush1.msra.mxu0 0.0
        %2091 = vmatprep.subr.mxu0 0.0
        %2092 = vmatpush1.msra.mxu0 0.0
        %2093 = vmatprep.subr.mxu0 0.0
        %2094 = vmatpush1.msra.mxu0 0.0
        %2095 = vmatprep.subr.mxu0 0.0
        %2096 = vmatpush1.msra.mxu0 0.0
        %2097 = vmatprep.subr.mxu0 0.0
        %2098 = vmatpush1.msra.mxu0 0.0
        %2099 = vmatprep.subr.mxu0 0.0
        %2100 = vmatpush1.msra.mxu0 0.0
        %2101 = vmatprep.subr.mxu0 0.0
        %2102 = vmatpush1.msra.mxu0 0.0
        %2103 = vmatprep.subr.mxu0 0.0
        %2104 = vmatpush1.msra.mxu0 0.0
        %2105 = vmatprep.subr.mxu0 0.0
        %2106 = vmatpush1.msra.mxu0 0.0
        %2107 = vmatprep.subr.mxu0 0.0
        %2108 = vmatpush1.msra.mxu0 0.0
        %2109 = vmatprep.subr.mxu0 0.0
        %2110 = vmatpush1.msra.mxu0 0.0
        %2111 = vmatprep.subr.mxu0 0.0
        %2112 = vmatpush1.msra.mxu0 0.0
        %2113 = vmatprep.subr.mxu0 0.0
        %2114 = vmatpush1.msra.mxu0 0.0
        %2115 = vmatprep.subr.mxu0 0.0
        %2116 = vmatpush1.msra.mxu0 0.0
        %2117 = vmatprep.subr.mxu0 0.0
        %2118 = vmatpush1.msra.mxu0 0.0
        %2119 = vmatprep.subr.mxu0 0.0
        %2120 = vmatpush1.msra.mxu0 0.0
        %2121 = vmatprep.subr.mxu0 0.0
        %2122 = vmatpush1.msra.mxu0 0.0
        %2123 = vmatprep.subr.mxu0 0.0
        %2124 = vmatpush1.msra.mxu0 0.0
        %2125 = vmatprep.subr.mxu0 0.0
        %2126 = vmatpush1.msra.mxu0 0.0
        %2127 = vmatprep.subr.mxu0 0.0
        %2128 = vmatpush1.msra.mxu0 0.0
        %2129 = vmatprep.mubr.f32.mxu0 0.0
        %2130 = vmatmul.mubr.f32.gmra.mrb[0].mxu0 %v2063
        %v2131 = vpop.f32.mrb[0].mxu0
        %v2132 = vadd.f32 %v2060, %v2131
        %v2133 = vpop.f32.mrb[0].mxu0
        %2134 = vdwg.mxu0
        %v2135 = vmul.f32 %v2132, 0.5
        %v2136 = vmul.f32 %v2132, 0.70710677
        %v2137 = verf.f32.pop %v2136
        %v2138 = vadd.f32 %v2137, 1.0
        %v2139 = vmul.f32 %v2135, %v2138
        %s2140 = scalar_lea.vmem %s12, 64
        %v2141 = vld [vmem:[%s2140] sm:$0xff]
        %v2142 = vld [vmem:[%s2140 + $0x8] sm:$0xff]
        %v2143 = vld [vmem:[%s2140 + $0x10] sm:$0xff]
        %v2144 = vld [vmem:[%s2140 + $0x18] sm:$0xff]
        %v2145 = vld [vmem:[%s2140 + $0x20] sm:$0xff]
        %v2146 = vld [vmem:[%s2140 + $0x28] sm:$0xff]
        %v2147 = vld [vmem:[%s2140 + $0x30] sm:$0xff]
        %v2148 = vld [vmem:[%s2140 + $0x38] sm:$0xff]
        %s2149 = scalar_lea.vmem %s13, 1
        %v2150 = vld [vmem:[%s2149] sm:$0x1]
        %v2152 = vlaneseq
        %v2153 = vshrl.u32 %v2152, 7
        %v2154 = vsub.s32 0, %v2153
        %v2155 = vrot.slane %v2150, %v2154
        %v2158 = vsel %vm1334, %v2139, 0
        %2160 = vmatprep.subr.mxu0 0.0
        %2161 = vmatpush1.msra.mxu0 %v2141
        %2162 = vmatprep.subr.mxu0 0.0
        %2163 = vmatpush1.msra.mxu0 %v2142
        %2164 = vmatprep.subr.mxu0 0.0
        %2165 = vmatpush1.msra.mxu0 %v2143
        %2166 = vmatprep.subr.mxu0 0.0
        %2167 = vmatpush1.msra.mxu0 %v2144
        %2168 = vmatprep.subr.mxu0 0.0
        %2169 = vmatpush1.msra.mxu0 %v2145
        %2170 = vmatprep.subr.mxu0 0.0
        %2171 = vmatpush1.msra.mxu0 %v2146
        %2172 = vmatprep.subr.mxu0 0.0
        %2173 = vmatpush1.msra.mxu0 %v2147
        %2174 = vmatprep.subr.mxu0 0.0
        %2175 = vmatpush1.msra.mxu0 %v2148
        %2176 = vmatprep.subr.mxu0 0.0
        %2177 = vmatpush1.msra.mxu0 0.0
        %2178 = vmatprep.subr.mxu0 0.0
        %2179 = vmatpush1.msra.mxu0 0.0
        %2180 = vmatprep.subr.mxu0 0.0
        %2181 = vmatpush1.msra.mxu0 0.0
        %2182 = vmatprep.subr.mxu0 0.0
        %2183 = vmatpush1.msra.mxu0 0.0
        %2184 = vmatprep.subr.mxu0 0.0
        %2185 = vmatpush1.msra.mxu0 0.0
        %2186 = vmatprep.subr.mxu0 0.0
        %2187 = vmatpush1.msra.mxu0 0.0
        %2188 = vmatprep.subr.mxu0 0.0
        %2189 = vmatpush1.msra.mxu0 0.0
        %2190 = vmatprep.subr.mxu0 0.0
        %2191 = vmatpush1.msra.mxu0 0.0
        %2192 = vmatprep.subr.mxu0 0.0
        %2193 = vmatpush1.msra.mxu0 0.0
        %2194 = vmatprep.subr.mxu0 0.0
        %2195 = vmatpush1.msra.mxu0 0.0
        %2196 = vmatprep.subr.mxu0 0.0
        %2197 = vmatpush1.msra.mxu0 0.0
        %2198 = vmatprep.subr.mxu0 0.0
        %2199 = vmatpush1.msra.mxu0 0.0
        %2200 = vmatprep.subr.mxu0 0.0
        %2201 = vmatpush1.msra.mxu0 0.0
        %2202 = vmatprep.subr.mxu0 0.0
        %2203 = vmatpush1.msra.mxu0 0.0
        %2204 = vmatprep.subr.mxu0 0.0
        %2205 = vmatpush1.msra.mxu0 0.0
        %2206 = vmatprep.subr.mxu0 0.0
        %2207 = vmatpush1.msra.mxu0 0.0
        %2208 = vmatprep.subr.mxu0 0.0
        %2209 = vmatpush1.msra.mxu0 0.0
        %2210 = vmatprep.subr.mxu0 0.0
        %2211 = vmatpush1.msra.mxu0 0.0
        %2212 = vmatprep.subr.mxu0 0.0
        %2213 = vmatpush1.msra.mxu0 0.0
        %2214 = vmatprep.subr.mxu0 0.0
        %2215 = vmatpush1.msra.mxu0 0.0
        %2216 = vmatprep.subr.mxu0 0.0
        %2217 = vmatpush1.msra.mxu0 0.0
        %2218 = vmatprep.subr.mxu0 0.0
        %2219 = vmatpush1.msra.mxu0 0.0
        %2220 = vmatprep.subr.mxu0 0.0
        %2221 = vmatpush1.msra.mxu0 0.0
        %2222 = vmatprep.subr.mxu0 0.0
        %2223 = vmatpush1.msra.mxu0 0.0
        %2224 = vmatprep.mubr.f32.mxu0 0.0
        %2225 = vmatmul.mubr.f32.gmra.mrb[0].mxu0 %v2158
        %v2226 = vpop.f32.mrb[0].mxu0
        %v2227 = vadd.f32 %v2155, %v2226
        %v2228 = vpop.f32.mrb[0].mxu0
        %2229 = vdwg.mxu0
        %v2230 = vadd.f32 %v2227, %v2048
        %s2231 = scalar_lea.vmem %s14, 1
        %v2232 = vld [vmem:[%s2231] sm:$0x1]
        %s2233 = scalar_lea.vmem %s15, 1
        %v2234 = vld [vmem:[%s2233] sm:$0x1]
        %v2235 = vsel %vm587, %v2230, 0.0
        %2236 = vadd.xlane.f32.xlu0 %v2235
        %v2237 = vpop.xlane.xlu0 %2236
        %v2238 = vmul.f32 %v2237, %v591
        %v2239 = vsub.f32 %v2230, %v2238
        %v2240 = vmul.f32 %v2239, %v2239
        %v2241 = vsel %vm587, %v2240, 0.0
        %2242 = vadd.xlane.f32.xlu0 %v2241
        %v2243 = vpop.xlane.xlu0 %2242
        %v2244 = vmul.f32 %v2243, %v591
        %v2245 = vadd.f32 %v2244, 1e-12
        %v2246 = vrsqrt.pop %v2245
        %v2247 = vmul.f32 %v2239, %v2246
        %v2249 = vlaneseq
        %v2250 = vshrl.u32 %v2249, 7
        %v2251 = vsub.s32 0, %v2250
        %v2252 = vrot.slane %v2232, %v2251
        %v2254 = vmul.f32 %v2247, %v2252
        %v2256 = vlaneseq
        %v2257 = vshrl.u32 %v2256, 7
        %v2258 = vsub.s32 0, %v2257
        %v2259 = vrot.slane %v2234, %v2258
        %v2261 = vadd.f32 %v2254, %v2259
        %v2262 = vld [vmem:[%s16] sm:$0xff]
        %v2263 = vld [vmem:[%s16 + $0x8] sm:$0xff]
        %v2264 = vld [vmem:[%s16 + $0x10] sm:$0xff]
        %v2265 = vld [vmem:[%s16 + $0x18] sm:$0xff]
        %v2266 = vld [vmem:[%s17] sm:$0x1]
        %v2268 = vsel %vm587, %v2261, 0
        %2270 = vmatprep.subr.mxu0 0.0
        %2271 = vmatpush1.msra.mxu0 %v2262
        %2272 = vmatprep.subr.mxu0 0.0
        %2273 = vmatpush1.msra.mxu0 %v2263
        %2274 = vmatprep.subr.mxu0 0.0
        %2275 = vmatpush1.msra.mxu0 %v2264
        %2276 = vmatprep.subr.mxu0 0.0
        %2277 = vmatpush1.msra.mxu0 %v2265
        %2278 = vmatprep.subr.mxu0 0.0
        %2279 = vmatpush1.msra.mxu0 0.0
        %2280 = vmatprep.subr.mxu0 0.0
        %2281 = vmatpush1.msra.mxu0 0.0
        %2282 = vmatprep.subr.mxu0 0.0
        %2283 = vmatpush1.msra.mxu0 0.0
        %2284 = vmatprep.subr.mxu0 0.0
        %2285 = vmatpush1.msra.mxu0 0.0
        %2286 = vmatprep.subr.mxu0 0.0
        %2287 = vmatpush1.msra.mxu0 0.0
        %2288 = vmatprep.subr.mxu0 0.0
        %2289 = vmatpush1.msra.mxu0 0.0
        %2290 = vmatprep.subr.mxu0 0.0
        %2291 = vmatpush1.msra.mxu0 0.0
        %2292 = vmatprep.subr.mxu0 0.0
        %2293 = vmatpush1.msra.mxu0 0.0
        %2294 = vmatprep.subr.mxu0 0.0
        %2295 = vmatpush1.msra.mxu0 0.0
        %2296 = vmatprep.subr.mxu0 0.0
        %2297 = vmatpush1.msra.mxu0 0.0
        %2298 = vmatprep.subr.mxu0 0.0
        %2299 = vmatpush1.msra.mxu0 0.0
        %2300 = vmatprep.subr.mxu0 0.0
        %2301 = vmatpush1.msra.mxu0 0.0
        %2302 = vmatprep.subr.mxu0 0.0
        %2303 = vmatpush1.msra.mxu0 0.0
        %2304 = vmatprep.subr.mxu0 0.0
        %2305 = vmatpush1.msra.mxu0 0.0
        %2306 = vmatprep.subr.mxu0 0.0
        %2307 = vmatpush1.msra.mxu0 0.0
        %2308 = vmatprep.subr.mxu0 0.0
        %2309 = vmatpush1.msra.mxu0 0.0
        %2310 = vmatprep.subr.mxu0 0.0
        %2311 = vmatpush1.msra.mxu0 0.0
        %2312 = vmatprep.subr.mxu0 0.0
        %2313 = vmatpush1.msra.mxu0 0.0
        %2314 = vmatprep.subr.mxu0 0.0
        %2315 = vmatpush1.msra.mxu0 0.0
        %2316 = vmatprep.subr.mxu0 0.0
        %2317 = vmatpush1.msra.mxu0 0.0
        %2318 = vmatprep.subr.mxu0 0.0
        %2319 = vmatpush1.msra.mxu0 0.0
        %2320 = vmatprep.subr.mxu0 0.0
        %2321 = vmatpush1.msra.mxu0 0.0
        %2322 = vmatprep.subr.mxu0 0.0
        %2323 = vmatpush1.msra.mxu0 0.0
        %2324 = vmatprep.subr.mxu0 0.0
        %2325 = vmatpush1.msra.mxu0 0.0
        %2326 = vmatprep.subr.mxu0 0.0
        %2327 = vmatpush1.msra.mxu0 0.0
        %2328 = vmatprep.subr.mxu0 0.0
        %2329 = vmatpush1.msra.mxu0 0.0
        %2330 = vmatprep.subr.mxu0 0.0
        %2331 = vmatpush1.msra.mxu0 0.0
        %2332 = vmatprep.subr.mxu0 0.0
        %2333 = vmatpush1.msra.mxu0 0.0
        %2334 = vmatprep.mubr.f32.mxu0 0.0
        %2335 = vmatmul.mubr.f32.gmra.mrb[0].mxu0 %v2268
        %v2336 = vpop.f32.mrb[0].mxu0
        %v2337 = vadd.f32 %v2266, %v2336
        %v2338 = vpop.f32.mrb[0].mxu0
        %2339 = vdwg.mxu0
        %v2340 = vtanh.pop %v2337
        %vm2341 = vcmask 253952
        %2342 = vst.msk [vmem:[%s576] sm:$0x1] %vm2341, %v2340
        %s2343 = sand.u32 %s428, 1
        %s2344 = scalar_lea.sflag [#allocation3], %s2343
        %s2345 = sand.u32 %s428, 1
        %s2346 = scalar_lea.vmem [#allocation2], %s2345
        // Predicated region
        $region93: #{bert_encoder_forward.1} parent=91 // pred_check
          %p2347 = pneg %p438
        $region94: #{bert_encoder_forward.1} parent=91 // pred_check_branch
          %2349 = sbr.rel (%p2347) target = $region96
        $region95: #{bert_encoder_forward.1} parent=91 // pred_region
          %s2351 = ssub.s32 16, 16
          %2352 = vsyncadd %s2344, %s2351
          %s2353 = smul.addr %s32, 16
          %s2354 = scalar_lea.hbm %s18, %s2353
          %s2356 = sshll.u32 %s2346, 4
          %s2357 = int_to_ptr.vmem [resolvable:$true] %s2356
          %2359 = dma.vmem_to_hbm [thread:$0]  %s2357, 16, %s2354, %s2344
        $region96: #{bert_encoder_forward.1} parent=91 // pred_fallthru
          _
      $region92: #{bert_encoder_forward.1} parent=5 // pred_fallthru
        _
      %p2360 = scmp.le.s32.totalorder 2, %s27
      // Predicated region
      $region97: #{bert_encoder_forward.1} parent=5 // pred_check
        %p2361 = pneg %p2360
      $region98: #{bert_encoder_forward.1} parent=5 // pred_check_branch
        %2363 = sbr.rel (%p2361) target = $region100
      $region99: #{bert_encoder_forward.1} parent=5 // pred_region
        %s2364 = ssub.s32 %s27, 2
        // Predicated region
        $region101: #{bert_encoder_forward.1} parent=99 // pred_check
          %p2365 = pneg %p444
        $region102: #{bert_encoder_forward.1} parent=99 // pred_check_branch
          %2367 = sbr.rel (%p2365) target = $region104
        $region103: #{bert_encoder_forward.1} parent=99 // pred_region
          %s2368 = sand.u32 %s429, 1
          %s2369 = scalar_lea.sflag [#allocation3], %s2368
          %s2370 = sand.u32 %s429, 1
          %s2371 = scalar_lea.vmem [#allocation2], %s2370
          %2372 = dma.done %s2369, 16
        $region104: #{bert_encoder_forward.1} parent=99 // pred_fallthru
          _
      $region100: #{bert_encoder_forward.1} parent=5 // pred_fallthru
        _
    $region6: #{bert_encoder_forward.1} parent=1 // loop_footer
      %s31 = sadd.s32 1, %s27
    $region7: #{bert_encoder_forward.1} parent=1 // loop_footer_branch
      %26 = sbr.rel target = $region3
    $region8: #{bert_encoder_forward.1} parent=1 // loop_exit
      _
    %2373 = vsyncpa [#allocation3], 1
    %s2374 = scalar_lea.sflag [#allocation3], 1
    %2375 = vsyncpa %s2374, 1

</llo_original>
